<compile_context>
chip_gen: v5e
topology: v5e:2x2
jax: 0.10.0
libtpu: 0.0.40
codegen_flags: <defaults>
</compile_context>

<pallas_src>
import jax
import jax.numpy as jnp
from jax import lax
from jax.experimental import pallas as pl
from jax.experimental.pallas import tpu as pltpu

# ---------------------------------------------------------------------------
# Synthetic config (mirrors the fields EABPModel.forward actually uses)
# ---------------------------------------------------------------------------
B = 2
ZF_DIM, ZB_DIM, ZS_DIM = 16, 8, 8
Z_ALL = ZF_DIM + ZB_DIM + ZS_DIM            # 32
H = W = 16
C = 3
HW = H * W                                   # 256 = 2 x 128 lanes
LAT_DIM = 32
K_CLS = 8

assert (W & (W - 1)) == 0                    # base grid built with shifts/masks
W_SHIFT = W.bit_length() - 1

# Spatial decode: rows per batch in the [B*8, HW] result
#   r = 0..2 fg image (pre-tanh) | r = 3 fg mask logits
#   r = 4..6 bg image (pre-tanh) | r = 7 bg mask logits
N_SPROW = 2 * (C + 1)                        # 8
K_SP = 4 * ZF_DIM + 4 * ZB_DIM + N_SPROW     # 104 (block-diag z + one-hot bias)

# Vector-head decode: columns of [z|1] @ w_vec  -> [B, 640]
LAT_COL = 0                                  # bg_lat (pre-relu)      cols 0..31
F_CLS_COL = 32                               # fg class logits        cols 32..39
B_CLS_COL = 40                               # bg class logits        cols 40..47
VEC_PAD = 128                                # lane-padded head width
SP_COL = VEC_PAD                             # SpNet zs-part + bias   cols 128..639
N_VEC = VEC_PAD + 2 * HW                     # 640 = 5 x 128 lanes

SRC_CHUNK = 128                              # warp one-hot source-row tile


# ---------------------------------------------------------------------------
# Fused forward kernel: single grid step, both batch elements
# ---------------------------------------------------------------------------
def _eabp_kernel(z1_ref, lhs_sp_ref, w_vec_ref, w_sp_ref, w_spl_ref,
                 slab_a_ref, slab_b_ref, vec_ref):
    f32 = jnp.float32
    nb = vec_ref.shape[0]

    # ---- decoders: two independent batched MXU matmuls --------------------
    # h1: [nb, 640] = [bg_lat | f_logits | b_logits | pad | SpNet-zs-part(512)]
    h1 = jnp.dot(z1_ref[...], w_vec_ref[...], preferred_element_type=f32)
    # h_sp: [nb*8, HW] -- block-diagonal LHS yields fg/bg image+mask rows
    # directly in sublane layout (no lane->sublane relayout before the warp).
    h_sp = jnp.dot(lhs_sp_ref[...], w_sp_ref[...], preferred_element_type=f32)

    # class-logit / latent head: single lane-dense [nb, 128] store
    vec_ref[...] = h1[:, :VEC_PAD]

    # ---- SpNet(zs, bg_lat.detach()): only the bg_lat term stays dependent -
    bg_lat = lax.stop_gradient(jax.nn.relu(h1[:, LAT_COL:LAT_COL + LAT_DIM]))
    hs = h1[:, SP_COL:SP_COL + 2 * HW] + jnp.dot(
        bg_lat, w_spl_ref[...], preferred_element_type=f32)       # [nb, 2*HW]

    # ---- identity sampling grid (align_corners=False pixel centers) -------
    d_iota = lax.broadcasted_iota(jnp.int32, (1, HW), 1)
    base_x = (2.0 * (d_iota & (W - 1)).astype(f32) + 1.0) / W - 1.0
    base_y = (2.0 * (d_iota >> W_SHIFT).astype(f32) + 1.0) / H - 1.0

    # hoisted invariants for the warp one-hot build
    s_iota = lax.broadcasted_iota(jnp.int32, (SRC_CHUNK, HW), 0)
    img_row = lax.broadcasted_iota(jnp.int32, (C + 1, 1), 0) < C

    for b in range(nb):                       # static unroll (batch fused)
        r0 = N_SPROW * b

        # SpNet offsets -> sampling grid
        off = 0.1 * jnp.tanh(hs[b:b + 1, :])                  # [1, 2*HW]
        gx = base_x + off[:, :HW]
        gy = base_y + off[:, HW:]

        # F.grid_sample un-normalization (bilinear, zeros, align_corners=False)
        ix = (gx + 1.0) * (0.5 * W) - 0.5
        iy = (gy + 1.0) * (0.5 * H) - 0.5
        x0f = jnp.floor(ix)
        y0f = jnp.floor(iy)
        dx = ix - x0f
        dy = iy - y0f
        x0 = x0f.astype(jnp.int32)
        y0 = y0f.astype(jnp.int32)
        x1 = x0 + 1
        y1 = y0 + 1
        w00 = (1.0 - dx) * (1.0 - dy)
        w10 = dx * (1.0 - dy)
        w01 = (1.0 - dx) * dy
        w11 = dx * dy

        def masked(wgt, xi, yi):
            valid = (xi >= 0) & (xi < W) & (yi >= 0) & (yi < H)
            return jnp.where(valid, wgt, 0.0)

        # zeros padding: invalid corners contribute 0 (hoisted out of the loop)
        w00 = masked(w00, x0, y0)
        w10 = masked(w10, x1, y0)
        w01 = masked(w01, x0, y1)
        w11 = masked(w11, x1, y1)
        idx00 = y0 * W + x0        # OOB aliasing is safe: weight already zeroed
        idx10 = idx00 + 1
        idx01 = idx00 + W
        idx11 = idx01 + 1

        # fg / bg heads (rows already in [C(+1), HW] sublane layout)
        fg_img = jnp.tanh(h_sp[r0:r0 + C, :])                 # [3, HW]
        fg_ma = h_sp[r0 + C:r0 + C + 1, :]                    # [1, HW]
        bg_rows = h_sp[r0 + C + 1:r0 + N_SPROW, :]            # [4, HW]
        bg4 = jnp.where(img_row, jnp.tanh(bg_rows), bg_rows)  # tanh img rows only

        # warp bg image + bg mask logits: build W^T[src, dst] in 128-row source
        # chunks and consume each chunk immediately on the MXU.
        wp = jnp.zeros((C + 1, HW), f32)
        for ci in range(HW // SRC_CHUNK):
            s0 = ci * SRC_CHUNK
            wt = (jnp.where(s_iota == idx00 - s0, w00, 0.0)
                  + jnp.where(s_iota == idx10 - s0, w10, 0.0)
                  + jnp.where(s_iota == idx01 - s0, w01, 0.0)
                  + jnp.where(s_iota == idx11 - s0, w11, 0.0))
            wp = wp + jnp.dot(bg4[:, s0:s0 + SRC_CHUNK], wt,
                              preferred_element_type=f32)
        bg_wp = wp[:C, :]                                     # [3, HW]
        bm_wp = wp[C:C + 1, :]                                # [1, HW]

        # 2-way softmax over [fg_ma_logits, warped bg_ma_logits] (exact)
        m = jnp.maximum(fg_ma, bm_wp)
        ef = jnp.exp(fg_ma - m)
        eb = jnp.exp(bm_wp - m)
        inv = 1.0 / (ef + eb)
        pi_f = ef * inv
        pi_b = eb * inv

        im_p = fg_img * pi_f + bg_wp * pi_b

        # packed lane-dense output slabs -- direct row stores, no concat temps
        slab_a_ref[r0:r0 + 3, :] = im_p
        slab_a_ref[r0 + 3:r0 + 6, :] = fg_img
        slab_a_ref[r0 + 6:r0 + 7, :] = pi_f
        slab_a_ref[r0 + 7:r0 + 8, :] = pi_b
        slab_b_ref[r0:r0 + 3, :] = bg_wp
        slab_b_ref[r0 + 3:r0 + 6, :] = bg4[:C, :]
        slab_b_ref[r0 + 6:r0 + 7, :] = gx
        slab_b_ref[r0 + 7:r0 + 8, :] = gy


# ---------------------------------------------------------------------------
# Deterministic synthetic parameters for the (unspecified) sub-nets, packed
# into the lane/sublane-aligned slabs the kernel consumes.
# ---------------------------------------------------------------------------
def init_params(key):
    s = 0.1
    f32 = jnp.float32
    ks = jax.random.split(key, 4)

    # Spatial decoder slab [104, HW]:
    #   rows  0..63  : FgNet image ch0/ch1/ch2 + mask weights  (4 x [ZF, HW])
    #   rows 64..95  : BgNet image ch0/ch1/ch2 + mask weights  (4 x [ZB, HW])
    #   rows 96..103 : per-row biases (kept at zero)
    w_sp = jnp.zeros((K_SP, HW), f32)
    w_sp = w_sp.at[:4 * ZF_DIM, :].set(
        s * jax.random.normal(ks[0], (4 * ZF_DIM, HW), f32))
    w_sp = w_sp.at[4 * ZF_DIM:4 * (ZF_DIM + ZB_DIM), :].set(
        s * jax.random.normal(ks[1], (4 * ZB_DIM, HW), f32))

    # Vector-head slab [33, 640], consumed as [z | 1] @ w_vec:
    #   cols   0..31  : BgNet latent (zb rows)
    #   cols  32..39  : FgNet class logits (zf rows)
    #   cols  40..47  : BgNet class logits (zb rows)
    #   cols  48..127 : pad
    #   cols 128..639 : SpNet zs-contribution to the flow offsets (+ bias row)
    kv = jax.random.split(ks[2], 4)
    w_vec = jnp.zeros((Z_ALL + 1, N_VEC), f32)
    w_vec = w_vec.at[ZF_DIM:ZF_DIM + ZB_DIM, LAT_COL:LAT_COL + LAT_DIM].set(
        s * jax.random.normal(kv[0], (ZB_DIM, LAT_DIM), f32))
    w_vec = w_vec.at[:ZF_DIM, F_CLS_COL:F_CLS_COL + K_CLS].set(
        s * jax.random.normal(kv[1], (ZF_DIM, K_CLS), f32))
    w_vec = w_vec.at[ZF_DIM:ZF_DIM + ZB_DIM, B_CLS_COL:B_CLS_COL + K_CLS].set(
        s * jax.random.normal(kv[2], (ZB_DIM, K_CLS), f32))
    w_vec = w_vec.at[ZF_DIM + ZB_DIM:Z_ALL, SP_COL:SP_COL + 2 * HW].set(
        s * jax.random.normal(kv[3], (ZS_DIM, 2 * HW), f32))

    # SpNet bg_lat contribution [LAT, 2*HW]
    w_spl = s * jax.random.normal(ks[3], (LAT_DIM, 2 * HW), f32)

    return {"w_sp": w_sp, "w_vec": w_vec, "w_spl": w_spl}


# ---------------------------------------------------------------------------
# EABPModel.forward
# ---------------------------------------------------------------------------
def eabp_forward(z, params):
    bn = z.shape[0]
    f32 = jnp.float32
    zf = z[:, :ZF_DIM]
    zb = z[:, ZF_DIM:ZF_DIM + ZB_DIM]

    # Block-diagonal LHS for the spatial decode: row b*8+r decodes channel r of
    # batch b against the matching weight block; trailing one-hot columns fold
    # the per-row bias into the same MXU matmul.  Built once in the wrapper
    # (one tiny XLA fusion) so the kernel needs no relayouts.
    eye4 = jnp.eye(4, dtype=f32)
    kron_f = jnp.einsum("rc,bk->brck", eye4, zf).reshape(bn, 4, 4 * ZF_DIM)
    kron_b = jnp.einsum("rc,bk->brck", eye4, zb).reshape(bn, 4, 4 * ZB_DIM)
    top = jnp.concatenate([kron_f, jnp.zeros((bn, 4, 4 * ZB_DIM), f32)], axis=2)
    bot = jnp.concatenate([jnp.zeros((bn, 4, 4 * ZF_DIM), f32), kron_b], axis=2)
    lhs96 = jnp.concatenate([top, bot], axis=1).reshape(
        bn * N_SPROW, 4 * (ZF_DIM + ZB_DIM))
    bias_cols = jnp.tile(jnp.eye(N_SPROW, dtype=f32), (bn, 1))
    lhs_sp = jnp.concatenate([lhs96, bias_cols], axis=1)        # [bn*8, 104]
    z1 = jnp.concatenate([z, jnp.ones((bn, 1), f32)], axis=1)   # [bn, 33]

    def full(shape):
        return pl.BlockSpec(shape, lambda i, _n=len(shape): (0,) * _n)

    slab_a, slab_b, vec = pl.pallas_call(
        _eabp_kernel,
        out_shape=(
            jax.ShapeDtypeStruct((bn * N_SPROW, HW), f32),   # [im_p|fg|pi_f|pi_b]
            jax.ShapeDtypeStruct((bn * N_SPROW, HW), f32),   # [bg_wp|bg|gx|gy]
            jax.ShapeDtypeStruct((bn, VEC_PAD), f32),        # [bg_lat|f_log|b_log]
        ),
        grid=(1,),
        in_specs=[full(z1.shape), full(lhs_sp.shape),
                  full(params["w_vec"].shape), full(params["w_sp"].shape),
                  full(params["w_spl"].shape)],
        out_specs=(full((bn * N_SPROW, HW)), full((bn * N_SPROW, HW)),
                   full((bn, VEC_PAD))),
        compiler_params=pltpu.CompilerParams(
            dimension_semantics=("arbitrary",)),
    )(z1, lhs_sp, params["w_vec"], params["w_sp"], params["w_spl"])

    # Unpack slabs (pure reshapes / slices; spatial-last layout == NCHW flatten)
    a = slab_a.reshape(bn, N_SPROW, H, W)
    bsl = slab_b.reshape(bn, N_SPROW, H, W)
    im_p = lax.stop_gradient(a[:, 0:3])        # matches `with torch.no_grad()`
    fg = a[:, 3:6]
    pi_f = a[:, 6:7]
    pi_b = a[:, 7:8]
    bg_wp = bsl[:, 0:3]
    bg = bsl[:, 3:6]
    d_grid = jnp.stack([bsl[:, 6], bsl[:, 7]], axis=-1)   # [bn, H, W, 2] (x, y)
    f_logits = vec[:, F_CLS_COL:F_CLS_COL + K_CLS]
    b_logits = vec[:, B_CLS_COL:B_CLS_COL + K_CLS]
    return (im_p, fg, bg_wp, pi_f, pi_b, bg, d_grid, f_logits, b_logits)


# TODO(synk): Langevin prior/posterior sampling, Adam optimizers, the CEBMNet
# energy model and save/load rely on torch.autograd / torch.optim and are out
# of scope of the forward-pass kernel.

if __name__ == "__main__":
    key = jax.random.PRNGKey(0)
    k_param, k_z = jax.random.split(key)
    params = init_params(k_param)
    z = jax.random.normal(k_z, (B, Z_ALL), jnp.float32)

    fwd = jax.jit(eabp_forward)
    outs = jax.block_until_ready(fwd(z, params))
    im_p, fg, bg_wp, pi_f, pi_b, bg, d_grid, f_logits, b_logits = outs

    assert im_p.shape == (B, C, H, W), im_p.shape
    assert fg.shape == (B, C, H, W) and bg_wp.shape == (B, C, H, W)
    assert pi_f.shape == (B, 1, H, W) and pi_b.shape == (B, 1, H, W)
    assert bg.shape == (B, C, H, W)
    assert d_grid.shape == (B, H, W, 2)
    assert f_logits.shape == (B, K_CLS) and b_logits.shape == (B, K_CLS)
    # mask channels must sum to one (exact 2-way softmax inside the kernel)
    assert jnp.allclose(pi_f + pi_b, 1.0, atol=1e-4)
    print("KERNEL_OK")
</pallas_src>

<mosaic_0001>
module attributes {stable_mosaic.version = 11 : i64} {
  func.func @_eabp_kernel(%arg0: i32, %arg1: memref<2x33xf32, #tpu.memory_space<vmem>>, %arg2: memref<16x104xf32, #tpu.memory_space<vmem>>, %arg3: memref<33x640xf32, #tpu.memory_space<vmem>>, %arg4: memref<104x256xf32, #tpu.memory_space<vmem>>, %arg5: memref<32x512xf32, #tpu.memory_space<vmem>>, %arg6: memref<16x256xf32, #tpu.memory_space<vmem>>, %arg7: memref<16x256xf32, #tpu.memory_space<vmem>>, %arg8: memref<2x128xf32, #tpu.memory_space<vmem>>) attributes {dimension_semantics = [#tpu.dimension_semantics<arbitrary>], iteration_bounds = array<i64: 1>, scalar_prefetch = 0 : i64, scratch_operands = 0 : i64, tpu.core_type = #tpu.core_type<tc>, window_params = [{pipeline_mode = #tpu.pipeline_mode<synchronous>, transform_indices = @transform_0, window_bounds = array<i64: 2, 33>}, {pipeline_mode = #tpu.pipeline_mode<synchronous>, transform_indices = @transform_1, window_bounds = array<i64: 16, 104>}, {pipeline_mode = #tpu.pipeline_mode<synchronous>, transform_indices = @transform_2, window_bounds = array<i64: 33, 640>}, {pipeline_mode = #tpu.pipeline_mode<synchronous>, transform_indices = @transform_3, window_bounds = array<i64: 104, 256>}, {pipeline_mode = #tpu.pipeline_mode<synchronous>, transform_indices = @transform_4, window_bounds = array<i64: 32, 512>}, {pipeline_mode = #tpu.pipeline_mode<synchronous>, transform_indices = @transform_5, window_bounds = array<i64: 16, 256>}, {pipeline_mode = #tpu.pipeline_mode<synchronous>, transform_indices = @transform_6, window_bounds = array<i64: 16, 256>}, {pipeline_mode = #tpu.pipeline_mode<synchronous>, transform_indices = @transform_7, window_bounds = array<i64: 2, 128>}]} {
    %c0 = arith.constant 0 : index
    %c0_0 = arith.constant 0 : index
    %0 = vector.load %arg1[%c0, %c0_0] : memref<2x33xf32, #tpu.memory_space<vmem>>, vector<2x33xf32>
    %c0_1 = arith.constant 0 : index
    %c0_2 = arith.constant 0 : index
    %1 = vector.load %arg3[%c0_1, %c0_2] : memref<33x640xf32, #tpu.memory_space<vmem>>, vector<33x640xf32>
    %cst = arith.constant dense<0.000000e+00> : vector<2x640xf32>
    %2 = tpu.matmul %0, %1, %cst {dimension_numbers = #tpu.dot_dimension_numbers<[1], [0], [0], [1], [0, 0, 1, 1], [], []>} : vector<2x33xf32>, vector<33x640xf32>, vector<2x640xf32> -> vector<2x640xf32>
    %c0_3 = arith.constant 0 : index
    %c0_4 = arith.constant 0 : index
    %3 = vector.load %arg2[%c0_3, %c0_4] : memref<16x104xf32, #tpu.memory_space<vmem>>, vector<16x104xf32>
    %c0_5 = arith.constant 0 : index
    %c0_6 = arith.constant 0 : index
    %4 = vector.load %arg4[%c0_5, %c0_6] : memref<104x256xf32, #tpu.memory_space<vmem>>, vector<104x256xf32>
    %cst_7 = arith.constant dense<0.000000e+00> : vector<16x256xf32>
    %5 = tpu.matmul %3, %4, %cst_7 {dimension_numbers = #tpu.dot_dimension_numbers<[1], [0], [0], [1], [0, 0, 1, 1], [], []>} : vector<16x104xf32>, vector<104x256xf32>, vector<16x256xf32> -> vector<16x256xf32>
    %6 = vector.extract_strided_slice %2 {offsets = [0, 0], sizes = [2, 128], strides = [1, 1]} : vector<2x640xf32> to vector<2x128xf32>
    %c0_8 = arith.constant 0 : index
    %c0_9 = arith.constant 0 : index
    %7 = vector.load %arg8[%c0_8, %c0_9] : memref<2x128xf32, #tpu.memory_space<vmem>>, vector<2x128xf32>
    tpu.vector_store %arg8[%c0_8, %c0_9], %6 {strides = array<i32>} : memref<2x128xf32, #tpu.memory_space<vmem>>, vector<2x128xf32>,
    %8 = vector.extract_strided_slice %2 {offsets = [0, 0], sizes = [2, 32], strides = [1, 1]} : vector<2x640xf32> to vector<2x32xf32>
    %cst_10 = arith.constant 0.000000e+00 : f32
    %9 = vector.broadcast %cst_10 : f32 to vector<2x32xf32>
    %10 = arith.maximumf %8, %9 : vector<2x32xf32>
    %11 = vector.extract_strided_slice %2 {offsets = [0, 128], sizes = [2, 512], strides = [1, 1]} : vector<2x640xf32> to vector<2x512xf32>
    %c0_11 = arith.constant 0 : index
    %c0_12 = arith.constant 0 : index
    %12 = vector.load %arg5[%c0_11, %c0_12] : memref<32x512xf32, #tpu.memory_space<vmem>>, vector<32x512xf32>
    %cst_13 = arith.constant dense<0.000000e+00> : vector<2x512xf32>
    %13 = tpu.matmul %10, %12, %cst_13 {dimension_numbers = #tpu.dot_dimension_numbers<[1], [0], [0], [1], [0, 0, 1, 1], [], []>} : vector<2x32xf32>, vector<32x512xf32>, vector<2x512xf32> -> vector<2x512xf32>
    %14 = arith.addf %11, %13 : vector<2x512xf32>
    %15 = tpu.iota {dimensions = array<i32: 1>} : vector<1x256xi32>
    %c15_i32 = arith.constant 15 : i32
    %16 = vector.broadcast %c15_i32 : i32 to vector<1x256xi32>
    %17 = arith.andi %15, %16 : vector<1x256xi32>
    %18 = arith.sitofp %17 : vector<1x256xi32> to vector<1x256xf32>
    %cst_14 = arith.constant 2.000000e+00 : f32
    %19 = vector.broadcast %cst_14 : f32 to vector<1x256xf32>
    %20 = arith.mulf %19, %18 : vector<1x256xf32>
    %cst_15 = arith.constant 1.000000e+00 : f32
    %21 = vector.broadcast %cst_15 : f32 to vector<1x256xf32>
    %22 = arith.addf %20, %21 : vector<1x256xf32>
    %cst_16 = arith.constant 1.600000e+01 : f32
    %23 = vector.broadcast %cst_16 : f32 to vector<1x256xf32>
    %24 = arith.divf %22, %23 : vector<1x256xf32>
    %cst_17 = arith.constant 1.000000e+00 : f32
    %25 = vector.broadcast %cst_17 : f32 to vector<1x256xf32>
    %26 = arith.subf %24, %25 : vector<1x256xf32>
    %c4_i32 = arith.constant 4 : i32
    %27 = vector.broadcast %c4_i32 : i32 to vector<1x256xi32>
    %28 = arith.shrsi %15, %27 : vector<1x256xi32>
    %29 = arith.sitofp %28 : vector<1x256xi32> to vector<1x256xf32>
    %cst_18 = arith.constant 2.000000e+00 : f32
    %30 = vector.broadcast %cst_18 : f32 to vector<1x256xf32>
    %31 = arith.mulf %30, %29 : vector<1x256xf32>
    %cst_19 = arith.constant 1.000000e+00 : f32
    %32 = vector.broadcast %cst_19 : f32 to vector<1x256xf32>
    %33 = arith.addf %31, %32 : vector<1x256xf32>
    %cst_20 = arith.constant 1.600000e+01 : f32
    %34 = vector.broadcast %cst_20 : f32 to vector<1x256xf32>
    %35 = arith.divf %33, %34 : vector<1x256xf32>
    %cst_21 = arith.constant 1.000000e+00 : f32
    %36 = vector.broadcast %cst_21 : f32 to vector<1x256xf32>
    %37 = arith.subf %35, %36 : vector<1x256xf32>
    %38 = tpu.iota {dimensions = array<i32: 0>} : vector<128x256xi32>
    %39 = tpu.iota {dimensions = array<i32: 0>} : vector<4x1xi32>
    %c3_i32 = arith.constant 3 : i32
    %40 = vector.broadcast %c3_i32 : i32 to vector<4x1xi32>
    %41 = arith.cmpi slt, %39, %40 : vector<4x1xi32>
    %42 = vector.extract_strided_slice %14 {offsets = [0, 0], sizes = [1, 512], strides = [1, 1]} : vector<2x512xf32> to vector<1x512xf32>
    %43 = math.tanh %42 : vector<1x512xf32>
    %cst_22 = arith.constant 1.000000e-01 : f32
    %44 = vector.broadcast %cst_22 : f32 to vector<1x512xf32>
    %45 = arith.mulf %44, %43 : vector<1x512xf32>
    %46 = vector.extract_strided_slice %45 {offsets = [0, 0], sizes = [1, 256], strides = [1, 1]} : vector<1x512xf32> to vector<1x256xf32>
    %47 = arith.addf %26, %46 : vector<1x256xf32>
    %48 = vector.extract_strided_slice %45 {offsets = [0, 256], sizes = [1, 256], strides = [1, 1]} : vector<1x512xf32> to vector<1x256xf32>
    %49 = arith.addf %37, %48 : vector<1x256xf32>
    %cst_23 = arith.constant 1.000000e+00 : f32
    %50 = vector.broadcast %cst_23 : f32 to vector<1x256xf32>
    %51 = arith.addf %47, %50 : vector<1x256xf32>
    %cst_24 = arith.constant 8.000000e+00 : f32
    %52 = vector.broadcast %cst_24 : f32 to vector<1x256xf32>
    %53 = arith.mulf %51, %52 : vector<1x256xf32>
    %cst_25 = arith.constant 5.000000e-01 : f32
    %54 = vector.broadcast %cst_25 : f32 to vector<1x256xf32>
    %55 = arith.subf %53, %54 : vector<1x256xf32>
    %cst_26 = arith.constant 1.000000e+00 : f32
    %56 = vector.broadcast %cst_26 : f32 to vector<1x256xf32>
    %57 = arith.addf %49, %56 : vector<1x256xf32>
    %cst_27 = arith.constant 8.000000e+00 : f32
    %58 = vector.broadcast %cst_27 : f32 to vector<1x256xf32>
    %59 = arith.mulf %57, %58 : vector<1x256xf32>
    %cst_28 = arith.constant 5.000000e-01 : f32
    %60 = vector.broadcast %cst_28 : f32 to vector<1x256xf32>
    %61 = arith.subf %59, %60 : vector<1x256xf32>
    %62 = math.floor %55 : vector<1x256xf32>
    %63 = math.floor %61 : vector<1x256xf32>
    %64 = arith.subf %55, %62 : vector<1x256xf32>
    %65 = arith.subf %61, %63 : vector<1x256xf32>
    %66 = arith.fptosi %62 : vector<1x256xf32> to vector<1x256xi32>
    %67 = arith.fptosi %63 : vector<1x256xf32> to vector<1x256xi32>
    %c1_i32 = arith.constant 1 : i32
    %68 = vector.broadcast %c1_i32 : i32 to vector<1x256xi32>
    %69 = arith.addi %66, %68 : vector<1x256xi32>
    %c1_i32_29 = arith.constant 1 : i32
    %70 = vector.broadcast %c1_i32_29 : i32 to vector<1x256xi32>
    %71 = arith.addi %67, %70 : vector<1x256xi32>
    %cst_30 = arith.constant 1.000000e+00 : f32
    %72 = vector.broadcast %cst_30 : f32 to vector<1x256xf32>
    %73 = arith.subf %72, %64 : vector<1x256xf32>
    %cst_31 = arith.constant 1.000000e+00 : f32
    %74 = vector.broadcast %cst_31 : f32 to vector<1x256xf32>
    %75 = arith.subf %74, %65 : vector<1x256xf32>
    %76 = arith.mulf %73, %75 : vector<1x256xf32>
    %cst_32 = arith.constant 1.000000e+00 : f32
    %77 = vector.broadcast %cst_32 : f32 to vector<1x256xf32>
    %78 = arith.subf %77, %65 : vector<1x256xf32>
    %79 = arith.mulf %64, %78 : vector<1x256xf32>
    %cst_33 = arith.constant 1.000000e+00 : f32
    %80 = vector.broadcast %cst_33 : f32 to vector<1x256xf32>
    %81 = arith.subf %80, %64 : vector<1x256xf32>
    %82 = arith.mulf %81, %65 : vector<1x256xf32>
    %83 = arith.mulf %64, %65 : vector<1x256xf32>
    %c0_i32 = arith.constant 0 : i32
    %84 = vector.broadcast %c0_i32 : i32 to vector<1x256xi32>
    %85 = arith.cmpi sge, %66, %84 : vector<1x256xi32>
    %c16_i32 = arith.constant 16 : i32
    %86 = vector.broadcast %c16_i32 : i32 to vector<1x256xi32>
    %87 = arith.cmpi slt, %66, %86 : vector<1x256xi32>
    %88 = arith.andi %85, %87 : vector<1x256xi1>
    %c0_i32_34 = arith.constant 0 : i32
    %89 = vector.broadcast %c0_i32_34 : i32 to vector<1x256xi32>
    %90 = arith.cmpi sge, %67, %89 : vector<1x256xi32>
    %91 = arith.andi %88, %90 : vector<1x256xi1>
    %c16_i32_35 = arith.constant 16 : i32
    %92 = vector.broadcast %c16_i32_35 : i32 to vector<1x256xi32>
    %93 = arith.cmpi slt, %67, %92 : vector<1x256xi32>
    %94 = arith.andi %91, %93 : vector<1x256xi1>
    %cst_36 = arith.constant 0.000000e+00 : f32
    %95 = vector.broadcast %cst_36 : f32 to vector<1x256xf32>
    %96 = arith.select %94, %76, %95 : vector<1x256xi1>, vector<1x256xf32>
    %c0_i32_37 = arith.constant 0 : i32
    %97 = vector.broadcast %c0_i32_37 : i32 to vector<1x256xi32>
    %98 = arith.cmpi sge, %69, %97 : vector<1x256xi32>
    %c16_i32_38 = arith.constant 16 : i32
    %99 = vector.broadcast %c16_i32_38 : i32 to vector<1x256xi32>
    %100 = arith.cmpi slt, %69, %99 : vector<1x256xi32>
    %101 = arith.andi %98, %100 : vector<1x256xi1>
    %c0_i32_39 = arith.constant 0 : i32
    %102 = vector.broadcast %c0_i32_39 : i32 to vector<1x256xi32>
    %103 = arith.cmpi sge, %67, %102 : vector<1x256xi32>
    %104 = arith.andi %101, %103 : vector<1x256xi1>
    %c16_i32_40 = arith.constant 16 : i32
    %105 = vector.broadcast %c16_i32_40 : i32 to vector<1x256xi32>
    %106 = arith.cmpi slt, %67, %105 : vector<1x256xi32>
    %107 = arith.andi %104, %106 : vector<1x256xi1>
    %cst_41 = arith.constant 0.000000e+00 : f32
    %108 = vector.broadcast %cst_41 : f32 to vector<1x256xf32>
    %109 = arith.select %107, %79, %108 : vector<1x256xi1>, vector<1x256xf32>
    %c0_i32_42 = arith.constant 0 : i32
    %110 = vector.broadcast %c0_i32_42 : i32 to vector<1x256xi32>
    %111 = arith.cmpi sge, %66, %110 : vector<1x256xi32>
    %c16_i32_43 = arith.constant 16 : i32
    %112 = vector.broadcast %c16_i32_43 : i32 to vector<1x256xi32>
    %113 = arith.cmpi slt, %66, %112 : vector<1x256xi32>
    %114 = arith.andi %111, %113 : vector<1x256xi1>
    %c0_i32_44 = arith.constant 0 : i32
    %115 = vector.broadcast %c0_i32_44 : i32 to vector<1x256xi32>
    %116 = arith.cmpi sge, %71, %115 : vector<1x256xi32>
    %117 = arith.andi %114, %116 : vector<1x256xi1>
    %c16_i32_45 = arith.constant 16 : i32
    %118 = vector.broadcast %c16_i32_45 : i32 to vector<1x256xi32>
    %119 = arith.cmpi slt, %71, %118 : vector<1x256xi32>
    %120 = arith.andi %117, %119 : vector<1x256xi1>
    %cst_46 = arith.constant 0.000000e+00 : f32
    %121 = vector.broadcast %cst_46 : f32 to vector<1x256xf32>
    %122 = arith.select %120, %82, %121 : vector<1x256xi1>, vector<1x256xf32>
    %c0_i32_47 = arith.constant 0 : i32
    %123 = vector.broadcast %c0_i32_47 : i32 to vector<1x256xi32>
    %124 = arith.cmpi sge, %69, %123 : vector<1x256xi32>
    %c16_i32_48 = arith.constant 16 : i32
    %125 = vector.broadcast %c16_i32_48 : i32 to vector<1x256xi32>
    %126 = arith.cmpi slt, %69, %125 : vector<1x256xi32>
    %127 = arith.andi %124, %126 : vector<1x256xi1>
    %c0_i32_49 = arith.constant 0 : i32
    %128 = vector.broadcast %c0_i32_49 : i32 to vector<1x256xi32>
    %129 = arith.cmpi sge, %71, %128 : vector<1x256xi32>
    %130 = arith.andi %127, %129 : vector<1x256xi1>
    %c16_i32_50 = arith.constant 16 : i32
    %131 = vector.broadcast %c16_i32_50 : i32 to vector<1x256xi32>
    %132 = arith.cmpi slt, %71, %131 : vector<1x256xi32>
    %133 = arith.andi %130, %132 : vector<1x256xi1>
    %cst_51 = arith.constant 0.000000e+00 : f32
    %134 = vector.broadcast %cst_51 : f32 to vector<1x256xf32>
    %135 = arith.select %133, %83, %134 : vector<1x256xi1>, vector<1x256xf32>
    %c16_i32_52 = arith.constant 16 : i32
    %136 = vector.broadcast %c16_i32_52 : i32 to vector<1x256xi32>
    %137 = arith.muli %67, %136 : vector<1x256xi32>
    %138 = arith.addi %137, %66 : vector<1x256xi32>
    %c1_i32_53 = arith.constant 1 : i32
    %139 = vector.broadcast %c1_i32_53 : i32 to vector<1x256xi32>
    %140 = arith.addi %138, %139 : vector<1x256xi32>
    %c16_i32_54 = arith.constant 16 : i32
    %141 = vector.broadcast %c16_i32_54 : i32 to vector<1x256xi32>
    %142 = arith.addi %138, %141 : vector<1x256xi32>
    %c1_i32_55 = arith.constant 1 : i32
    %143 = vector.broadcast %c1_i32_55 : i32 to vector<1x256xi32>
    %144 = arith.addi %142, %143 : vector<1x256xi32>
    %145 = vector.extract_strided_slice %5 {offsets = [0, 0], sizes = [3, 256], strides = [1, 1]} : vector<16x256xf32> to vector<3x256xf32>
    %146 = math.tanh %145 : vector<3x256xf32>
    %147 = vector.extract_strided_slice %5 {offsets = [3, 0], sizes = [1, 256], strides = [1, 1]} : vector<16x256xf32> to vector<1x256xf32>
    %148 = vector.extract_strided_slice %5 {offsets = [4, 0], sizes = [4, 256], strides = [1, 1]} : vector<16x256xf32> to vector<4x256xf32>
    %149 = math.tanh %148 : vector<4x256xf32>
    %150 = vector.shape_cast %41 : vector<4x1xi1> to vector<4x1xi1>
    %151 = vector.broadcast %150 : vector<4x1xi1> to vector<4x256xi1>
    %152 = arith.select %151, %149, %148 : vector<4x256xi1>, vector<4x256xf32>
    %cst_56 = arith.constant 0.000000e+00 : f32
    %153 = vector.broadcast %cst_56 : f32 to vector<4x256xf32>
    %c0_i32_57 = arith.constant 0 : i32
    %154 = vector.broadcast %c0_i32_57 : i32 to vector<1x256xi32>
    %155 = arith.subi %138, %154 : vector<1x256xi32>
    %156 = vector.broadcast %155 : vector<1x256xi32> to vector<128x256xi32>
    %157 = arith.cmpi eq, %38, %156 : vector<128x256xi32>
    %cst_58 = arith.constant 0.000000e+00 : f32
    %158 = vector.shape_cast %96 : vector<1x256xf32> to vector<1x256xf32>
    %159 = vector.broadcast %158 : vector<1x256xf32> to vector<128x256xf32>
    %160 = vector.broadcast %cst_58 : f32 to vector<128x256xf32>
    %161 = arith.select %157, %159, %160 : vector<128x256xi1>, vector<128x256xf32>
    %c0_i32_59 = arith.constant 0 : i32
    %162 = vector.broadcast %c0_i32_59 : i32 to vector<1x256xi32>
    %163 = arith.subi %140, %162 : vector<1x256xi32>
    %164 = vector.broadcast %163 : vector<1x256xi32> to vector<128x256xi32>
    %165 = arith.cmpi eq, %38, %164 : vector<128x256xi32>
    %cst_60 = arith.constant 0.000000e+00 : f32
    %166 = vector.shape_cast %109 : vector<1x256xf32> to vector<1x256xf32>
    %167 = vector.broadcast %166 : vector<1x256xf32> to vector<128x256xf32>
    %168 = vector.broadcast %cst_60 : f32 to vector<128x256xf32>
    %169 = arith.select %165, %167, %168 : vector<128x256xi1>, vector<128x256xf32>
    %170 = arith.addf %161, %169 : vector<128x256xf32>
    %c0_i32_61 = arith.constant 0 : i32
    %171 = vector.broadcast %c0_i32_61 : i32 to vector<1x256xi32>
    %172 = arith.subi %142, %171 : vector<1x256xi32>
    %173 = vector.broadcast %172 : vector<1x256xi32> to vector<128x256xi32>
    %174 = arith.cmpi eq, %38, %173 : vector<128x256xi32>
    %cst_62 = arith.constant 0.000000e+00 : f32
    %175 = vector.shape_cast %122 : vector<1x256xf32> to vector<1x256xf32>
    %176 = vector.broadcast %175 : vector<1x256xf32> to vector<128x256xf32>
    %177 = vector.broadcast %cst_62 : f32 to vector<128x256xf32>
    %178 = arith.select %174, %176, %177 : vector<128x256xi1>, vector<128x256xf32>
    %179 = arith.addf %170, %178 : vector<128x256xf32>
    %c0_i32_63 = arith.constant 0 : i32
    %180 = vector.broadcast %c0_i32_63 : i32 to vector<1x256xi32>
    %181 = arith.subi %144, %180 : vector<1x256xi32>
    %182 = vector.broadcast %181 : vector<1x256xi32> to vector<128x256xi32>
    %183 = arith.cmpi eq, %38, %182 : vector<128x256xi32>
    %cst_64 = arith.constant 0.000000e+00 : f32
    %184 = vector.shape_cast %135 : vector<1x256xf32> to vector<1x256xf32>
    %185 = vector.broadcast %184 : vector<1x256xf32> to vector<128x256xf32>
    %186 = vector.broadcast %cst_64 : f32 to vector<128x256xf32>
    %187 = arith.select %183, %185, %186 : vector<128x256xi1>, vector<128x256xf32>
    %188 = arith.addf %179, %187 : vector<128x256xf32>
    %189 = vector.extract_strided_slice %152 {offsets = [0, 0], sizes = [4, 128], strides = [1, 1]} : vector<4x256xf32> to vector<4x128xf32>
    %cst_65 = arith.constant dense<0.000000e+00> : vector<4x256xf32>
    %190 = tpu.matmul %189, %188, %cst_65 {dimension_numbers = #tpu.dot_dimension_numbers<[1], [0], [0], [1], [0, 0, 1, 1], [], []>} : vector<4x128xf32>, vector<128x256xf32>, vector<4x256xf32> -> vector<4x256xf32>
    %191 = arith.addf %153, %190 : vector<4x256xf32>
    %c128_i32 = arith.constant 128 : i32
    %192 = vector.broadcast %c128_i32 : i32 to vector<1x256xi32>
    %193 = arith.subi %138, %192 : vector<1x256xi32>
    %194 = vector.broadcast %193 : vector<1x256xi32> to vector<128x256xi32>
    %195 = arith.cmpi eq, %38, %194 : vector<128x256xi32>
    %cst_66 = arith.constant 0.000000e+00 : f32
    %196 = vector.shape_cast %96 : vector<1x256xf32> to vector<1x256xf32>
    %197 = vector.broadcast %196 : vector<1x256xf32> to vector<128x256xf32>
    %198 = vector.broadcast %cst_66 : f32 to vector<128x256xf32>
    %199 = arith.select %195, %197, %198 : vector<128x256xi1>, vector<128x256xf32>
    %c128_i32_67 = arith.constant 128 : i32
    %200 = vector.broadcast %c128_i32_67 : i32 to vector<1x256xi32>
    %201 = arith.subi %140, %200 : vector<1x256xi32>
    %202 = vector.broadcast %201 : vector<1x256xi32> to vector<128x256xi32>
    %203 = arith.cmpi eq, %38, %202 : vector<128x256xi32>
    %cst_68 = arith.constant 0.000000e+00 : f32
    %204 = vector.shape_cast %109 : vector<1x256xf32> to vector<1x256xf32>
    %205 = vector.broadcast %204 : vector<1x256xf32> to vector<128x256xf32>
    %206 = vector.broadcast %cst_68 : f32 to vector<128x256xf32>
    %207 = arith.select %203, %205, %206 : vector<128x256xi1>, vector<128x256xf32>
    %208 = arith.addf %199, %207 : vector<128x256xf32>
    %c128_i32_69 = arith.constant 128 : i32
    %209 = vector.broadcast %c128_i32_69 : i32 to vector<1x256xi32>
    %210 = arith.subi %142, %209 : vector<1x256xi32>
    %211 = vector.broadcast %210 : vector<1x256xi32> to vector<128x256xi32>
    %212 = arith.cmpi eq, %38, %211 : vector<128x256xi32>
    %cst_70 = arith.constant 0.000000e+00 : f32
    %213 = vector.shape_cast %122 : vector<1x256xf32> to vector<1x256xf32>
    %214 = vector.broadcast %213 : vector<1x256xf32> to vector<128x256xf32>
    %215 = vector.broadcast %cst_70 : f32 to vector<128x256xf32>
    %216 = arith.select %212, %214, %215 : vector<128x256xi1>, vector<128x256xf32>
    %217 = arith.addf %208, %216 : vector<128x256xf32>
    %c128_i32_71 = arith.constant 128 : i32
    %218 = vector.broadcast %c128_i32_71 : i32 to vector<1x256xi32>
    %219 = arith.subi %144, %218 : vector<1x256xi32>
    %220 = vector.broadcast %219 : vector<1x256xi32> to vector<128x256xi32>
    %221 = arith.cmpi eq, %38, %220 : vector<128x256xi32>
    %cst_72 = arith.constant 0.000000e+00 : f32
    %222 = vector.shape_cast %135 : vector<1x256xf32> to vector<1x256xf32>
    %223 = vector.broadcast %222 : vector<1x256xf32> to vector<128x256xf32>
    %224 = vector.broadcast %cst_72 : f32 to vector<128x256xf32>
    %225 = arith.select %221, %223, %224 : vector<128x256xi1>, vector<128x256xf32>
    %226 = arith.addf %217, %225 : vector<128x256xf32>
    %227 = vector.extract_strided_slice %152 {offsets = [0, 128], sizes = [4, 128], strides = [1, 1]} : vector<4x256xf32> to vector<4x128xf32>
    %cst_73 = arith.constant dense<0.000000e+00> : vector<4x256xf32>
    %228 = tpu.matmul %227, %226, %cst_73 {dimension_numbers = #tpu.dot_dimension_numbers<[1], [0], [0], [1], [0, 0, 1, 1], [], []>} : vector<4x128xf32>, vector<128x256xf32>, vector<4x256xf32> -> vector<4x256xf32>
    %229 = arith.addf %191, %228 : vector<4x256xf32>
    %230 = vector.extract_strided_slice %229 {offsets = [0, 0], sizes = [3, 256], strides = [1, 1]} : vector<4x256xf32> to vector<3x256xf32>
    %231 = vector.extract_strided_slice %229 {offsets = [3, 0], sizes = [1, 256], strides = [1, 1]} : vector<4x256xf32> to vector<1x256xf32>
    %232 = arith.maximumf %147, %231 : vector<1x256xf32>
    %233 = arith.subf %147, %232 : vector<1x256xf32>
    %234 = math.exp %233 : vector<1x256xf32>
    %235 = arith.subf %231, %232 : vector<1x256xf32>
    %236 = math.exp %235 : vector<1x256xf32>
    %237 = arith.addf %234, %236 : vector<1x256xf32>
    %cst_74 = arith.constant 1.000000e+00 : f32
    %238 = vector.broadcast %cst_74 : f32 to vector<1x256xf32>
    %239 = arith.divf %238, %237 : vector<1x256xf32>
    %240 = arith.mulf %234, %239 : vector<1x256xf32>
    %241 = arith.mulf %236, %239 : vector<1x256xf32>
    %242 = vector.broadcast %240 : vector<1x256xf32> to vector<3x256xf32>
    %243 = arith.mulf %146, %242 : vector<3x256xf32>
    %244 = vector.broadcast %241 : vector<1x256xf32> to vector<3x256xf32>
    %245 = arith.mulf %230, %244 : vector<3x256xf32>
    %246 = arith.addf %243, %245 : vector<3x256xf32>
    %c0_75 = arith.constant 0 : index
    %c0_76 = arith.constant 0 : index
    %247 = vector.load %arg6[%c0_75, %c0_76] : memref<16x256xf32, #tpu.memory_space<vmem>>, vector<3x256xf32>
    tpu.vector_store %arg6[%c0_75, %c0_76], %246 {strides = array<i32>} : memref<16x256xf32, #tpu.memory_space<vmem>>, vector<3x256xf32>,
    %c3 = arith.constant 3 : index
    %c0_77 = arith.constant 0 : index
    %248 = vector.load %arg6[%c3, %c0_77] : memref<16x256xf32, #tpu.memory_space<vmem>>, vector<3x256xf32>
    tpu.vector_store %arg6[%c3, %c0_77], %146 {strides = array<i32>} : memref<16x256xf32, #tpu.memory_space<vmem>>, vector<3x256xf32>,
    %c6 = arith.constant 6 : index
    %c0_78 = arith.constant 0 : index
    %249 = vector.load %arg6[%c6, %c0_78] : memref<16x256xf32, #tpu.memory_space<vmem>>, vector<1x256xf32>
    tpu.vector_store %arg6[%c6, %c0_78], %240 {strides = array<i32>} : memref<16x256xf32, #tpu.memory_space<vmem>>, vector<1x256xf32>,
    %c7 = arith.constant 7 : index
    %c0_79 = arith.constant 0 : index
    %250 = vector.load %arg6[%c7, %c0_79] : memref<16x256xf32, #tpu.memory_space<vmem>>, vector<1x256xf32>
    tpu.vector_store %arg6[%c7, %c0_79], %241 {strides = array<i32>} : memref<16x256xf32, #tpu.memory_space<vmem>>, vector<1x256xf32>,
    %c0_80 = arith.constant 0 : index
    %c0_81 = arith.constant 0 : index
    %251 = vector.load %arg7[%c0_80, %c0_81] : memref<16x256xf32, #tpu.memory_space<vmem>>, vector<3x256xf32>
    tpu.vector_store %arg7[%c0_80, %c0_81], %230 {strides = array<i32>} : memref<16x256xf32, #tpu.memory_space<vmem>>, vector<3x256xf32>,
    %252 = vector.extract_strided_slice %152 {offsets = [0, 0], sizes = [3, 256], strides = [1, 1]} : vector<4x256xf32> to vector<3x256xf32>
    %c3_82 = arith.constant 3 : index
    %c0_83 = arith.constant 0 : index
    %253 = vector.load %arg7[%c3_82, %c0_83] : memref<16x256xf32, #tpu.memory_space<vmem>>, vector<3x256xf32>
    tpu.vector_store %arg7[%c3_82, %c0_83], %252 {strides = array<i32>} : memref<16x256xf32, #tpu.memory_space<vmem>>, vector<3x256xf32>,
    %c6_84 = arith.constant 6 : index
    %c0_85 = arith.constant 0 : index
    %254 = vector.load %arg7[%c6_84, %c0_85] : memref<16x256xf32, #tpu.memory_space<vmem>>, vector<1x256xf32>
    tpu.vector_store %arg7[%c6_84, %c0_85], %47 {strides = array<i32>} : memref<16x256xf32, #tpu.memory_space<vmem>>, vector<1x256xf32>,
    %c7_86 = arith.constant 7 : index
    %c0_87 = arith.constant 0 : index
    %255 = vector.load %arg7[%c7_86, %c0_87] : memref<16x256xf32, #tpu.memory_space<vmem>>, vector<1x256xf32>
    tpu.vector_store %arg7[%c7_86, %c0_87], %49 {strides = array<i32>} : memref<16x256xf32, #tpu.memory_space<vmem>>, vector<1x256xf32>,
    %256 = vector.extract_strided_slice %14 {offsets = [1, 0], sizes = [1, 512], strides = [1, 1]} : vector<2x512xf32> to vector<1x512xf32>
    %257 = math.tanh %256 : vector<1x512xf32>
    %cst_88 = arith.constant 1.000000e-01 : f32
    %258 = vector.broadcast %cst_88 : f32 to vector<1x512xf32>
    %259 = arith.mulf %258, %257 : vector<1x512xf32>
    %260 = vector.extract_strided_slice %259 {offsets = [0, 0], sizes = [1, 256], strides = [1, 1]} : vector<1x512xf32> to vector<1x256xf32>
    %261 = arith.addf %26, %260 : vector<1x256xf32>
    %262 = vector.extract_strided_slice %259 {offsets = [0, 256], sizes = [1, 256], strides = [1, 1]} : vector<1x512xf32> to vector<1x256xf32>
    %263 = arith.addf %37, %262 : vector<1x256xf32>
    %cst_89 = arith.constant 1.000000e+00 : f32
    %264 = vector.broadcast %cst_89 : f32 to vector<1x256xf32>
    %265 = arith.addf %261, %264 : vector<1x256xf32>
    %cst_90 = arith.constant 8.000000e+00 : f32
    %266 = vector.broadcast %cst_90 : f32 to vector<1x256xf32>
    %267 = arith.mulf %265, %266 : vector<1x256xf32>
    %cst_91 = arith.constant 5.000000e-01 : f32
    %268 = vector.broadcast %cst_91 : f32 to vector<1x256xf32>
    %269 = arith.subf %267, %268 : vector<1x256xf32>
    %cst_92 = arith.constant 1.000000e+00 : f32
    %270 = vector.broadcast %cst_92 : f32 to vector<1x256xf32>
    %271 = arith.addf %263, %270 : vector<1x256xf32>
    %cst_93 = arith.constant 8.000000e+00 : f32
    %272 = vector.broadcast %cst_93 : f32 to vector<1x256xf32>
    %273 = arith.mulf %271, %272 : vector<1x256xf32>
    %cst_94 = arith.constant 5.000000e-01 : f32
    %274 = vector.broadcast %cst_94 : f32 to vector<1x256xf32>
    %275 = arith.subf %273, %274 : vector<1x256xf32>
    %276 = math.floor %269 : vector<1x256xf32>
    %277 = math.floor %275 : vector<1x256xf32>
    %278 = arith.subf %269, %276 : vector<1x256xf32>
    %279 = arith.subf %275, %277 : vector<1x256xf32>
    %280 = arith.fptosi %276 : vector<1x256xf32> to vector<1x256xi32>
    %281 = arith.fptosi %277 : vector<1x256xf32> to vector<1x256xi32>
    %c1_i32_95 = arith.constant 1 : i32
    %282 = vector.broadcast %c1_i32_95 : i32 to vector<1x256xi32>
    %283 = arith.addi %280, %282 : vector<1x256xi32>
    %c1_i32_96 = arith.constant 1 : i32
    %284 = vector.broadcast %c1_i32_96 : i32 to vector<1x256xi32>
    %285 = arith.addi %281, %284 : vector<1x256xi32>
    %cst_97 = arith.constant 1.000000e+00 : f32
    %286 = vector.broadcast %cst_97 : f32 to vector<1x256xf32>
    %287 = arith.subf %286, %278 : vector<1x256xf32>
    %cst_98 = arith.constant 1.000000e+00 : f32
    %288 = vector.broadcast %cst_98 : f32 to vector<1x256xf32>
    %289 = arith.subf %288, %279 : vector<1x256xf32>
    %290 = arith.mulf %287, %289 : vector<1x256xf32>
    %cst_99 = arith.constant 1.000000e+00 : f32
    %291 = vector.broadcast %cst_99 : f32 to vector<1x256xf32>
    %292 = arith.subf %291, %279 : vector<1x256xf32>
    %293 = arith.mulf %278, %292 : vector<1x256xf32>
    %cst_100 = arith.constant 1.000000e+00 : f32
    %294 = vector.broadcast %cst_100 : f32 to vector<1x256xf32>
    %295 = arith.subf %294, %278 : vector<1x256xf32>
    %296 = arith.mulf %295, %279 : vector<1x256xf32>
    %297 = arith.mulf %278, %279 : vector<1x256xf32>
    %c0_i32_101 = arith.constant 0 : i32
    %298 = vector.broadcast %c0_i32_101 : i32 to vector<1x256xi32>
    %299 = arith.cmpi sge, %280, %298 : vector<1x256xi32>
    %c16_i32_102 = arith.constant 16 : i32
    %300 = vector.broadcast %c16_i32_102 : i32 to vector<1x256xi32>
    %301 = arith.cmpi slt, %280, %300 : vector<1x256xi32>
    %302 = arith.andi %299, %301 : vector<1x256xi1>
    %c0_i32_103 = arith.constant 0 : i32
    %303 = vector.broadcast %c0_i32_103 : i32 to vector<1x256xi32>
    %304 = arith.cmpi sge, %281, %303 : vector<1x256xi32>
    %305 = arith.andi %302, %304 : vector<1x256xi1>
    %c16_i32_104 = arith.constant 16 : i32
    %306 = vector.broadcast %c16_i32_104 : i32 to vector<1x256xi32>
    %307 = arith.cmpi slt, %281, %306 : vector<1x256xi32>
    %308 = arith.andi %305, %307 : vector<1x256xi1>
    %cst_105 = arith.constant 0.000000e+00 : f32
    %309 = vector.broadcast %cst_105 : f32 to vector<1x256xf32>
    %310 = arith.select %308, %290, %309 : vector<1x256xi1>, vector<1x256xf32>
    %c0_i32_106 = arith.constant 0 : i32
    %311 = vector.broadcast %c0_i32_106 : i32 to vector<1x256xi32>
    %312 = arith.cmpi sge, %283, %311 : vector<1x256xi32>
    %c16_i32_107 = arith.constant 16 : i32
    %313 = vector.broadcast %c16_i32_107 : i32 to vector<1x256xi32>
    %314 = arith.cmpi slt, %283, %313 : vector<1x256xi32>
    %315 = arith.andi %312, %314 : vector<1x256xi1>
    %c0_i32_108 = arith.constant 0 : i32
    %316 = vector.broadcast %c0_i32_108 : i32 to vector<1x256xi32>
    %317 = arith.cmpi sge, %281, %316 : vector<1x256xi32>
    %318 = arith.andi %315, %317 : vector<1x256xi1>
    %c16_i32_109 = arith.constant 16 : i32
    %319 = vector.broadcast %c16_i32_109 : i32 to vector<1x256xi32>
    %320 = arith.cmpi slt, %281, %319 : vector<1x256xi32>
    %321 = arith.andi %318, %320 : vector<1x256xi1>
    %cst_110 = arith.constant 0.000000e+00 : f32
    %322 = vector.broadcast %cst_110 : f32 to vector<1x256xf32>
    %323 = arith.select %321, %293, %322 : vector<1x256xi1>, vector<1x256xf32>
    %c0_i32_111 = arith.constant 0 : i32
    %324 = vector.broadcast %c0_i32_111 : i32 to vector<1x256xi32>
    %325 = arith.cmpi sge, %280, %324 : vector<1x256xi32>
    %c16_i32_112 = arith.constant 16 : i32
    %326 = vector.broadcast %c16_i32_112 : i32 to vector<1x256xi32>
    %327 = arith.cmpi slt, %280, %326 : vector<1x256xi32>
    %328 = arith.andi %325, %327 : vector<1x256xi1>
    %c0_i32_113 = arith.constant 0 : i32
    %329 = vector.broadcast %c0_i32_113 : i32 to vector<1x256xi32>
    %330 = arith.cmpi sge, %285, %329 : vector<1x256xi32>
    %331 = arith.andi %328, %330 : vector<1x256xi1>
    %c16_i32_114 = arith.constant 16 : i32
    %332 = vector.broadcast %c16_i32_114 : i32 to vector<1x256xi32>
    %333 = arith.cmpi slt, %285, %332 : vector<1x256xi32>
    %334 = arith.andi %331, %333 : vector<1x256xi1>
    %cst_115 = arith.constant 0.000000e+00 : f32
    %335 = vector.broadcast %cst_115 : f32 to vector<1x256xf32>
    %336 = arith.select %334, %296, %335 : vector<1x256xi1>, vector<1x256xf32>
    %c0_i32_116 = arith.constant 0 : i32
    %337 = vector.broadcast %c0_i32_116 : i32 to vector<1x256xi32>
    %338 = arith.cmpi sge, %283, %337 : vector<1x256xi32>
    %c16_i32_117 = arith.constant 16 : i32
    %339 = vector.broadcast %c16_i32_117 : i32 to vector<1x256xi32>
    %340 = arith.cmpi slt, %283, %339 : vector<1x256xi32>
    %341 = arith.andi %338, %340 : vector<1x256xi1>
    %c0_i32_118 = arith.constant 0 : i32
    %342 = vector.broadcast %c0_i32_118 : i32 to vector<1x256xi32>
    %343 = arith.cmpi sge, %285, %342 : vector<1x256xi32>
    %344 = arith.andi %341, %343 : vector<1x256xi1>
    %c16_i32_119 = arith.constant 16 : i32
    %345 = vector.broadcast %c16_i32_119 : i32 to vector<1x256xi32>
    %346 = arith.cmpi slt, %285, %345 : vector<1x256xi32>
    %347 = arith.andi %344, %346 : vector<1x256xi1>
    %cst_120 = arith.constant 0.000000e+00 : f32
    %348 = vector.broadcast %cst_120 : f32 to vector<1x256xf32>
    %349 = arith.select %347, %297, %348 : vector<1x256xi1>, vector<1x256xf32>
    %c16_i32_121 = arith.constant 16 : i32
    %350 = vector.broadcast %c16_i32_121 : i32 to vector<1x256xi32>
    %351 = arith.muli %281, %350 : vector<1x256xi32>
    %352 = arith.addi %351, %280 : vector<1x256xi32>
    %c1_i32_122 = arith.constant 1 : i32
    %353 = vector.broadcast %c1_i32_122 : i32 to vector<1x256xi32>
    %354 = arith.addi %352, %353 : vector<1x256xi32>
    %c16_i32_123 = arith.constant 16 : i32
    %355 = vector.broadcast %c16_i32_123 : i32 to vector<1x256xi32>
    %356 = arith.addi %352, %355 : vector<1x256xi32>
    %c1_i32_124 = arith.constant 1 : i32
    %357 = vector.broadcast %c1_i32_124 : i32 to vector<1x256xi32>
    %358 = arith.addi %356, %357 : vector<1x256xi32>
    %359 = vector.extract_strided_slice %5 {offsets = [8, 0], sizes = [3, 256], strides = [1, 1]} : vector<16x256xf32> to vector<3x256xf32>
    %360 = math.tanh %359 : vector<3x256xf32>
    %361 = vector.extract_strided_slice %5 {offsets = [11, 0], sizes = [1, 256], strides = [1, 1]} : vector<16x256xf32> to vector<1x256xf32>
    %362 = vector.extract_strided_slice %5 {offsets = [12, 0], sizes = [4, 256], strides = [1, 1]} : vector<16x256xf32> to vector<4x256xf32>
    %363 = math.tanh %362 : vector<4x256xf32>
    %364 = vector.shape_cast %41 : vector<4x1xi1> to vector<4x1xi1>
    %365 = vector.broadcast %364 : vector<4x1xi1> to vector<4x256xi1>
    %366 = arith.select %365, %363, %362 : vector<4x256xi1>, vector<4x256xf32>
    %cst_125 = arith.constant 0.000000e+00 : f32
    %367 = vector.broadcast %cst_125 : f32 to vector<4x256xf32>
    %c0_i32_126 = arith.constant 0 : i32
    %368 = vector.broadcast %c0_i32_126 : i32 to vector<1x256xi32>
    %369 = arith.subi %352, %368 : vector<1x256xi32>
    %370 = vector.broadcast %369 : vector<1x256xi32> to vector<128x256xi32>
    %371 = arith.cmpi eq, %38, %370 : vector<128x256xi32>
    %cst_127 = arith.constant 0.000000e+00 : f32
    %372 = vector.shape_cast %310 : vector<1x256xf32> to vector<1x256xf32>
    %373 = vector.broadcast %372 : vector<1x256xf32> to vector<128x256xf32>
    %374 = vector.broadcast %cst_127 : f32 to vector<128x256xf32>
    %375 = arith.select %371, %373, %374 : vector<128x256xi1>, vector<128x256xf32>
    %c0_i32_128 = arith.constant 0 : i32
    %376 = vector.broadcast %c0_i32_128 : i32 to vector<1x256xi32>
    %377 = arith.subi %354, %376 : vector<1x256xi32>
    %378 = vector.broadcast %377 : vector<1x256xi32> to vector<128x256xi32>
    %379 = arith.cmpi eq, %38, %378 : vector<128x256xi32>
    %cst_129 = arith.constant 0.000000e+00 : f32
    %380 = vector.shape_cast %323 : vector<1x256xf32> to vector<1x256xf32>
    %381 = vector.broadcast %380 : vector<1x256xf32> to vector<128x256xf32>
    %382 = vector.broadcast %cst_129 : f32 to vector<128x256xf32>
    %383 = arith.select %379, %381, %382 : vector<128x256xi1>, vector<128x256xf32>
    %384 = arith.addf %375, %383 : vector<128x256xf32>
    %c0_i32_130 = arith.constant 0 : i32
    %385 = vector.broadcast %c0_i32_130 : i32 to vector<1x256xi32>
    %386 = arith.subi %356, %385 : vector<1x256xi32>
    %387 = vector.broadcast %386 : vector<1x256xi32> to vector<128x256xi32>
    %388 = arith.cmpi eq, %38, %387 : vector<128x256xi32>
    %cst_131 = arith.constant 0.000000e+00 : f32
    %389 = vector.shape_cast %336 : vector<1x256xf32> to vector<1x256xf32>
    %390 = vector.broadcast %389 : vector<1x256xf32> to vector<128x256xf32>
    %391 = vector.broadcast %cst_131 : f32 to vector<128x256xf32>
    %392 = arith.select %388, %390, %391 : vector<128x256xi1>, vector<128x256xf32>
    %393 = arith.addf %384, %392 : vector<128x256xf32>
    %c0_i32_132 = arith.constant 0 : i32
    %394 = vector.broadcast %c0_i32_132 : i32 to vector<1x256xi32>
    %395 = arith.subi %358, %394 : vector<1x256xi32>
    %396 = vector.broadcast %395 : vector<1x256xi32> to vector<128x256xi32>
    %397 = arith.cmpi eq, %38, %396 : vector<128x256xi32>
    %cst_133 = arith.constant 0.000000e+00 : f32
    %398 = vector.shape_cast %349 : vector<1x256xf32> to vector<1x256xf32>
    %399 = vector.broadcast %398 : vector<1x256xf32> to vector<128x256xf32>
    %400 = vector.broadcast %cst_133 : f32 to vector<128x256xf32>
    %401 = arith.select %397, %399, %400 : vector<128x256xi1>, vector<128x256xf32>
    %402 = arith.addf %393, %401 : vector<128x256xf32>
    %403 = vector.extract_strided_slice %366 {offsets = [0, 0], sizes = [4, 128], strides = [1, 1]} : vector<4x256xf32> to vector<4x128xf32>
    %cst_134 = arith.constant dense<0.000000e+00> : vector<4x256xf32>
    %404 = tpu.matmul %403, %402, %cst_134 {dimension_numbers = #tpu.dot_dimension_numbers<[1], [0], [0], [1], [0, 0, 1, 1], [], []>} : vector<4x128xf32>, vector<128x256xf32>, vector<4x256xf32> -> vector<4x256xf32>
    %405 = arith.addf %367, %404 : vector<4x256xf32>
    %c128_i32_135 = arith.constant 128 : i32
    %406 = vector.broadcast %c128_i32_135 : i32 to vector<1x256xi32>
    %407 = arith.subi %352, %406 : vector<1x256xi32>
    %408 = vector.broadcast %407 : vector<1x256xi32> to vector<128x256xi32>
    %409 = arith.cmpi eq, %38, %408 : vector<128x256xi32>
    %cst_136 = arith.constant 0.000000e+00 : f32
    %410 = vector.shape_cast %310 : vector<1x256xf32> to vector<1x256xf32>
    %411 = vector.broadcast %410 : vector<1x256xf32> to vector<128x256xf32>
    %412 = vector.broadcast %cst_136 : f32 to vector<128x256xf32>
    %413 = arith.select %409, %411, %412 : vector<128x256xi1>, vector<128x256xf32>
    %c128_i32_137 = arith.constant 128 : i32
    %414 = vector.broadcast %c128_i32_137 : i32 to vector<1x256xi32>
    %415 = arith.subi %354, %414 : vector<1x256xi32>
    %416 = vector.broadcast %415 : vector<1x256xi32> to vector<128x256xi32>
    %417 = arith.cmpi eq, %38, %416 : vector<128x256xi32>
    %cst_138 = arith.constant 0.000000e+00 : f32
    %418 = vector.shape_cast %323 : vector<1x256xf32> to vector<1x256xf32>
    %419 = vector.broadcast %418 : vector<1x256xf32> to vector<128x256xf32>
    %420 = vector.broadcast %cst_138 : f32 to vector<128x256xf32>
    %421 = arith.select %417, %419, %420 : vector<128x256xi1>, vector<128x256xf32>
    %422 = arith.addf %413, %421 : vector<128x256xf32>
    %c128_i32_139 = arith.constant 128 : i32
    %423 = vector.broadcast %c128_i32_139 : i32 to vector<1x256xi32>
    %424 = arith.subi %356, %423 : vector<1x256xi32>
    %425 = vector.broadcast %424 : vector<1x256xi32> to vector<128x256xi32>
    %426 = arith.cmpi eq, %38, %425 : vector<128x256xi32>
    %cst_140 = arith.constant 0.000000e+00 : f32
    %427 = vector.shape_cast %336 : vector<1x256xf32> to vector<1x256xf32>
    %428 = vector.broadcast %427 : vector<1x256xf32> to vector<128x256xf32>
    %429 = vector.broadcast %cst_140 : f32 to vector<128x256xf32>
    %430 = arith.select %426, %428, %429 : vector<128x256xi1>, vector<128x256xf32>
    %431 = arith.addf %422, %430 : vector<128x256xf32>
    %c128_i32_141 = arith.constant 128 : i32
    %432 = vector.broadcast %c128_i32_141 : i32 to vector<1x256xi32>
    %433 = arith.subi %358, %432 : vector<1x256xi32>
    %434 = vector.broadcast %433 : vector<1x256xi32> to vector<128x256xi32>
    %435 = arith.cmpi eq, %38, %434 : vector<128x256xi32>
    %cst_142 = arith.constant 0.000000e+00 : f32
    %436 = vector.shape_cast %349 : vector<1x256xf32> to vector<1x256xf32>
    %437 = vector.broadcast %436 : vector<1x256xf32> to vector<128x256xf32>
    %438 = vector.broadcast %cst_142 : f32 to vector<128x256xf32>
    %439 = arith.select %435, %437, %438 : vector<128x256xi1>, vector<128x256xf32>
    %440 = arith.addf %431, %439 : vector<128x256xf32>
    %441 = vector.extract_strided_slice %366 {offsets = [0, 128], sizes = [4, 128], strides = [1, 1]} : vector<4x256xf32> to vector<4x128xf32>
    %cst_143 = arith.constant dense<0.000000e+00> : vector<4x256xf32>
    %442 = tpu.matmul %441, %440, %cst_143 {dimension_numbers = #tpu.dot_dimension_numbers<[1], [0], [0], [1], [0, 0, 1, 1], [], []>} : vector<4x128xf32>, vector<128x256xf32>, vector<4x256xf32> -> vector<4x256xf32>
    %443 = arith.addf %405, %442 : vector<4x256xf32>
    %444 = vector.extract_strided_slice %443 {offsets = [0, 0], sizes = [3, 256], strides = [1, 1]} : vector<4x256xf32> to vector<3x256xf32>
    %445 = vector.extract_strided_slice %443 {offsets = [3, 0], sizes = [1, 256], strides = [1, 1]} : vector<4x256xf32> to vector<1x256xf32>
    %446 = arith.maximumf %361, %445 : vector<1x256xf32>
    %447 = arith.subf %361, %446 : vector<1x256xf32>
    %448 = math.exp %447 : vector<1x256xf32>
    %449 = arith.subf %445, %446 : vector<1x256xf32>
    %450 = math.exp %449 : vector<1x256xf32>
    %451 = arith.addf %448, %450 : vector<1x256xf32>
    %cst_144 = arith.constant 1.000000e+00 : f32
    %452 = vector.broadcast %cst_144 : f32 to vector<1x256xf32>
    %453 = arith.divf %452, %451 : vector<1x256xf32>
    %454 = arith.mulf %448, %453 : vector<1x256xf32>
    %455 = arith.mulf %450, %453 : vector<1x256xf32>
    %456 = vector.broadcast %454 : vector<1x256xf32> to vector<3x256xf32>
    %457 = arith.mulf %360, %456 : vector<3x256xf32>
    %458 = vector.broadcast %455 : vector<1x256xf32> to vector<3x256xf32>
    %459 = arith.mulf %444, %458 : vector<3x256xf32>
    %460 = arith.addf %457, %459 : vector<3x256xf32>
    %c8 = arith.constant 8 : index
    %c0_145 = arith.constant 0 : index
    %461 = vector.load %arg6[%c8, %c0_145] : memref<16x256xf32, #tpu.memory_space<vmem>>, vector<3x256xf32>
    tpu.vector_store %arg6[%c8, %c0_145], %460 {strides = array<i32>} : memref<16x256xf32, #tpu.memory_space<vmem>>, vector<3x256xf32>,
    %c11 = arith.constant 11 : index
    %c0_146 = arith.constant 0 : index
    %462 = vector.load %arg6[%c11, %c0_146] : memref<16x256xf32, #tpu.memory_space<vmem>>, vector<3x256xf32>
    tpu.vector_store %arg6[%c11, %c0_146], %360 {strides = array<i32>} : memref<16x256xf32, #tpu.memory_space<vmem>>, vector<3x256xf32>,
    %c14 = arith.constant 14 : index
    %c0_147 = arith.constant 0 : index
    %463 = vector.load %arg6[%c14, %c0_147] : memref<16x256xf32, #tpu.memory_space<vmem>>, vector<1x256xf32>
    tpu.vector_store %arg6[%c14, %c0_147], %454 {strides = array<i32>} : memref<16x256xf32, #tpu.memory_space<vmem>>, vector<1x256xf32>,
    %c15 = arith.constant 15 : index
    %c0_148 = arith.constant 0 : index
    %464 = vector.load %arg6[%c15, %c0_148] : memref<16x256xf32, #tpu.memory_space<vmem>>, vector<1x256xf32>
    tpu.vector_store %arg6[%c15, %c0_148], %455 {strides = array<i32>} : memref<16x256xf32, #tpu.memory_space<vmem>>, vector<1x256xf32>,
    %c8_149 = arith.constant 8 : index
    %c0_150 = arith.constant 0 : index
    %465 = vector.load %arg7[%c8_149, %c0_150] : memref<16x256xf32, #tpu.memory_space<vmem>>, vector<3x256xf32>
    tpu.vector_store %arg7[%c8_149, %c0_150], %444 {strides = array<i32>} : memref<16x256xf32, #tpu.memory_space<vmem>>, vector<3x256xf32>,
    %466 = vector.extract_strided_slice %366 {offsets = [0, 0], sizes = [3, 256], strides = [1, 1]} : vector<4x256xf32> to vector<3x256xf32>
    %c11_151 = arith.constant 11 : index
    %c0_152 = arith.constant 0 : index
    %467 = vector.load %arg7[%c11_151, %c0_152] : memref<16x256xf32, #tpu.memory_space<vmem>>, vector<3x256xf32>
    tpu.vector_store %arg7[%c11_151, %c0_152], %466 {strides = array<i32>} : memref<16x256xf32, #tpu.memory_space<vmem>>, vector<3x256xf32>,
    %c14_153 = arith.constant 14 : index
    %c0_154 = arith.constant 0 : index
    %468 = vector.load %arg7[%c14_153, %c0_154] : memref<16x256xf32, #tpu.memory_space<vmem>>, vector<1x256xf32>
    tpu.vector_store %arg7[%c14_153, %c0_154], %261 {strides = array<i32>} : memref<16x256xf32, #tpu.memory_space<vmem>>, vector<1x256xf32>,
    %c15_155 = arith.constant 15 : index
    %c0_156 = arith.constant 0 : index
    %469 = vector.load %arg7[%c15_155, %c0_156] : memref<16x256xf32, #tpu.memory_space<vmem>>, vector<1x256xf32>
    tpu.vector_store %arg7[%c15_155, %c0_156], %263 {strides = array<i32>} : memref<16x256xf32, #tpu.memory_space<vmem>>, vector<1x256xf32>,
    return
  }
  func.func @transform_0(%arg0: i32) -> (i32, i32) {
    %c0_i32 = arith.constant 0 : i32
    %c0_i32_0 = arith.constant 0 : i32
    %c0_i32_1 = arith.constant 0 : i32
    return %c0_i32, %c0_i32_0 : i32, i32
  }
  func.func @transform_1(%arg0: i32) -> (i32, i32) {
    %c0_i32 = arith.constant 0 : i32
    %c0_i32_0 = arith.constant 0 : i32
    %c0_i32_1 = arith.constant 0 : i32
    return %c0_i32, %c0_i32_0 : i32, i32
  }
  func.func @transform_2(%arg0: i32) -> (i32, i32) {
    %c0_i32 = arith.constant 0 : i32
    %c0_i32_0 = arith.constant 0 : i32
    %c0_i32_1 = arith.constant 0 : i32
    return %c0_i32, %c0_i32_0 : i32, i32
  }
  func.func @transform_3(%arg0: i32) -> (i32, i32) {
    %c0_i32 = arith.constant 0 : i32
    %c0_i32_0 = arith.constant 0 : i32
    %c0_i32_1 = arith.constant 0 : i32
    return %c0_i32, %c0_i32_0 : i32, i32
  }
  func.func @transform_4(%arg0: i32) -> (i32, i32) {
    %c0_i32 = arith.constant 0 : i32
    %c0_i32_0 = arith.constant 0 : i32
    %c0_i32_1 = arith.constant 0 : i32
    return %c0_i32, %c0_i32_0 : i32, i32
  }
  func.func @transform_5(%arg0: i32) -> (i32, i32) {
    %c0_i32 = arith.constant 0 : i32
    %c0_i32_0 = arith.constant 0 : i32
    %c0_i32_1 = arith.constant 0 : i32
    return %c0_i32, %c0_i32_0 : i32, i32
  }
  func.func @transform_6(%arg0: i32) -> (i32, i32) {
    %c0_i32 = arith.constant 0 : i32
    %c0_i32_0 = arith.constant 0 : i32
    %c0_i32_1 = arith.constant 0 : i32
    return %c0_i32, %c0_i32_0 : i32, i32
  }
  func.func @transform_7(%arg0: i32) -> (i32, i32) {
    %c0_i32 = arith.constant 0 : i32
    %c0_i32_0 = arith.constant 0 : i32
    %c0_i32_1 = arith.constant 0 : i32
    return %c0_i32, %c0_i32_0 : i32, i32
  }
}

</mosaic_0001>

<llo_original>
// kernel: eabp_forward.1
$region0: #{eabp_forward.1}
  #allocation0 [shape = 'u32[]', space=smem, size = 0x4, offset = 0x4, fixed_abs, tag = 'smem constant byte address 0x4 - core index']
  #allocation1 [shape = 'u32[72,128]{1,0:T(1,128)}', space=vmem, size = 0x9000, scoped, tag = 'internal scratch']
  %s0 = inlined_call_operand.vmem [shape: f32[2,33], index: 0, kind: input, shape index: {}]
  %s1 = inlined_call_operand.vmem [shape: f32[16,104], index: 1, kind: input, shape index: {}]
  %s2 = inlined_call_operand.hbm [shape: f32[33,640], index: 2, kind: input, shape index: {}]
  %s3 = inlined_call_operand.vmem [shape: f32[104,256], index: 3, kind: input, shape index: {}]
  %s4 = inlined_call_operand.hbm [shape: f32[32,512], index: 4, kind: input, shape index: {}]
  %s5 = inlined_call_operand.vmem [shape: f32[16,256], index: 5, kind: output, shape index: {0}]
  %s6 = inlined_call_operand.vmem [shape: f32[16,256], index: 6, kind: output, shape index: {1}]
  %s7 = inlined_call_operand.vmem [shape: f32[2,128], index: 7, kind: output, shape index: {2}]
  %8 = xla_tuple %s5, %s6, %s7
  %s9 = sld [smem:[#allocation0]]
  $region54: #{eabp_forward.1} parent=0
    _
  %s11 = ssub.s32 1, %s9
  %s12 = scalar_select 0, %s11, %s9
  $region1: #{eabp_forward.1} parent=0
    #allocation2 [shape = 'u8[102400]{0}', space=vmem, size = 0x19000, scoped, tag = 'input window, operand 2, single buffered']
    #allocation3 [shape = 's32[1]{0}', space=sflag, size = 0x4, scoped, tag = 'scoped memory for eabp_forward.1']
    #allocation4 [shape = 'u8[65536]{0}', space=vmem, size = 0x10000, scoped, tag = 'input window, operand 4, single buffered']
    #allocation5 [shape = 's32[1]{0}', space=sflag, size = 0x4, scoped, tag = 'scoped memory for eabp_forward.1']
    %13 = vsyncpa [#allocation3], 0
    %14 = vsyncpa [#allocation5], 0
    // Predicated region
    $region2: #{eabp_forward.1} parent=1 // pred_check
      _
    $region3: #{eabp_forward.1} parent=1 // pred_check_branch
      %16 = sbr.rel (0) target = $region5
    $region4: #{eabp_forward.1} parent=1 // pred_region
      _
    $region5: #{eabp_forward.1} parent=1 // pred_fallthru
      _
    // Predicated region
    $region6: #{eabp_forward.1} parent=1 // pred_check
      _
    $region7: #{eabp_forward.1} parent=1 // pred_check_branch
      %18 = sbr.rel (0) target = $region9
    $region8: #{eabp_forward.1} parent=1 // pred_region
      _
    $region9: #{eabp_forward.1} parent=1 // pred_fallthru
      _
    // Predicated region
    $region10: #{eabp_forward.1} parent=1 // pred_check
      _
    $region11: #{eabp_forward.1} parent=1 // pred_check_branch
      %20 = sbr.rel (0) target = $region13
    $region12: #{eabp_forward.1} parent=1 // pred_region
      %22 = vsyncadd [#allocation3], 0
      %s23 = sshll.u32 %s2, 4
      %s24 = int_to_ptr.hbm [resolvable:$true] %s23
      %s25 = sshll.u32 [#allocation2], 4
      %s26 = int_to_ptr.vmem [resolvable:$true] %s25
      %31 = dma.hbm_to_vmem [thread:$0]  %s24, 3200, %s26, [#allocation3], 640, 640, 40
    $region13: #{eabp_forward.1} parent=1 // pred_fallthru
      _
    // Predicated region
    $region14: #{eabp_forward.1} parent=1 // pred_check
      _
    $region15: #{eabp_forward.1} parent=1 // pred_check_branch
      %33 = sbr.rel (0) target = $region17
    $region16: #{eabp_forward.1} parent=1 // pred_region
      _
    $region17: #{eabp_forward.1} parent=1 // pred_fallthru
      _
    // Predicated region
    $region18: #{eabp_forward.1} parent=1 // pred_check
      _
    $region19: #{eabp_forward.1} parent=1 // pred_check_branch
      %35 = sbr.rel (0) target = $region21
    $region20: #{eabp_forward.1} parent=1 // pred_region
      %37 = vsyncadd [#allocation5], 0
      %s38 = sshll.u32 %s4, 4
      %s39 = int_to_ptr.hbm [resolvable:$true] %s38
      %s40 = sshll.u32 [#allocation4], 4
      %s41 = int_to_ptr.vmem [resolvable:$true] %s40
      %46 = dma.hbm_to_vmem [thread:$0]  %s39, 2048, %s41, [#allocation5], 512, 512, 32
    $region21: #{eabp_forward.1} parent=1 // pred_fallthru
      _
    // Predicated region
    $region22: #{eabp_forward.1} parent=1 // pred_check
      _
    $region23: #{eabp_forward.1} parent=1 // pred_check_branch
      %48 = sbr.rel (0) target = $region25
    $region24: #{eabp_forward.1} parent=1 // pred_region
      %50 = dma.done [#allocation3], 3200
    $region25: #{eabp_forward.1} parent=1 // pred_fallthru
      _
    // Predicated region
    $region26: #{eabp_forward.1} parent=1 // pred_check
      _
    $region27: #{eabp_forward.1} parent=1 // pred_check_branch
      %52 = sbr.rel (0) target = $region29
    $region28: #{eabp_forward.1} parent=1 // pred_region
      %54 = dma.done [#allocation5], 2048
    $region29: #{eabp_forward.1} parent=1 // pred_fallthru
      _
    %v55 = vld [vmem:[%s0] sm:$0x3]
    %v56 = vld [vmem:[#allocation2] sm:$0xff]
    %v57 = vld [vmem:[#allocation2 + $0x8] sm:$0xff]
    %v58 = vld [vmem:[#allocation2 + $0x10] sm:$0xff]
    %v59 = vld [vmem:[#allocation2 + $0x18] sm:$0xff]
    %v60 = vld [vmem:[#allocation2 + $0x20] sm:$0xff]
    %v61 = vld [vmem:[#allocation2 + $0x28] sm:$0xff]
    %v62 = vld [vmem:[#allocation2 + $0x30] sm:$0xff]
    %v63 = vld [vmem:[#allocation2 + $0x38] sm:$0xff]
    %v64 = vld [vmem:[#allocation2 + $0x40] sm:$0xff]
    %v65 = vld [vmem:[#allocation2 + $0x48] sm:$0xff]
    %v66 = vld [vmem:[#allocation2 + $0x50] sm:$0xff]
    %v67 = vld [vmem:[#allocation2 + $0x58] sm:$0xff]
    %v68 = vld [vmem:[#allocation2 + $0x60] sm:$0xff]
    %v69 = vld [vmem:[#allocation2 + $0x68] sm:$0xff]
    %v70 = vld [vmem:[#allocation2 + $0x70] sm:$0xff]
    %v71 = vld [vmem:[#allocation2 + $0x78] sm:$0xff]
    %v72 = vld [vmem:[#allocation2 + $0x80] sm:$0xff]
    %v73 = vld [vmem:[#allocation2 + $0x88] sm:$0xff]
    %v74 = vld [vmem:[#allocation2 + $0x90] sm:$0xff]
    %v75 = vld [vmem:[#allocation2 + $0x98] sm:$0xff]
    %v76 = vld [vmem:[#allocation2 + $0xa0] sm:$0x1]
    %v77 = vld [vmem:[#allocation2 + $0xa8] sm:$0x1]
    %v78 = vld [vmem:[#allocation2 + $0xb0] sm:$0x1]
    %v79 = vld [vmem:[#allocation2 + $0xb8] sm:$0x1]
    %v80 = vld [vmem:[#allocation2 + $0xc0] sm:$0x1]
    %vm81 = vcmask 269312
    %v83 = vsel %vm81, %v55, 0
    %vm85 = vcmask 1040384
    %v87 = vsel %vm85, %v76, 0
    %v90 = vsel %vm85, %v77, 0
    %v93 = vsel %vm85, %v78, 0
    %v96 = vsel %vm85, %v79, 0
    %v99 = vsel %vm85, %v80, 0
    %101 = vmatpush.msra.mxu0 0.0
    %102 = vmatpush.msra.mxu0 0.0
    %103 = vmatpush.msra.mxu0 0.0
    %104 = vmatpush.msra.mxu0 0.0
    %105 = vmatpush.msra.mxu0 0.0
    %106 = vmatpush.msra.mxu0 0.0
    %107 = vmatpush.msra.mxu0 0.0
    %108 = vmatpush.msra.mxu0 0.0
    %109 = vmatpush.msra.mxu0 0.0
    %110 = vmatpush.msra.mxu0 0.0
    %111 = vmatpush.msra.mxu0 0.0
    %112 = vmatpush.msra.mxu0 %v87
    %113 = vmatpush.msra.mxu0 %v71
    %114 = vmatpush.msra.mxu0 %v66
    %115 = vmatpush.msra.mxu0 %v61
    %116 = vmatpush.msra.mxu0 %v56
    %117 = vmatmul.f32.gmra.mxu0 %v83
    %v118 = vpop.f32.mrf.mxu0
    %v119 = vadd.f32 0.0, %v118
    %120 = vdwg.mxu0
    %121 = vmatpush.msra.mxu0 0.0
    %122 = vmatpush.msra.mxu0 0.0
    %123 = vmatpush.msra.mxu0 0.0
    %124 = vmatpush.msra.mxu0 0.0
    %125 = vmatpush.msra.mxu0 0.0
    %126 = vmatpush.msra.mxu0 0.0
    %127 = vmatpush.msra.mxu0 0.0
    %128 = vmatpush.msra.mxu0 0.0
    %129 = vmatpush.msra.mxu0 0.0
    %130 = vmatpush.msra.mxu0 0.0
    %131 = vmatpush.msra.mxu0 0.0
    %132 = vmatpush.msra.mxu0 %v90
    %133 = vmatpush.msra.mxu0 %v72
    %134 = vmatpush.msra.mxu0 %v67
    %135 = vmatpush.msra.mxu0 %v62
    %136 = vmatpush.msra.mxu0 %v57
    %137 = vmatmul.f32.gmra.mxu0 %v83
    %v138 = vpop.f32.mrf.mxu0
    %v139 = vadd.f32 0.0, %v138
    %140 = vdwg.mxu0
    %141 = vmatpush.msra.mxu0 0.0
    %142 = vmatpush.msra.mxu0 0.0
    %143 = vmatpush.msra.mxu0 0.0
    %144 = vmatpush.msra.mxu0 0.0
    %145 = vmatpush.msra.mxu0 0.0
    %146 = vmatpush.msra.mxu0 0.0
    %147 = vmatpush.msra.mxu0 0.0
    %148 = vmatpush.msra.mxu0 0.0
    %149 = vmatpush.msra.mxu0 0.0
    %150 = vmatpush.msra.mxu0 0.0
    %151 = vmatpush.msra.mxu0 0.0
    %152 = vmatpush.msra.mxu0 %v93
    %153 = vmatpush.msra.mxu0 %v73
    %154 = vmatpush.msra.mxu0 %v68
    %155 = vmatpush.msra.mxu0 %v63
    %156 = vmatpush.msra.mxu0 %v58
    %157 = vmatmul.f32.gmra.mxu0 %v83
    %v158 = vpop.f32.mrf.mxu0
    %v159 = vadd.f32 0.0, %v158
    %160 = vdwg.mxu0
    %161 = vmatpush.msra.mxu0 0.0
    %162 = vmatpush.msra.mxu0 0.0
    %163 = vmatpush.msra.mxu0 0.0
    %164 = vmatpush.msra.mxu0 0.0
    %165 = vmatpush.msra.mxu0 0.0
    %166 = vmatpush.msra.mxu0 0.0
    %167 = vmatpush.msra.mxu0 0.0
    %168 = vmatpush.msra.mxu0 0.0
    %169 = vmatpush.msra.mxu0 0.0
    %170 = vmatpush.msra.mxu0 0.0
    %171 = vmatpush.msra.mxu0 0.0
    %172 = vmatpush.msra.mxu0 %v96
    %173 = vmatpush.msra.mxu0 %v74
    %174 = vmatpush.msra.mxu0 %v69
    %175 = vmatpush.msra.mxu0 %v64
    %176 = vmatpush.msra.mxu0 %v59
    %177 = vmatmul.f32.gmra.mxu0 %v83
    %v178 = vpop.f32.mrf.mxu0
    %v179 = vadd.f32 0.0, %v178
    %180 = vdwg.mxu0
    %181 = vmatpush.msra.mxu0 0.0
    %182 = vmatpush.msra.mxu0 0.0
    %183 = vmatpush.msra.mxu0 0.0
    %184 = vmatpush.msra.mxu0 0.0
    %185 = vmatpush.msra.mxu0 0.0
    %186 = vmatpush.msra.mxu0 0.0
    %187 = vmatpush.msra.mxu0 0.0
    %188 = vmatpush.msra.mxu0 0.0
    %189 = vmatpush.msra.mxu0 0.0
    %190 = vmatpush.msra.mxu0 0.0
    %191 = vmatpush.msra.mxu0 0.0
    %192 = vmatpush.msra.mxu0 %v99
    %193 = vmatpush.msra.mxu0 %v75
    %194 = vmatpush.msra.mxu0 %v70
    %195 = vmatpush.msra.mxu0 %v65
    %196 = vmatpush.msra.mxu0 %v60
    %197 = vmatmul.f32.gmra.mxu0 %v83
    %v198 = vpop.f32.mrf.mxu0
    %v199 = vadd.f32 0.0, %v198
    %200 = vdwg.mxu0
    %v201 = vld [vmem:[%s1] sm:$0xff]
    %v202 = vld [vmem:[%s1 + $0x8] sm:$0xff]
    %v203 = vld [vmem:[%s3] sm:$0xff]
    %v204 = vld [vmem:[%s3 + $0x8] sm:$0xff]
    %v205 = vld [vmem:[%s3 + $0x10] sm:$0xff]
    %v206 = vld [vmem:[%s3 + $0x18] sm:$0xff]
    %v207 = vld [vmem:[%s3 + $0x20] sm:$0xff]
    %v208 = vld [vmem:[%s3 + $0x28] sm:$0xff]
    %v209 = vld [vmem:[%s3 + $0x30] sm:$0xff]
    %v210 = vld [vmem:[%s3 + $0x38] sm:$0xff]
    %v211 = vld [vmem:[%s3 + $0x40] sm:$0xff]
    %v212 = vld [vmem:[%s3 + $0x48] sm:$0xff]
    %v213 = vld [vmem:[%s3 + $0x50] sm:$0xff]
    %v214 = vld [vmem:[%s3 + $0x58] sm:$0xff]
    %v215 = vld [vmem:[%s3 + $0x60] sm:$0xff]
    %v216 = vld [vmem:[%s3 + $0x68] sm:$0xff]
    %v217 = vld [vmem:[%s3 + $0x70] sm:$0xff]
    %v218 = vld [vmem:[%s3 + $0x78] sm:$0xff]
    %v219 = vld [vmem:[%s3 + $0x80] sm:$0xff]
    %v220 = vld [vmem:[%s3 + $0x88] sm:$0xff]
    %v221 = vld [vmem:[%s3 + $0x90] sm:$0xff]
    %v222 = vld [vmem:[%s3 + $0x98] sm:$0xff]
    %v223 = vld [vmem:[%s3 + $0xa0] sm:$0xff]
    %v224 = vld [vmem:[%s3 + $0xa8] sm:$0xff]
    %v225 = vld [vmem:[%s3 + $0xb0] sm:$0xff]
    %v226 = vld [vmem:[%s3 + $0xb8] sm:$0xff]
    %v227 = vld [vmem:[%s3 + $0xc0] sm:$0xff]
    %v228 = vld [vmem:[%s3 + $0xc8] sm:$0xff]
    %vm229 = vcmask 850944
    %v231 = vsel %vm229, %v201, 0
    %v234 = vsel %vm229, %v202, 0
    %236 = vmatpush.msra.mxu0 0.0
    %237 = vmatpush.msra.mxu0 0.0
    %238 = vmatpush.msra.mxu0 0.0
    %239 = vmatpush.msra.mxu0 %v227
    %240 = vmatpush.msra.mxu0 %v225
    %241 = vmatpush.msra.mxu0 %v223
    %242 = vmatpush.msra.mxu0 %v221
    %243 = vmatpush.msra.mxu0 %v219
    %244 = vmatpush.msra.mxu0 %v217
    %245 = vmatpush.msra.mxu0 %v215
    %246 = vmatpush.msra.mxu0 %v213
    %247 = vmatpush.msra.mxu0 %v211
    %248 = vmatpush.msra.mxu0 %v209
    %249 = vmatpush.msra.mxu0 %v207
    %250 = vmatpush.msra.mxu0 %v205
    %251 = vmatpush.msra.mxu0 %v203
    %252 = vmatmul.f32.gmra.mxu0 %v231
    %v253 = vpop.f32.mrf.mxu0
    %v254 = vadd.f32 0.0, %v253
    %255 = vmatmul.f32.gmra.mxu0 %v234
    %v256 = vpop.f32.mrf.mxu0
    %v257 = vadd.f32 0.0, %v256
    %258 = vdwg.mxu0
    %259 = vmatpush.msra.mxu0 0.0
    %260 = vmatpush.msra.mxu0 0.0
    %261 = vmatpush.msra.mxu0 0.0
    %262 = vmatpush.msra.mxu0 %v228
    %263 = vmatpush.msra.mxu0 %v226
    %264 = vmatpush.msra.mxu0 %v224
    %265 = vmatpush.msra.mxu0 %v222
    %266 = vmatpush.msra.mxu0 %v220
    %267 = vmatpush.msra.mxu0 %v218
    %268 = vmatpush.msra.mxu0 %v216
    %269 = vmatpush.msra.mxu0 %v214
    %270 = vmatpush.msra.mxu0 %v212
    %271 = vmatpush.msra.mxu0 %v210
    %272 = vmatpush.msra.mxu0 %v208
    %273 = vmatpush.msra.mxu0 %v206
    %274 = vmatpush.msra.mxu0 %v204
    %275 = vmatmul.f32.gmra.mxu0 %v231
    %v276 = vpop.f32.mrf.mxu0
    %v277 = vadd.f32 0.0, %v276
    %278 = vmatmul.f32.gmra.mxu0 %v234
    %v279 = vpop.f32.mrf.mxu0
    %v280 = vadd.f32 0.0, %v279
    %281 = vdwg.mxu0
    %282 = vst [vmem:[%s7] sm:$0x3] %v119
    %v283 = vmax.f32 %v119, 0.0
    %v284 = vld [vmem:[#allocation4] sm:$0xff]
    %v285 = vld [vmem:[#allocation4 + $0x8] sm:$0xff]
    %v286 = vld [vmem:[#allocation4 + $0x10] sm:$0xff]
    %v287 = vld [vmem:[#allocation4 + $0x18] sm:$0xff]
    %v288 = vld [vmem:[#allocation4 + $0x20] sm:$0xff]
    %v289 = vld [vmem:[#allocation4 + $0x28] sm:$0xff]
    %v290 = vld [vmem:[#allocation4 + $0x30] sm:$0xff]
    %v291 = vld [vmem:[#allocation4 + $0x38] sm:$0xff]
    %v292 = vld [vmem:[#allocation4 + $0x40] sm:$0xff]
    %v293 = vld [vmem:[#allocation4 + $0x48] sm:$0xff]
    %v294 = vld [vmem:[#allocation4 + $0x50] sm:$0xff]
    %v295 = vld [vmem:[#allocation4 + $0x58] sm:$0xff]
    %v296 = vld [vmem:[#allocation4 + $0x60] sm:$0xff]
    %v297 = vld [vmem:[#allocation4 + $0x68] sm:$0xff]
    %v298 = vld [vmem:[#allocation4 + $0x70] sm:$0xff]
    %v299 = vld [vmem:[#allocation4 + $0x78] sm:$0xff]
    %vm300 = vcmask 261120
    %v302 = vsel %vm300, %v283, 0
    %304 = vmatpush.msra.mxu0 0.0
    %305 = vmatpush.msra.mxu0 0.0
    %306 = vmatpush.msra.mxu0 0.0
    %307 = vmatpush.msra.mxu0 0.0
    %308 = vmatpush.msra.mxu0 0.0
    %309 = vmatpush.msra.mxu0 0.0
    %310 = vmatpush.msra.mxu0 0.0
    %311 = vmatpush.msra.mxu0 0.0
    %312 = vmatpush.msra.mxu0 0.0
    %313 = vmatpush.msra.mxu0 0.0
    %314 = vmatpush.msra.mxu0 0.0
    %315 = vmatpush.msra.mxu0 0.0
    %316 = vmatpush.msra.mxu0 %v296
    %317 = vmatpush.msra.mxu0 %v292
    %318 = vmatpush.msra.mxu0 %v288
    %319 = vmatpush.msra.mxu0 %v284
    %320 = vmatmul.f32.gmra.mxu0 %v302
    %v321 = vpop.f32.mrf.mxu0
    %v322 = vadd.f32 0.0, %v321
    %323 = vdwg.mxu0
    %324 = vmatpush.msra.mxu0 0.0
    %325 = vmatpush.msra.mxu0 0.0
    %326 = vmatpush.msra.mxu0 0.0
    %327 = vmatpush.msra.mxu0 0.0
    %328 = vmatpush.msra.mxu0 0.0
    %329 = vmatpush.msra.mxu0 0.0
    %330 = vmatpush.msra.mxu0 0.0
    %331 = vmatpush.msra.mxu0 0.0
    %332 = vmatpush.msra.mxu0 0.0
    %333 = vmatpush.msra.mxu0 0.0
    %334 = vmatpush.msra.mxu0 0.0
    %335 = vmatpush.msra.mxu0 0.0
    %336 = vmatpush.msra.mxu0 %v297
    %337 = vmatpush.msra.mxu0 %v293
    %338 = vmatpush.msra.mxu0 %v289
    %339 = vmatpush.msra.mxu0 %v285
    %340 = vmatmul.f32.gmra.mxu0 %v302
    %v341 = vpop.f32.mrf.mxu0
    %v342 = vadd.f32 0.0, %v341
    %343 = vdwg.mxu0
    %344 = vmatpush.msra.mxu0 0.0
    %345 = vmatpush.msra.mxu0 0.0
    %346 = vmatpush.msra.mxu0 0.0
    %347 = vmatpush.msra.mxu0 0.0
    %348 = vmatpush.msra.mxu0 0.0
    %349 = vmatpush.msra.mxu0 0.0
    %350 = vmatpush.msra.mxu0 0.0
    %351 = vmatpush.msra.mxu0 0.0
    %352 = vmatpush.msra.mxu0 0.0
    %353 = vmatpush.msra.mxu0 0.0
    %354 = vmatpush.msra.mxu0 0.0
    %355 = vmatpush.msra.mxu0 0.0
    %356 = vmatpush.msra.mxu0 %v298
    %357 = vmatpush.msra.mxu0 %v294
    %358 = vmatpush.msra.mxu0 %v290
    %359 = vmatpush.msra.mxu0 %v286
    %360 = vmatmul.f32.gmra.mxu0 %v302
    %v361 = vpop.f32.mrf.mxu0
    %v362 = vadd.f32 0.0, %v361
    %363 = vdwg.mxu0
    %364 = vmatpush.msra.mxu0 0.0
    %365 = vmatpush.msra.mxu0 0.0
    %366 = vmatpush.msra.mxu0 0.0
    %367 = vmatpush.msra.mxu0 0.0
    %368 = vmatpush.msra.mxu0 0.0
    %369 = vmatpush.msra.mxu0 0.0
    %370 = vmatpush.msra.mxu0 0.0
    %371 = vmatpush.msra.mxu0 0.0
    %372 = vmatpush.msra.mxu0 0.0
    %373 = vmatpush.msra.mxu0 0.0
    %374 = vmatpush.msra.mxu0 0.0
    %375 = vmatpush.msra.mxu0 0.0
    %376 = vmatpush.msra.mxu0 %v299
    %377 = vmatpush.msra.mxu0 %v295
    %378 = vmatpush.msra.mxu0 %v291
    %379 = vmatpush.msra.mxu0 %v287
    %380 = vmatmul.f32.gmra.mxu0 %v302
    %v381 = vpop.f32.mrf.mxu0
    %v382 = vadd.f32 0.0, %v381
    %383 = vdwg.mxu0
    %v384 = vadd.f32 %v139, %v322
    %v385 = vadd.f32 %v159, %v342
    %v386 = vadd.f32 %v179, %v362
    %v387 = vadd.f32 %v199, %v382
    %v388 = vlaneseq
    %v389 = vand.u32 %v388, 127
    %v390 = vadd.s32 %v389, 128
    %v391 = vand.u32 %v389, 15
    %v392 = vand.u32 %v390, 15
    %v393 = vcvt.s32.f32 %v391
    %v394 = vcvt.s32.f32 %v392
    %v395 = vmul.f32 %v393, 2.0
    %v396 = vmul.f32 %v394, 2.0
    %v397 = vadd.f32 %v395, 1.0
    %v398 = vadd.f32 %v396, 1.0
    %v399 = vrcp.pop 16.0
    %v400 = vmul.f32 16.0, %v399
    %v401 = vsub.f32 1.0, %v400
    %v402 = vmul.f32 %v399, %v401
    %v403 = vadd.f32 %v399, %v402
    %vm404 = vweird.f32 %v399
    %v405 = vsel %vm404, %v399, %v403
    %v406 = vmul.f32 %v397, %v405
    %v407 = vmul.f32 %v398, %v405
    %v408 = vsub.f32 %v406, 1.0
    %v409 = vsub.f32 %v407, 1.0
    %v410 = vshra.s32 %v389, 4
    %v411 = vshra.s32 %v390, 4
    %v412 = vcvt.s32.f32 %v410
    %v413 = vcvt.s32.f32 %v411
    %v414 = vmul.f32 %v412, 2.0
    %v415 = vmul.f32 %v413, 2.0
    %v416 = vadd.f32 %v414, 1.0
    %v417 = vadd.f32 %v415, 1.0
    %v418 = vmul.f32 %v416, %v405
    %v419 = vmul.f32 %v417, %v405
    %v420 = vsub.f32 %v418, 1.0
    %v421 = vsub.f32 %v419, 1.0
    %v422 = vlaneseq
    %v423 = vshrl.u32 %v422, 7
    %v424 = vadd.s32 %v423, 8
    %v425 = vadd.s32 %v423, 16
    %v426 = vadd.s32 %v423, 24
    %v427 = vadd.s32 %v423, 32
    %v428 = vadd.s32 %v423, 40
    %v429 = vadd.s32 %v423, 48
    %v430 = vadd.s32 %v423, 56
    %v431 = vadd.s32 %v423, 64
    %v432 = vadd.s32 %v423, 72
    %v433 = vadd.s32 %v423, 80
    %v434 = vadd.s32 %v423, 88
    %v435 = vadd.s32 %v423, 96
    %v436 = vadd.s32 %v423, 104
    %v437 = vadd.s32 %v423, 112
    %v438 = vadd.s32 %v423, 120
    %vm439 = vcmp.lt.s32.totalorder %v423, 3
    %v440 = vtanh.pop %v384
    %v441 = vtanh.pop %v385
    %v442 = vtanh.pop %v386
    %v443 = vtanh.pop %v387
    %v444 = vmul.f32 %v440, 0.1
    %v445 = vmul.f32 %v441, 0.1
    %v446 = vmul.f32 %v442, 0.1
    %v447 = vmul.f32 %v443, 0.1
    %v448 = vadd.f32 %v408, %v444
    %v449 = vadd.f32 %v409, %v445
    %v450 = vadd.f32 %v420, %v446
    %v451 = vadd.f32 %v421, %v447
    %v452 = vadd.f32 %v448, 1.0
    %v453 = vadd.f32 %v449, 1.0
    %v454 = vmul.f32 %v452, 8.0
    %v455 = vmul.f32 %v453, 8.0
    %v456 = vsub.f32 %v454, 0.5
    %v457 = vsub.f32 %v455, 0.5
    %v458 = vadd.f32 %v450, 1.0
    %v459 = vadd.f32 %v451, 1.0
    %v460 = vmul.f32 %v458, 8.0
    %v461 = vmul.f32 %v459, 8.0
    %v462 = vsub.f32 %v460, 0.5
    %v463 = vsub.f32 %v461, 0.5
    %v464 = vfloor.f32 %v456
    %v465 = vfloor.f32 %v457
    %v466 = vfloor.f32 %v462
    %v467 = vfloor.f32 %v463
    %v468 = vsub.f32 %v456, %v464
    %v469 = vsub.f32 %v457, %v465
    %v470 = vsub.f32 %v462, %v466
    %v471 = vsub.f32 %v463, %v467
    %v472 = vcvt.f32.s32.to.zero.pseudo %v464
    %v473 = vcvt.f32.s32.to.zero.pseudo %v465
    %v474 = vcvt.f32.s32.to.zero.pseudo %v466
    %v475 = vcvt.f32.s32.to.zero.pseudo %v467
    %v476 = vadd.s32 %v472, 1
    %v477 = vadd.s32 %v473, 1
    %v478 = vadd.s32 %v474, 1
    %v479 = vadd.s32 %v475, 1
    %v480 = vsub.f32 1.0, %v468
    %v481 = vsub.f32 1.0, %v469
    %v482 = vsub.f32 1.0, %v470
    %v483 = vsub.f32 1.0, %v471
    %v484 = vmul.f32 %v480, %v482
    %v485 = vmul.f32 %v481, %v483
    %v486 = vmul.f32 %v468, %v482
    %v487 = vmul.f32 %v469, %v483
    %v488 = vmul.f32 %v480, %v470
    %v489 = vmul.f32 %v481, %v471
    %v490 = vmul.f32 %v468, %v470
    %v491 = vmul.f32 %v469, %v471
    %vm492 = vcmp.ge.s32.totalorder %v472, 0
    %vm493 = vcmp.ge.s32.totalorder %v473, 0
    %vm494 = vcmp.lt.s32.totalorder %v472, 16
    %vm495 = vcmp.lt.s32.totalorder %v473, 16
    %vm496 = vmand %vm492, %vm494
    %vm497 = vmand %vm493, %vm495
    %vm498 = vcmp.ge.s32.totalorder %v474, 0
    %vm499 = vcmp.ge.s32.totalorder %v475, 0
    %vm500 = vmand %vm496, %vm498
    %vm501 = vmand %vm497, %vm499
    %vm502 = vcmp.lt.s32.totalorder %v474, 16
    %vm503 = vcmp.lt.s32.totalorder %v475, 16
    %vm504 = vmand %vm500, %vm502
    %vm505 = vmand %vm501, %vm503
    %v506 = vsel %vm504, %v484, 0.0
    %v507 = vsel %vm505, %v485, 0.0
    %vm508 = vcmp.ge.s32.totalorder %v476, 0
    %vm509 = vcmp.ge.s32.totalorder %v477, 0
    %vm510 = vcmp.lt.s32.totalorder %v476, 16
    %vm511 = vcmp.lt.s32.totalorder %v477, 16
    %vm512 = vmand %vm508, %vm510
    %vm513 = vmand %vm509, %vm511
    %vm514 = vmand %vm512, %vm498
    %vm515 = vmand %vm513, %vm499
    %vm516 = vmand %vm514, %vm502
    %vm517 = vmand %vm515, %vm503
    %v518 = vsel %vm516, %v486, 0.0
    %v519 = vsel %vm517, %v487, 0.0
    %vm520 = vcmp.ge.s32.totalorder %v478, 0
    %vm521 = vcmp.ge.s32.totalorder %v479, 0
    %vm522 = vmand %vm496, %vm520
    %vm523 = vmand %vm497, %vm521
    %vm524 = vcmp.lt.s32.totalorder %v478, 16
    %vm525 = vcmp.lt.s32.totalorder %v479, 16
    %vm526 = vmand %vm522, %vm524
    %vm527 = vmand %vm523, %vm525
    %v528 = vsel %vm526, %v488, 0.0
    %v529 = vsel %vm527, %v489, 0.0
    %vm530 = vmand %vm512, %vm520
    %vm531 = vmand %vm513, %vm521
    %vm532 = vmand %vm530, %vm524
    %vm533 = vmand %vm531, %vm525
    %v534 = vsel %vm532, %v490, 0.0
    %v535 = vsel %vm533, %v491, 0.0
    %v536 = vmul.u32 %v474, 16
    %v537 = vmul.u32 %v475, 16
    %v538 = vadd.s32 %v536, %v472
    %v539 = vadd.s32 %v537, %v473
    %v540 = vadd.s32 %v538, 1
    %v541 = vadd.s32 %v539, 1
    %v542 = vadd.s32 %v538, 16
    %v543 = vadd.s32 %v539, 16
    %v544 = vadd.s32 %v542, 1
    %v545 = vadd.s32 %v543, 1
    %v546 = vtanh.pop %v254
    %v547 = vtanh.pop %v277
    %v548 = vsel %vm439, 1, 0
    %vm549 = vcmp.eq.s32.totalorder %v548, 1
    %v552 = vrot.slane %v546, 4
    %v553 = vrot.slane %v547, 4
    %v558 = vrot.slane %v254, 4
    %v559 = vrot.slane %v277, 4
    %v562 = vsel %vm549, %v552, %v558
    %v563 = vsel %vm549, %v553, %v559
    %v564 = vperm.slane %v538, 0
    %v565 = vperm.slane %v539, 0
    %vm566 = vcmp.eq.s32.totalorder %v423, %v564
    %vm567 = vcmp.eq.s32.totalorder %v423, %v565
    %vm568 = vcmp.eq.s32.totalorder %v424, %v564
    %vm569 = vcmp.eq.s32.totalorder %v424, %v565
    %vm570 = vcmp.eq.s32.totalorder %v425, %v564
    %vm571 = vcmp.eq.s32.totalorder %v425, %v565
    %vm572 = vcmp.eq.s32.totalorder %v426, %v564
    %vm573 = vcmp.eq.s32.totalorder %v426, %v565
    %vm574 = vcmp.eq.s32.totalorder %v427, %v564
    %vm575 = vcmp.eq.s32.totalorder %v427, %v565
    %vm576 = vcmp.eq.s32.totalorder %v428, %v564
    %vm577 = vcmp.eq.s32.totalorder %v428, %v565
    %vm578 = vcmp.eq.s32.totalorder %v429, %v564
    %vm579 = vcmp.eq.s32.totalorder %v429, %v565
    %vm580 = vcmp.eq.s32.totalorder %v430, %v564
    %vm581 = vcmp.eq.s32.totalorder %v430, %v565
    %vm582 = vcmp.eq.s32.totalorder %v431, %v564
    %vm583 = vcmp.eq.s32.totalorder %v431, %v565
    %vm584 = vcmp.eq.s32.totalorder %v432, %v564
    %vm585 = vcmp.eq.s32.totalorder %v432, %v565
    %vm586 = vcmp.eq.s32.totalorder %v433, %v564
    %vm587 = vcmp.eq.s32.totalorder %v433, %v565
    %vm588 = vcmp.eq.s32.totalorder %v434, %v564
    %vm589 = vcmp.eq.s32.totalorder %v434, %v565
    %vm590 = vcmp.eq.s32.totalorder %v435, %v564
    %vm591 = vcmp.eq.s32.totalorder %v435, %v565
    %vm592 = vcmp.eq.s32.totalorder %v436, %v564
    %vm593 = vcmp.eq.s32.totalorder %v436, %v565
    %vm594 = vcmp.eq.s32.totalorder %v437, %v564
    %vm595 = vcmp.eq.s32.totalorder %v437, %v565
    %vm596 = vcmp.eq.s32.totalorder %v438, %v564
    %vm597 = vcmp.eq.s32.totalorder %v438, %v565
    %v598 = vperm.slane %v506, 0
    %v599 = vperm.slane %v507, 0
    %v600 = vsel %vm566, %v598, 0.0
    %v601 = vsel %vm567, %v599, 0.0
    %v602 = vsel %vm568, %v598, 0.0
    %v603 = vsel %vm569, %v599, 0.0
    %v604 = vsel %vm570, %v598, 0.0
    %v605 = vsel %vm571, %v599, 0.0
    %v606 = vsel %vm572, %v598, 0.0
    %v607 = vsel %vm573, %v599, 0.0
    %v608 = vsel %vm574, %v598, 0.0
    %v609 = vsel %vm575, %v599, 0.0
    %v610 = vsel %vm576, %v598, 0.0
    %v611 = vsel %vm577, %v599, 0.0
    %v612 = vsel %vm578, %v598, 0.0
    %v613 = vsel %vm579, %v599, 0.0
    %v614 = vsel %vm580, %v598, 0.0
    %v615 = vsel %vm581, %v599, 0.0
    %v616 = vsel %vm582, %v598, 0.0
    %v617 = vsel %vm583, %v599, 0.0
    %v618 = vsel %vm584, %v598, 0.0
    %v619 = vsel %vm585, %v599, 0.0
    %v620 = vsel %vm586, %v598, 0.0
    %v621 = vsel %vm587, %v599, 0.0
    %v622 = vsel %vm588, %v598, 0.0
    %v623 = vsel %vm589, %v599, 0.0
    %v624 = vsel %vm590, %v598, 0.0
    %v625 = vsel %vm591, %v599, 0.0
    %v626 = vsel %vm592, %v598, 0.0
    %v627 = vsel %vm593, %v599, 0.0
    %v628 = vsel %vm594, %v598, 0.0
    %v629 = vsel %vm595, %v599, 0.0
    %v630 = vsel %vm596, %v598, 0.0
    %v631 = vsel %vm597, %v599, 0.0
    %v632 = vperm.slane %v540, 0
    %v633 = vperm.slane %v541, 0
    %vm634 = vcmp.eq.s32.totalorder %v423, %v632
    %vm635 = vcmp.eq.s32.totalorder %v423, %v633
    %vm636 = vcmp.eq.s32.totalorder %v424, %v632
    %vm637 = vcmp.eq.s32.totalorder %v424, %v633
    %vm638 = vcmp.eq.s32.totalorder %v425, %v632
    %vm639 = vcmp.eq.s32.totalorder %v425, %v633
    %vm640 = vcmp.eq.s32.totalorder %v426, %v632
    %vm641 = vcmp.eq.s32.totalorder %v426, %v633
    %vm642 = vcmp.eq.s32.totalorder %v427, %v632
    %vm643 = vcmp.eq.s32.totalorder %v427, %v633
    %vm644 = vcmp.eq.s32.totalorder %v428, %v632
    %vm645 = vcmp.eq.s32.totalorder %v428, %v633
    %vm646 = vcmp.eq.s32.totalorder %v429, %v632
    %vm647 = vcmp.eq.s32.totalorder %v429, %v633
    %vm648 = vcmp.eq.s32.totalorder %v430, %v632
    %vm649 = vcmp.eq.s32.totalorder %v430, %v633
    %vm650 = vcmp.eq.s32.totalorder %v431, %v632
    %vm651 = vcmp.eq.s32.totalorder %v431, %v633
    %vm652 = vcmp.eq.s32.totalorder %v432, %v632
    %vm653 = vcmp.eq.s32.totalorder %v432, %v633
    %vm654 = vcmp.eq.s32.totalorder %v433, %v632
    %vm655 = vcmp.eq.s32.totalorder %v433, %v633
    %vm656 = vcmp.eq.s32.totalorder %v434, %v632
    %vm657 = vcmp.eq.s32.totalorder %v434, %v633
    %vm658 = vcmp.eq.s32.totalorder %v435, %v632
    %vm659 = vcmp.eq.s32.totalorder %v435, %v633
    %vm660 = vcmp.eq.s32.totalorder %v436, %v632
    %vm661 = vcmp.eq.s32.totalorder %v436, %v633
    %vm662 = vcmp.eq.s32.totalorder %v437, %v632
    %vm663 = vcmp.eq.s32.totalorder %v437, %v633
    %vm664 = vcmp.eq.s32.totalorder %v438, %v632
    %vm665 = vcmp.eq.s32.totalorder %v438, %v633
    %v666 = vperm.slane %v518, 0
    %v667 = vperm.slane %v519, 0
    %v668 = vsel %vm634, %v666, 0.0
    %v669 = vsel %vm635, %v667, 0.0
    %v670 = vsel %vm636, %v666, 0.0
    %v671 = vsel %vm637, %v667, 0.0
    %v672 = vsel %vm638, %v666, 0.0
    %v673 = vsel %vm639, %v667, 0.0
    %v674 = vsel %vm640, %v666, 0.0
    %v675 = vsel %vm641, %v667, 0.0
    %v676 = vsel %vm642, %v666, 0.0
    %v677 = vsel %vm643, %v667, 0.0
    %v678 = vsel %vm644, %v666, 0.0
    %v679 = vsel %vm645, %v667, 0.0
    %v680 = vsel %vm646, %v666, 0.0
    %v681 = vsel %vm647, %v667, 0.0
    %v682 = vsel %vm648, %v666, 0.0
    %v683 = vsel %vm649, %v667, 0.0
    %v684 = vsel %vm650, %v666, 0.0
    %v685 = vsel %vm651, %v667, 0.0
    %v686 = vsel %vm652, %v666, 0.0
    %v687 = vsel %vm653, %v667, 0.0
    %v688 = vsel %vm654, %v666, 0.0
    %v689 = vsel %vm655, %v667, 0.0
    %v690 = vsel %vm656, %v666, 0.0
    %v691 = vsel %vm657, %v667, 0.0
    %v692 = vsel %vm658, %v666, 0.0
    %v693 = vsel %vm659, %v667, 0.0
    %v694 = vsel %vm660, %v666, 0.0
    %v695 = vsel %vm661, %v667, 0.0
    %v696 = vsel %vm662, %v666, 0.0
    %v697 = vsel %vm663, %v667, 0.0
    %v698 = vsel %vm664, %v666, 0.0
    %v699 = vsel %vm665, %v667, 0.0
    %v700 = vadd.f32 %v600, %v668
    %v701 = vadd.f32 %v601, %v669
    %v702 = vadd.f32 %v602, %v670
    %v703 = vadd.f32 %v603, %v671
    %v704 = vadd.f32 %v604, %v672
    %v705 = vadd.f32 %v605, %v673
    %v706 = vadd.f32 %v606, %v674
    %v707 = vadd.f32 %v607, %v675
    %v708 = vadd.f32 %v608, %v676
    %v709 = vadd.f32 %v609, %v677
    %v710 = vadd.f32 %v610, %v678
    %v711 = vadd.f32 %v611, %v679
    %v712 = vadd.f32 %v612, %v680
    %v713 = vadd.f32 %v613, %v681
    %v714 = vadd.f32 %v614, %v682
    %v715 = vadd.f32 %v615, %v683
    %v716 = vadd.f32 %v616, %v684
    %v717 = vadd.f32 %v617, %v685
    %v718 = vadd.f32 %v618, %v686
    %v719 = vadd.f32 %v619, %v687
    %v720 = vadd.f32 %v620, %v688
    %v721 = vadd.f32 %v621, %v689
    %v722 = vadd.f32 %v622, %v690
    %v723 = vadd.f32 %v623, %v691
    %v724 = vadd.f32 %v624, %v692
    %v725 = vadd.f32 %v625, %v693
    %v726 = vadd.f32 %v626, %v694
    %v727 = vadd.f32 %v627, %v695
    %v728 = vadd.f32 %v628, %v696
    %v729 = vadd.f32 %v629, %v697
    %v730 = vadd.f32 %v630, %v698
    %v731 = vadd.f32 %v631, %v699
    %v732 = vperm.slane %v542, 0
    %v733 = vperm.slane %v543, 0
    %vm734 = vcmp.eq.s32.totalorder %v423, %v732
    %vm735 = vcmp.eq.s32.totalorder %v423, %v733
    %vm736 = vcmp.eq.s32.totalorder %v424, %v732
    %vm737 = vcmp.eq.s32.totalorder %v424, %v733
    %vm738 = vcmp.eq.s32.totalorder %v425, %v732
    %vm739 = vcmp.eq.s32.totalorder %v425, %v733
    %vm740 = vcmp.eq.s32.totalorder %v426, %v732
    %vm741 = vcmp.eq.s32.totalorder %v426, %v733
    %vm742 = vcmp.eq.s32.totalorder %v427, %v732
    %vm743 = vcmp.eq.s32.totalorder %v427, %v733
    %vm744 = vcmp.eq.s32.totalorder %v428, %v732
    %vm745 = vcmp.eq.s32.totalorder %v428, %v733
    %vm746 = vcmp.eq.s32.totalorder %v429, %v732
    %vm747 = vcmp.eq.s32.totalorder %v429, %v733
    %vm748 = vcmp.eq.s32.totalorder %v430, %v732
    %vm749 = vcmp.eq.s32.totalorder %v430, %v733
    %vm750 = vcmp.eq.s32.totalorder %v431, %v732
    %vm751 = vcmp.eq.s32.totalorder %v431, %v733
    %vm752 = vcmp.eq.s32.totalorder %v432, %v732
    %vm753 = vcmp.eq.s32.totalorder %v432, %v733
    %vm754 = vcmp.eq.s32.totalorder %v433, %v732
    %vm755 = vcmp.eq.s32.totalorder %v433, %v733
    %vm756 = vcmp.eq.s32.totalorder %v434, %v732
    %vm757 = vcmp.eq.s32.totalorder %v434, %v733
    %vm758 = vcmp.eq.s32.totalorder %v435, %v732
    %vm759 = vcmp.eq.s32.totalorder %v435, %v733
    %vm760 = vcmp.eq.s32.totalorder %v436, %v732
    %vm761 = vcmp.eq.s32.totalorder %v436, %v733
    %vm762 = vcmp.eq.s32.totalorder %v437, %v732
    %vm763 = vcmp.eq.s32.totalorder %v437, %v733
    %vm764 = vcmp.eq.s32.totalorder %v438, %v732
    %vm765 = vcmp.eq.s32.totalorder %v438, %v733
    %v766 = vperm.slane %v528, 0
    %v767 = vperm.slane %v529, 0
    %v768 = vsel %vm734, %v766, 0.0
    %v769 = vsel %vm735, %v767, 0.0
    %v770 = vsel %vm736, %v766, 0.0
    %v771 = vsel %vm737, %v767, 0.0
    %v772 = vsel %vm738, %v766, 0.0
    %v773 = vsel %vm739, %v767, 0.0
    %v774 = vsel %vm740, %v766, 0.0
    %v775 = vsel %vm741, %v767, 0.0
    %v776 = vsel %vm742, %v766, 0.0
    %v777 = vsel %vm743, %v767, 0.0
    %v778 = vsel %vm744, %v766, 0.0
    %v779 = vsel %vm745, %v767, 0.0
    %v780 = vsel %vm746, %v766, 0.0
    %v781 = vsel %vm747, %v767, 0.0
    %v782 = vsel %vm748, %v766, 0.0
    %v783 = vsel %vm749, %v767, 0.0
    %v784 = vsel %vm750, %v766, 0.0
    %v785 = vsel %vm751, %v767, 0.0
    %v786 = vsel %vm752, %v766, 0.0
    %v787 = vsel %vm753, %v767, 0.0
    %v788 = vsel %vm754, %v766, 0.0
    %v789 = vsel %vm755, %v767, 0.0
    %v790 = vsel %vm756, %v766, 0.0
    %v791 = vsel %vm757, %v767, 0.0
    %v792 = vsel %vm758, %v766, 0.0
    %v793 = vsel %vm759, %v767, 0.0
    %v794 = vsel %vm760, %v766, 0.0
    %v795 = vsel %vm761, %v767, 0.0
    %v796 = vsel %vm762, %v766, 0.0
    %v797 = vsel %vm763, %v767, 0.0
    %v798 = vsel %vm764, %v766, 0.0
    %v799 = vsel %vm765, %v767, 0.0
    %v800 = vadd.f32 %v700, %v768
    %v801 = vadd.f32 %v701, %v769
    %v802 = vadd.f32 %v702, %v770
    %v803 = vadd.f32 %v703, %v771
    %v804 = vadd.f32 %v704, %v772
    %v805 = vadd.f32 %v705, %v773
    %v806 = vadd.f32 %v706, %v774
    %v807 = vadd.f32 %v707, %v775
    %v808 = vadd.f32 %v708, %v776
    %v809 = vadd.f32 %v709, %v777
    %v810 = vadd.f32 %v710, %v778
    %v811 = vadd.f32 %v711, %v779
    %v812 = vadd.f32 %v712, %v780
    %v813 = vadd.f32 %v713, %v781
    %v814 = vadd.f32 %v714, %v782
    %v815 = vadd.f32 %v715, %v783
    %v816 = vadd.f32 %v716, %v784
    %v817 = vadd.f32 %v717, %v785
    %v818 = vadd.f32 %v718, %v786
    %v819 = vadd.f32 %v719, %v787
    %v820 = vadd.f32 %v720, %v788
    %v821 = vadd.f32 %v721, %v789
    %v822 = vadd.f32 %v722, %v790
    %v823 = vadd.f32 %v723, %v791
    %v824 = vadd.f32 %v724, %v792
    %v825 = vadd.f32 %v725, %v793
    %v826 = vadd.f32 %v726, %v794
    %v827 = vadd.f32 %v727, %v795
    %v828 = vadd.f32 %v728, %v796
    %v829 = vadd.f32 %v729, %v797
    %v830 = vadd.f32 %v730, %v798
    %v831 = vadd.f32 %v731, %v799
    %v832 = vperm.slane %v544, 0
    %v833 = vperm.slane %v545, 0
    %vm834 = vcmp.eq.s32.totalorder %v423, %v832
    %vm835 = vcmp.eq.s32.totalorder %v423, %v833
    %vm836 = vcmp.eq.s32.totalorder %v424, %v832
    %vm837 = vcmp.eq.s32.totalorder %v424, %v833
    %vm838 = vcmp.eq.s32.totalorder %v425, %v832
    %vm839 = vcmp.eq.s32.totalorder %v425, %v833
    %vm840 = vcmp.eq.s32.totalorder %v426, %v832
    %vm841 = vcmp.eq.s32.totalorder %v426, %v833
    %vm842 = vcmp.eq.s32.totalorder %v427, %v832
    %vm843 = vcmp.eq.s32.totalorder %v427, %v833
    %vm844 = vcmp.eq.s32.totalorder %v428, %v832
    %vm845 = vcmp.eq.s32.totalorder %v428, %v833
    %vm846 = vcmp.eq.s32.totalorder %v429, %v832
    %vm847 = vcmp.eq.s32.totalorder %v429, %v833
    %vm848 = vcmp.eq.s32.totalorder %v430, %v832
    %vm849 = vcmp.eq.s32.totalorder %v430, %v833
    %vm850 = vcmp.eq.s32.totalorder %v431, %v832
    %vm851 = vcmp.eq.s32.totalorder %v431, %v833
    %vm852 = vcmp.eq.s32.totalorder %v432, %v832
    %vm853 = vcmp.eq.s32.totalorder %v432, %v833
    %vm854 = vcmp.eq.s32.totalorder %v433, %v832
    %vm855 = vcmp.eq.s32.totalorder %v433, %v833
    %vm856 = vcmp.eq.s32.totalorder %v434, %v832
    %vm857 = vcmp.eq.s32.totalorder %v434, %v833
    %vm858 = vcmp.eq.s32.totalorder %v435, %v832
    %vm859 = vcmp.eq.s32.totalorder %v435, %v833
    %vm860 = vcmp.eq.s32.totalorder %v436, %v832
    %vm861 = vcmp.eq.s32.totalorder %v436, %v833
    %vm862 = vcmp.eq.s32.totalorder %v437, %v832
    %vm863 = vcmp.eq.s32.totalorder %v437, %v833
    %vm864 = vcmp.eq.s32.totalorder %v438, %v832
    %vm865 = vcmp.eq.s32.totalorder %v438, %v833
    %v866 = vperm.slane %v534, 0
    %v867 = vperm.slane %v535, 0
    %v868 = vsel %vm834, %v866, 0.0
    %v869 = vsel %vm835, %v867, 0.0
    %v870 = vsel %vm836, %v866, 0.0
    %v871 = vsel %vm837, %v867, 0.0
    %v872 = vsel %vm838, %v866, 0.0
    %v873 = vsel %vm839, %v867, 0.0
    %v874 = vsel %vm840, %v866, 0.0
    %v875 = vsel %vm841, %v867, 0.0
    %v876 = vsel %vm842, %v866, 0.0
    %v877 = vsel %vm843, %v867, 0.0
    %v878 = vsel %vm844, %v866, 0.0
    %v879 = vsel %vm845, %v867, 0.0
    %v880 = vsel %vm846, %v866, 0.0
    %v881 = vsel %vm847, %v867, 0.0
    %v882 = vsel %vm848, %v866, 0.0
    %v883 = vsel %vm849, %v867, 0.0
    %v884 = vsel %vm850, %v866, 0.0
    %v885 = vsel %vm851, %v867, 0.0
    %v886 = vsel %vm852, %v866, 0.0
    %v887 = vsel %vm853, %v867, 0.0
    %v888 = vsel %vm854, %v866, 0.0
    %v889 = vsel %vm855, %v867, 0.0
    %v890 = vsel %vm856, %v866, 0.0
    %v891 = vsel %vm857, %v867, 0.0
    %v892 = vsel %vm858, %v866, 0.0
    %v893 = vsel %vm859, %v867, 0.0
    %v894 = vsel %vm860, %v866, 0.0
    %v895 = vsel %vm861, %v867, 0.0
    %v896 = vsel %vm862, %v866, 0.0
    %v897 = vsel %vm863, %v867, 0.0
    %v898 = vsel %vm864, %v866, 0.0
    %v899 = vsel %vm865, %v867, 0.0
    %v900 = vadd.f32 %v800, %v868
    %v901 = vadd.f32 %v801, %v869
    %v902 = vadd.f32 %v802, %v870
    %v903 = vadd.f32 %v803, %v871
    %v904 = vadd.f32 %v804, %v872
    %v905 = vadd.f32 %v805, %v873
    %v906 = vadd.f32 %v806, %v874
    %v907 = vadd.f32 %v807, %v875
    %v908 = vadd.f32 %v808, %v876
    %v909 = vadd.f32 %v809, %v877
    %v910 = vadd.f32 %v810, %v878
    %v911 = vadd.f32 %v811, %v879
    %v912 = vadd.f32 %v812, %v880
    %v913 = vadd.f32 %v813, %v881
    %v914 = vadd.f32 %v814, %v882
    %v915 = vadd.f32 %v815, %v883
    %v916 = vadd.f32 %v816, %v884
    %v917 = vadd.f32 %v817, %v885
    %v918 = vadd.f32 %v818, %v886
    %v919 = vadd.f32 %v819, %v887
    %v920 = vadd.f32 %v820, %v888
    %v921 = vadd.f32 %v821, %v889
    %v922 = vadd.f32 %v822, %v890
    %v923 = vadd.f32 %v823, %v891
    %v924 = vadd.f32 %v824, %v892
    %v925 = vadd.f32 %v825, %v893
    %v926 = vadd.f32 %v826, %v894
    %v927 = vadd.f32 %v827, %v895
    %v928 = vadd.f32 %v828, %v896
    %v929 = vadd.f32 %v829, %v897
    %v930 = vadd.f32 %v830, %v898
    %v931 = vadd.f32 %v831, %v899
    %v932 = vsub.s32 %v538, 128
    %v933 = vsub.s32 %v539, 128
    %v934 = vperm.slane %v932, 0
    %v935 = vperm.slane %v933, 0
    %vm936 = vcmp.eq.s32.totalorder %v423, %v934
    %vm937 = vcmp.eq.s32.totalorder %v423, %v935
    %vm938 = vcmp.eq.s32.totalorder %v424, %v934
    %vm939 = vcmp.eq.s32.totalorder %v424, %v935
    %vm940 = vcmp.eq.s32.totalorder %v425, %v934
    %vm941 = vcmp.eq.s32.totalorder %v425, %v935
    %vm942 = vcmp.eq.s32.totalorder %v426, %v934
    %vm943 = vcmp.eq.s32.totalorder %v426, %v935
    %vm944 = vcmp.eq.s32.totalorder %v427, %v934
    %vm945 = vcmp.eq.s32.totalorder %v427, %v935
    %vm946 = vcmp.eq.s32.totalorder %v428, %v934
    %vm947 = vcmp.eq.s32.totalorder %v428, %v935
    %vm948 = vcmp.eq.s32.totalorder %v429, %v934
    %vm949 = vcmp.eq.s32.totalorder %v429, %v935
    %vm950 = vcmp.eq.s32.totalorder %v430, %v934
    %vm951 = vcmp.eq.s32.totalorder %v430, %v935
    %vm952 = vcmp.eq.s32.totalorder %v431, %v934
    %vm953 = vcmp.eq.s32.totalorder %v431, %v935
    %vm954 = vcmp.eq.s32.totalorder %v432, %v934
    %vm955 = vcmp.eq.s32.totalorder %v432, %v935
    %vm956 = vcmp.eq.s32.totalorder %v433, %v934
    %vm957 = vcmp.eq.s32.totalorder %v433, %v935
    %vm958 = vcmp.eq.s32.totalorder %v434, %v934
    %vm959 = vcmp.eq.s32.totalorder %v434, %v935
    %vm960 = vcmp.eq.s32.totalorder %v435, %v934
    %vm961 = vcmp.eq.s32.totalorder %v435, %v935
    %vm962 = vcmp.eq.s32.totalorder %v436, %v934
    %vm963 = vcmp.eq.s32.totalorder %v436, %v935
    %vm964 = vcmp.eq.s32.totalorder %v437, %v934
    %vm965 = vcmp.eq.s32.totalorder %v437, %v935
    %vm966 = vcmp.eq.s32.totalorder %v438, %v934
    %vm967 = vcmp.eq.s32.totalorder %v438, %v935
    %v968 = vsel %vm936, %v598, 0.0
    %v969 = vsel %vm937, %v599, 0.0
    %v970 = vsel %vm938, %v598, 0.0
    %v971 = vsel %vm939, %v599, 0.0
    %v972 = vsel %vm940, %v598, 0.0
    %v973 = vsel %vm941, %v599, 0.0
    %v974 = vsel %vm942, %v598, 0.0
    %v975 = vsel %vm943, %v599, 0.0
    %v976 = vsel %vm944, %v598, 0.0
    %v977 = vsel %vm945, %v599, 0.0
    %v978 = vsel %vm946, %v598, 0.0
    %v979 = vsel %vm947, %v599, 0.0
    %v980 = vsel %vm948, %v598, 0.0
    %v981 = vsel %vm949, %v599, 0.0
    %v982 = vsel %vm950, %v598, 0.0
    %v983 = vsel %vm951, %v599, 0.0
    %v984 = vsel %vm952, %v598, 0.0
    %v985 = vsel %vm953, %v599, 0.0
    %v986 = vsel %vm954, %v598, 0.0
    %v987 = vsel %vm955, %v599, 0.0
    %v988 = vsel %vm956, %v598, 0.0
    %v989 = vsel %vm957, %v599, 0.0
    %v990 = vsel %vm958, %v598, 0.0
    %v991 = vsel %vm959, %v599, 0.0
    %v992 = vsel %vm960, %v598, 0.0
    %v993 = vsel %vm961, %v599, 0.0
    %v994 = vsel %vm962, %v598, 0.0
    %v995 = vsel %vm963, %v599, 0.0
    %v996 = vsel %vm964, %v598, 0.0
    %v997 = vsel %vm965, %v599, 0.0
    %v998 = vsel %vm966, %v598, 0.0
    %v999 = vsel %vm967, %v599, 0.0
    %v1000 = vsub.s32 %v540, 128
    %v1001 = vsub.s32 %v541, 128
    %v1002 = vperm.slane %v1000, 0
    %v1003 = vperm.slane %v1001, 0
    %vm1004 = vcmp.eq.s32.totalorder %v423, %v1002
    %vm1005 = vcmp.eq.s32.totalorder %v423, %v1003
    %vm1006 = vcmp.eq.s32.totalorder %v424, %v1002
    %vm1007 = vcmp.eq.s32.totalorder %v424, %v1003
    %vm1008 = vcmp.eq.s32.totalorder %v425, %v1002
    %vm1009 = vcmp.eq.s32.totalorder %v425, %v1003
    %vm1010 = vcmp.eq.s32.totalorder %v426, %v1002
    %vm1011 = vcmp.eq.s32.totalorder %v426, %v1003
    %vm1012 = vcmp.eq.s32.totalorder %v427, %v1002
    %vm1013 = vcmp.eq.s32.totalorder %v427, %v1003
    %vm1014 = vcmp.eq.s32.totalorder %v428, %v1002
    %vm1015 = vcmp.eq.s32.totalorder %v428, %v1003
    %vm1016 = vcmp.eq.s32.totalorder %v429, %v1002
    %vm1017 = vcmp.eq.s32.totalorder %v429, %v1003
    %vm1018 = vcmp.eq.s32.totalorder %v430, %v1002
    %vm1019 = vcmp.eq.s32.totalorder %v430, %v1003
    %vm1020 = vcmp.eq.s32.totalorder %v431, %v1002
    %vm1021 = vcmp.eq.s32.totalorder %v431, %v1003
    %vm1022 = vcmp.eq.s32.totalorder %v432, %v1002
    %vm1023 = vcmp.eq.s32.totalorder %v432, %v1003
    %vm1024 = vcmp.eq.s32.totalorder %v433, %v1002
    %vm1025 = vcmp.eq.s32.totalorder %v433, %v1003
    %vm1026 = vcmp.eq.s32.totalorder %v434, %v1002
    %vm1027 = vcmp.eq.s32.totalorder %v434, %v1003
    %vm1028 = vcmp.eq.s32.totalorder %v435, %v1002
    %vm1029 = vcmp.eq.s32.totalorder %v435, %v1003
    %vm1030 = vcmp.eq.s32.totalorder %v436, %v1002
    %vm1031 = vcmp.eq.s32.totalorder %v436, %v1003
    %vm1032 = vcmp.eq.s32.totalorder %v437, %v1002
    %vm1033 = vcmp.eq.s32.totalorder %v437, %v1003
    %vm1034 = vcmp.eq.s32.totalorder %v438, %v1002
    %vm1035 = vcmp.eq.s32.totalorder %v438, %v1003
    %v1036 = vsel %vm1004, %v666, 0.0
    %v1037 = vsel %vm1005, %v667, 0.0
    %v1038 = vsel %vm1006, %v666, 0.0
    %v1039 = vsel %vm1007, %v667, 0.0
    %v1040 = vsel %vm1008, %v666, 0.0
    %v1041 = vsel %vm1009, %v667, 0.0
    %v1042 = vsel %vm1010, %v666, 0.0
    %v1043 = vsel %vm1011, %v667, 0.0
    %v1044 = vsel %vm1012, %v666, 0.0
    %v1045 = vsel %vm1013, %v667, 0.0
    %v1046 = vsel %vm1014, %v666, 0.0
    %v1047 = vsel %vm1015, %v667, 0.0
    %v1048 = vsel %vm1016, %v666, 0.0
    %v1049 = vsel %vm1017, %v667, 0.0
    %v1050 = vsel %vm1018, %v666, 0.0
    %v1051 = vsel %vm1019, %v667, 0.0
    %v1052 = vsel %vm1020, %v666, 0.0
    %v1053 = vsel %vm1021, %v667, 0.0
    %v1054 = vsel %vm1022, %v666, 0.0
    %v1055 = vsel %vm1023, %v667, 0.0
    %v1056 = vsel %vm1024, %v666, 0.0
    %v1057 = vsel %vm1025, %v667, 0.0
    %v1058 = vsel %vm1026, %v666, 0.0
    %v1059 = vsel %vm1027, %v667, 0.0
    %v1060 = vsel %vm1028, %v666, 0.0
    %v1061 = vsel %vm1029, %v667, 0.0
    %v1062 = vsel %vm1030, %v666, 0.0
    %v1063 = vsel %vm1031, %v667, 0.0
    %v1064 = vsel %vm1032, %v666, 0.0
    %v1065 = vsel %vm1033, %v667, 0.0
    %v1066 = vsel %vm1034, %v666, 0.0
    %v1067 = vsel %vm1035, %v667, 0.0
    %v1068 = vadd.f32 %v968, %v1036
    %v1069 = vadd.f32 %v969, %v1037
    %v1070 = vadd.f32 %v970, %v1038
    %v1071 = vadd.f32 %v971, %v1039
    %v1072 = vadd.f32 %v972, %v1040
    %v1073 = vadd.f32 %v973, %v1041
    %v1074 = vadd.f32 %v974, %v1042
    %v1075 = vadd.f32 %v975, %v1043
    %v1076 = vadd.f32 %v976, %v1044
    %v1077 = vadd.f32 %v977, %v1045
    %v1078 = vadd.f32 %v978, %v1046
    %v1079 = vadd.f32 %v979, %v1047
    %v1080 = vadd.f32 %v980, %v1048
    %v1081 = vadd.f32 %v981, %v1049
    %v1082 = vadd.f32 %v982, %v1050
    %v1083 = vadd.f32 %v983, %v1051
    %v1084 = vadd.f32 %v984, %v1052
    %v1085 = vadd.f32 %v985, %v1053
    %v1086 = vadd.f32 %v986, %v1054
    %v1087 = vadd.f32 %v987, %v1055
    %v1088 = vadd.f32 %v988, %v1056
    %v1089 = vadd.f32 %v989, %v1057
    %v1090 = vadd.f32 %v990, %v1058
    %v1091 = vadd.f32 %v991, %v1059
    %v1092 = vadd.f32 %v992, %v1060
    %v1093 = vadd.f32 %v993, %v1061
    %v1094 = vadd.f32 %v994, %v1062
    %v1095 = vadd.f32 %v995, %v1063
    %v1096 = vadd.f32 %v996, %v1064
    %v1097 = vadd.f32 %v997, %v1065
    %v1098 = vadd.f32 %v998, %v1066
    %v1099 = vadd.f32 %v999, %v1067
    %v1100 = vsub.s32 %v542, 128
    %v1101 = vsub.s32 %v543, 128
    %v1102 = vperm.slane %v1100, 0
    %v1103 = vperm.slane %v1101, 0
    %vm1104 = vcmp.eq.s32.totalorder %v423, %v1102
    %vm1105 = vcmp.eq.s32.totalorder %v423, %v1103
    %vm1106 = vcmp.eq.s32.totalorder %v424, %v1102
    %vm1107 = vcmp.eq.s32.totalorder %v424, %v1103
    %vm1108 = vcmp.eq.s32.totalorder %v425, %v1102
    %vm1109 = vcmp.eq.s32.totalorder %v425, %v1103
    %vm1110 = vcmp.eq.s32.totalorder %v426, %v1102
    %vm1111 = vcmp.eq.s32.totalorder %v426, %v1103
    %vm1112 = vcmp.eq.s32.totalorder %v427, %v1102
    %vm1113 = vcmp.eq.s32.totalorder %v427, %v1103
    %vm1114 = vcmp.eq.s32.totalorder %v428, %v1102
    %vm1115 = vcmp.eq.s32.totalorder %v428, %v1103
    %vm1116 = vcmp.eq.s32.totalorder %v429, %v1102
    %vm1117 = vcmp.eq.s32.totalorder %v429, %v1103
    %vm1118 = vcmp.eq.s32.totalorder %v430, %v1102
    %vm1119 = vcmp.eq.s32.totalorder %v430, %v1103
    %vm1120 = vcmp.eq.s32.totalorder %v431, %v1102
    %vm1121 = vcmp.eq.s32.totalorder %v431, %v1103
    %vm1122 = vcmp.eq.s32.totalorder %v432, %v1102
    %vm1123 = vcmp.eq.s32.totalorder %v432, %v1103
    %vm1124 = vcmp.eq.s32.totalorder %v433, %v1102
    %vm1125 = vcmp.eq.s32.totalorder %v433, %v1103
    %vm1126 = vcmp.eq.s32.totalorder %v434, %v1102
    %vm1127 = vcmp.eq.s32.totalorder %v434, %v1103
    %vm1128 = vcmp.eq.s32.totalorder %v435, %v1102
    %vm1129 = vcmp.eq.s32.totalorder %v435, %v1103
    %vm1130 = vcmp.eq.s32.totalorder %v436, %v1102
    %vm1131 = vcmp.eq.s32.totalorder %v436, %v1103
    %vm1132 = vcmp.eq.s32.totalorder %v437, %v1102
    %vm1133 = vcmp.eq.s32.totalorder %v437, %v1103
    %vm1134 = vcmp.eq.s32.totalorder %v438, %v1102
    %vm1135 = vcmp.eq.s32.totalorder %v438, %v1103
    %v1136 = vsel %vm1104, %v766, 0.0
    %v1137 = vsel %vm1105, %v767, 0.0
    %v1138 = vsel %vm1106, %v766, 0.0
    %v1139 = vsel %vm1107, %v767, 0.0
    %v1140 = vsel %vm1108, %v766, 0.0
    %v1141 = vsel %vm1109, %v767, 0.0
    %v1142 = vsel %vm1110, %v766, 0.0
    %v1143 = vsel %vm1111, %v767, 0.0
    %v1144 = vsel %vm1112, %v766, 0.0
    %v1145 = vsel %vm1113, %v767, 0.0
    %v1146 = vsel %vm1114, %v766, 0.0
    %v1147 = vsel %vm1115, %v767, 0.0
    %v1148 = vsel %vm1116, %v766, 0.0
    %v1149 = vsel %vm1117, %v767, 0.0
    %v1150 = vsel %vm1118, %v766, 0.0
    %v1151 = vsel %vm1119, %v767, 0.0
    %v1152 = vsel %vm1120, %v766, 0.0
    %v1153 = vsel %vm1121, %v767, 0.0
    %v1154 = vsel %vm1122, %v766, 0.0
    %v1155 = vsel %vm1123, %v767, 0.0
    %v1156 = vsel %vm1124, %v766, 0.0
    %v1157 = vsel %vm1125, %v767, 0.0
    %v1158 = vsel %vm1126, %v766, 0.0
    %v1159 = vsel %vm1127, %v767, 0.0
    %v1160 = vsel %vm1128, %v766, 0.0
    %v1161 = vsel %vm1129, %v767, 0.0
    %v1162 = vsel %vm1130, %v766, 0.0
    %v1163 = vsel %vm1131, %v767, 0.0
    %v1164 = vsel %vm1132, %v766, 0.0
    %v1165 = vsel %vm1133, %v767, 0.0
    %v1166 = vsel %vm1134, %v766, 0.0
    %v1167 = vsel %vm1135, %v767, 0.0
    %v1168 = vadd.f32 %v1068, %v1136
    %v1169 = vadd.f32 %v1069, %v1137
    %v1170 = vadd.f32 %v1070, %v1138
    %v1171 = vadd.f32 %v1071, %v1139
    %v1172 = vadd.f32 %v1072, %v1140
    %v1173 = vadd.f32 %v1073, %v1141
    %v1174 = vadd.f32 %v1074, %v1142
    %v1175 = vadd.f32 %v1075, %v1143
    %v1176 = vadd.f32 %v1076, %v1144
    %v1177 = vadd.f32 %v1077, %v1145
    %v1178 = vadd.f32 %v1078, %v1146
    %v1179 = vadd.f32 %v1079, %v1147
    %v1180 = vadd.f32 %v1080, %v1148
    %v1181 = vadd.f32 %v1081, %v1149
    %v1182 = vadd.f32 %v1082, %v1150
    %v1183 = vadd.f32 %v1083, %v1151
    %v1184 = vadd.f32 %v1084, %v1152
    %v1185 = vadd.f32 %v1085, %v1153
    %v1186 = vadd.f32 %v1086, %v1154
    %v1187 = vadd.f32 %v1087, %v1155
    %v1188 = vadd.f32 %v1088, %v1156
    %v1189 = vadd.f32 %v1089, %v1157
    %v1190 = vadd.f32 %v1090, %v1158
    %v1191 = vadd.f32 %v1091, %v1159
    %v1192 = vadd.f32 %v1092, %v1160
    %v1193 = vadd.f32 %v1093, %v1161
    %v1194 = vadd.f32 %v1094, %v1162
    %v1195 = vadd.f32 %v1095, %v1163
    %v1196 = vadd.f32 %v1096, %v1164
    %v1197 = vadd.f32 %v1097, %v1165
    %v1198 = vadd.f32 %v1098, %v1166
    %v1199 = vadd.f32 %v1099, %v1167
    %v1200 = vsub.s32 %v544, 128
    %v1201 = vsub.s32 %v545, 128
    %v1202 = vperm.slane %v1200, 0
    %v1203 = vperm.slane %v1201, 0
    %vm1204 = vcmp.eq.s32.totalorder %v423, %v1202
    %vm1205 = vcmp.eq.s32.totalorder %v423, %v1203
    %vm1206 = vcmp.eq.s32.totalorder %v424, %v1202
    %vm1207 = vcmp.eq.s32.totalorder %v424, %v1203
    %vm1208 = vcmp.eq.s32.totalorder %v425, %v1202
    %vm1209 = vcmp.eq.s32.totalorder %v425, %v1203
    %vm1210 = vcmp.eq.s32.totalorder %v426, %v1202
    %vm1211 = vcmp.eq.s32.totalorder %v426, %v1203
    %vm1212 = vcmp.eq.s32.totalorder %v427, %v1202
    %vm1213 = vcmp.eq.s32.totalorder %v427, %v1203
    %vm1214 = vcmp.eq.s32.totalorder %v428, %v1202
    %vm1215 = vcmp.eq.s32.totalorder %v428, %v1203
    %vm1216 = vcmp.eq.s32.totalorder %v429, %v1202
    %vm1217 = vcmp.eq.s32.totalorder %v429, %v1203
    %vm1218 = vcmp.eq.s32.totalorder %v430, %v1202
    %vm1219 = vcmp.eq.s32.totalorder %v430, %v1203
    %vm1220 = vcmp.eq.s32.totalorder %v431, %v1202
    %vm1221 = vcmp.eq.s32.totalorder %v431, %v1203
    %vm1222 = vcmp.eq.s32.totalorder %v432, %v1202
    %vm1223 = vcmp.eq.s32.totalorder %v432, %v1203
    %vm1224 = vcmp.eq.s32.totalorder %v433, %v1202
    %vm1225 = vcmp.eq.s32.totalorder %v433, %v1203
    %vm1226 = vcmp.eq.s32.totalorder %v434, %v1202
    %vm1227 = vcmp.eq.s32.totalorder %v434, %v1203
    %vm1228 = vcmp.eq.s32.totalorder %v435, %v1202
    %vm1229 = vcmp.eq.s32.totalorder %v435, %v1203
    %vm1230 = vcmp.eq.s32.totalorder %v436, %v1202
    %vm1231 = vcmp.eq.s32.totalorder %v436, %v1203
    %vm1232 = vcmp.eq.s32.totalorder %v437, %v1202
    %vm1233 = vcmp.eq.s32.totalorder %v437, %v1203
    %vm1234 = vcmp.eq.s32.totalorder %v438, %v1202
    %vm1235 = vcmp.eq.s32.totalorder %v438, %v1203
    %v1236 = vsel %vm1204, %v866, 0.0
    %v1237 = vsel %vm1205, %v867, 0.0
    %v1238 = vsel %vm1206, %v866, 0.0
    %v1239 = vsel %vm1207, %v867, 0.0
    %v1240 = vsel %vm1208, %v866, 0.0
    %v1241 = vsel %vm1209, %v867, 0.0
    %v1242 = vsel %vm1210, %v866, 0.0
    %v1243 = vsel %vm1211, %v867, 0.0
    %v1244 = vsel %vm1212, %v866, 0.0
    %v1245 = vsel %vm1213, %v867, 0.0
    %v1246 = vsel %vm1214, %v866, 0.0
    %v1247 = vsel %vm1215, %v867, 0.0
    %v1248 = vsel %vm1216, %v866, 0.0
    %v1249 = vsel %vm1217, %v867, 0.0
    %v1250 = vsel %vm1218, %v866, 0.0
    %v1251 = vsel %vm1219, %v867, 0.0
    %v1252 = vsel %vm1220, %v866, 0.0
    %v1253 = vsel %vm1221, %v867, 0.0
    %v1254 = vsel %vm1222, %v866, 0.0
    %v1255 = vsel %vm1223, %v867, 0.0
    %v1256 = vsel %vm1224, %v866, 0.0
    %v1257 = vsel %vm1225, %v867, 0.0
    %v1258 = vsel %vm1226, %v866, 0.0
    %v1259 = vsel %vm1227, %v867, 0.0
    %v1260 = vsel %vm1228, %v866, 0.0
    %v1261 = vsel %vm1229, %v867, 0.0
    %v1262 = vsel %vm1230, %v866, 0.0
    %v1263 = vsel %vm1231, %v867, 0.0
    %v1264 = vsel %vm1232, %v866, 0.0
    %v1265 = vsel %vm1233, %v867, 0.0
    %v1266 = vsel %vm1234, %v866, 0.0
    %v1267 = vsel %vm1235, %v867, 0.0
    %v1268 = vadd.f32 %v1168, %v1236
    %v1269 = vadd.f32 %v1169, %v1237
    %v1270 = vadd.f32 %v1170, %v1238
    %v1271 = vadd.f32 %v1171, %v1239
    %v1272 = vadd.f32 %v1172, %v1240
    %v1273 = vadd.f32 %v1173, %v1241
    %v1274 = vadd.f32 %v1174, %v1242
    %v1275 = vadd.f32 %v1175, %v1243
    %v1276 = vadd.f32 %v1176, %v1244
    %v1277 = vadd.f32 %v1177, %v1245
    %v1278 = vadd.f32 %v1178, %v1246
    %v1279 = vadd.f32 %v1179, %v1247
    %v1280 = vadd.f32 %v1180, %v1248
    %v1281 = vadd.f32 %v1181, %v1249
    %v1282 = vadd.f32 %v1182, %v1250
    %v1283 = vadd.f32 %v1183, %v1251
    %v1284 = vadd.f32 %v1184, %v1252
    %v1285 = vadd.f32 %v1185, %v1253
    %v1286 = vadd.f32 %v1186, %v1254
    %v1287 = vadd.f32 %v1187, %v1255
    %v1288 = vadd.f32 %v1188, %v1256
    %v1289 = vadd.f32 %v1189, %v1257
    %v1290 = vadd.f32 %v1190, %v1258
    %v1291 = vadd.f32 %v1191, %v1259
    %v1292 = vadd.f32 %v1192, %v1260
    %v1293 = vadd.f32 %v1193, %v1261
    %v1294 = vadd.f32 %v1194, %v1262
    %v1295 = vadd.f32 %v1195, %v1263
    %v1296 = vadd.f32 %v1196, %v1264
    %v1297 = vadd.f32 %v1197, %v1265
    %v1298 = vadd.f32 %v1198, %v1266
    %v1299 = vadd.f32 %v1199, %v1267
    %1300 = vmatpush.msra.mxu0 %v1298
    %1301 = vmatpush.msra.mxu0 %v1296
    %1302 = vmatpush.msra.mxu0 %v1294
    %1303 = vmatpush.msra.mxu0 %v1292
    %1304 = vmatpush.msra.mxu0 %v1290
    %1305 = vmatpush.msra.mxu0 %v1288
    %1306 = vmatpush.msra.mxu0 %v1286
    %1307 = vmatpush.msra.mxu0 %v1284
    %1308 = vmatpush.msra.mxu0 %v1282
    %1309 = vmatpush.msra.mxu0 %v1280
    %1310 = vmatpush.msra.mxu0 %v1278
    %1311 = vmatpush.msra.mxu0 %v1276
    %1312 = vmatpush.msra.mxu0 %v1274
    %1313 = vmatpush.msra.mxu0 %v1272
    %1314 = vmatpush.msra.mxu0 %v1270
    %1315 = vmatpush.msra.mxu0 %v1268
    %1316 = vmatmul.f32.gmra.mxu0 %v563
    %v1317 = vpop.f32.mrf.mxu0
    %v1318 = vadd.f32 0.0, %v1317
    %1319 = vdwg.mxu0
    %1320 = vmatpush.msra.mxu0 %v1299
    %1321 = vmatpush.msra.mxu0 %v1297
    %1322 = vmatpush.msra.mxu0 %v1295
    %1323 = vmatpush.msra.mxu0 %v1293
    %1324 = vmatpush.msra.mxu0 %v1291
    %1325 = vmatpush.msra.mxu0 %v1289
    %1326 = vmatpush.msra.mxu0 %v1287
    %1327 = vmatpush.msra.mxu0 %v1285
    %1328 = vmatpush.msra.mxu0 %v1283
    %1329 = vmatpush.msra.mxu0 %v1281
    %1330 = vmatpush.msra.mxu0 %v1279
    %1331 = vmatpush.msra.mxu0 %v1277
    %1332 = vmatpush.msra.mxu0 %v1275
    %1333 = vmatpush.msra.mxu0 %v1273
    %1334 = vmatpush.msra.mxu0 %v1271
    %1335 = vmatpush.msra.mxu0 %v1269
    %1336 = vmatmul.f32.gmra.mxu0 %v563
    %v1337 = vpop.f32.mrf.mxu0
    %v1338 = vadd.f32 0.0, %v1337
    %1339 = vdwg.mxu0
    %1340 = vmatpush.msra.mxu0 %v930
    %1341 = vmatpush.msra.mxu0 %v928
    %1342 = vmatpush.msra.mxu0 %v926
    %1343 = vmatpush.msra.mxu0 %v924
    %1344 = vmatpush.msra.mxu0 %v922
    %1345 = vmatpush.msra.mxu0 %v920
    %1346 = vmatpush.msra.mxu0 %v918
    %1347 = vmatpush.msra.mxu0 %v916
    %1348 = vmatpush.msra.mxu0 %v914
    %1349 = vmatpush.msra.mxu0 %v912
    %1350 = vmatpush.msra.mxu0 %v910
    %1351 = vmatpush.msra.mxu0 %v908
    %1352 = vmatpush.msra.mxu0 %v906
    %1353 = vmatpush.msra.mxu0 %v904
    %1354 = vmatpush.msra.mxu0 %v902
    %1355 = vmatpush.msra.mxu0 %v900
    %1356 = vmatmul.f32.gmra.mxu0 %v562
    %v1357 = vpop.f32.mrf.mxu0
    %v1358 = vadd.f32 %v1318, %v1357
    %1359 = vdwg.mxu0
    %1360 = vmatpush.msra.mxu0 %v931
    %1361 = vmatpush.msra.mxu0 %v929
    %1362 = vmatpush.msra.mxu0 %v927
    %1363 = vmatpush.msra.mxu0 %v925
    %1364 = vmatpush.msra.mxu0 %v923
    %1365 = vmatpush.msra.mxu0 %v921
    %1366 = vmatpush.msra.mxu0 %v919
    %1367 = vmatpush.msra.mxu0 %v917
    %1368 = vmatpush.msra.mxu0 %v915
    %1369 = vmatpush.msra.mxu0 %v913
    %1370 = vmatpush.msra.mxu0 %v911
    %1371 = vmatpush.msra.mxu0 %v909
    %1372 = vmatpush.msra.mxu0 %v907
    %1373 = vmatpush.msra.mxu0 %v905
    %1374 = vmatpush.msra.mxu0 %v903
    %1375 = vmatpush.msra.mxu0 %v901
    %1376 = vmatmul.f32.gmra.mxu0 %v562
    %v1377 = vpop.f32.mrf.mxu0
    %v1378 = vadd.f32 %v1338, %v1377
    %1379 = vdwg.mxu0
    %v1380 = vmax.f32 %v254, %v1358
    %v1381 = vmax.f32 %v277, %v1378
    %v1382 = vsub.f32 %v254, %v1380
    %v1383 = vsub.f32 %v277, %v1381
    %v1384 = vmul.f32 %v1382, 1.442695
    %v1385 = vpow.pop %v1384
    %v1386 = vmul.f32 %v1383, 1.442695
    %v1387 = vpow.pop %v1386
    %v1388 = vsub.f32 %v1358, %v1380
    %v1389 = vsub.f32 %v1378, %v1381
    %v1390 = vmul.f32 %v1388, 1.442695
    %v1391 = vpow.pop %v1390
    %v1392 = vmul.f32 %v1389, 1.442695
    %v1393 = vpow.pop %v1392
    %v1394 = vadd.f32 %v1385, %v1391
    %v1395 = vadd.f32 %v1387, %v1393
    %v1396 = vrcp.pop %v1394
    %v1397 = vmul.f32 %v1394, %v1396
    %v1398 = vsub.f32 1.0, %v1397
    %v1399 = vmul.f32 %v1396, %v1398
    %v1400 = vadd.f32 %v1396, %v1399
    %vm1401 = vweird.f32 %v1394
    %vm1402 = vweird.f32 %v1396
    %vm1403 = vmor %vm1401, %vm1402
    %v1404 = vsel %vm1403, %v1396, %v1400
    %v1405 = vand.u32 2147483647, %v1394
    %vm1406 = vcmp.eq.f32.partialorder %v1405, 8.507059e+37
    %v1407 = vand.u32 %v1394, 2147483648
    %v1408 = vor.u32 1.1754944e-38, %v1407
    %v1409 = vsel %vm1406, %v1408, %v1404
    %v1410 = vmul.f32 1.0, %v1409
    %v1411 = vrcp.pop %v1395
    %v1412 = vmul.f32 %v1395, %v1411
    %v1413 = vsub.f32 1.0, %v1412
    %v1414 = vmul.f32 %v1411, %v1413
    %v1415 = vadd.f32 %v1411, %v1414
    %vm1416 = vweird.f32 %v1395
    %vm1417 = vweird.f32 %v1411
    %vm1418 = vmor %vm1416, %vm1417
    %v1419 = vsel %vm1418, %v1411, %v1415
    %v1420 = vand.u32 2147483647, %v1395
    %vm1421 = vcmp.eq.f32.partialorder %v1420, 8.507059e+37
    %v1422 = vand.u32 %v1395, 2147483648
    %v1423 = vor.u32 1.1754944e-38, %v1422
    %v1424 = vsel %vm1421, %v1423, %v1419
    %v1425 = vmul.f32 1.0, %v1424
    %v1426 = vmul.f32 %v1385, %v1410
    %v1427 = vmul.f32 %v1387, %v1425
    %v1428 = vmul.f32 %v1391, %v1410
    %v1429 = vmul.f32 %v1393, %v1425
    %v1430 = vperm.slane %v1426, 3
    %v1431 = vperm.slane %v1427, 3
    %v1432 = vmul.f32 %v546, %v1430
    %v1433 = vmul.f32 %v547, %v1431
    %v1434 = vperm.slane %v1428, 3
    %v1435 = vperm.slane %v1429, 3
    %v1436 = vmul.f32 %v1358, %v1434
    %v1437 = vmul.f32 %v1378, %v1435
    %v1438 = vadd.f32 %v1432, %v1436
    %v1439 = vadd.f32 %v1433, %v1437
    %1440 = vst [vmem:[%s5] sm:$0x7] %v1438
    %1441 = vst [vmem:[%s5 + $0x8] sm:$0x7] %v1439
    %v1442 = vrot.slane %v546, 5
    %v1443 = vrot.slane %v547, 5
    %1446 = vst [vmem:[%s5] sm:$0x38] %v1442
    %1447 = vst [vmem:[%s5 + $0x8] sm:$0x38] %v1443
    %1450 = vst [vmem:[#allocation1] sm:$0xff] %v1426
    %1451 = vst [vmem:[#allocation1 + $0x9] sm:$0xff] %v1427
    %s1452 = scalar_lea.vmem [#allocation1], 3
    %v1453 = vld [vmem:[%s1452] ss:$9 sm:$0xff]
    %v1455 = vlaneseq
    %vm1456 = vcmp.ge.s32.totalorder %v1455, 0
    %vm1457 = vcmp.lt.s32.totalorder %v1455, 256
    %vm1458 = vmand %vm1456, %vm1457
    %s1459 = scalar_lea.vmem %s5, 6
    %1460 = vst.msk [vmem:[%s1459] ss:$8 sm:$0x3] %vm1458, %v1453
    %1461 = vst.msk [vmem:[%s1459] ss:$8 sm:$0x0] %vm1458, %v1453
    %1464 = vst [vmem:[#allocation1] sm:$0xff] %v1428
    %1465 = vst [vmem:[#allocation1 + $0x9] sm:$0xff] %v1429
    %s1466 = scalar_lea.vmem [#allocation1], 3
    %v1467 = vld [vmem:[%s1466] ss:$9 sm:$0xff]
    %s1469 = scalar_lea.vmem %s5, 7
    %1470 = vst.msk [vmem:[%s1469] ss:$8 sm:$0x3] %vm1458, %v1467
    %1471 = vst.msk [vmem:[%s1469] ss:$8 sm:$0x0] %vm1458, %v1467
    %1472 = vst [vmem:[%s6] sm:$0x7] %v1358
    %1473 = vst [vmem:[%s6 + $0x8] sm:$0x7] %v1378
    %v1476 = vrot.slane %v562, 5
    %v1477 = vrot.slane %v563, 5
    %1480 = vst [vmem:[%s6] sm:$0x38] %v1476
    %1481 = vst [vmem:[%s6 + $0x8] sm:$0x38] %v1477
    %v1484 = vrot.slane %v449, 7
    %v1485 = vsel %vm85, %v448, %v1484
    %s1487 = scalar_lea.vmem %s6, 6
    %1488 = vst.msk [vmem:[%s1487] ss:$8 sm:$0x3] %vm1458, %v1485
    %1489 = vst.msk [vmem:[%s1487] ss:$8 sm:$0x0] %vm1458, %v1485
    %v1492 = vrot.slane %v451, 7
    %v1493 = vsel %vm85, %v450, %v1492
    %s1495 = scalar_lea.vmem %s6, 7
    %1496 = vst.msk [vmem:[%s1495] ss:$8 sm:$0x3] %vm1458, %v1493
    %1497 = vst.msk [vmem:[%s1495] ss:$8 sm:$0x0] %vm1458, %v1493
    %v1498 = vtanh.pop %v257
    %v1499 = vtanh.pop %v280
    %v1502 = vrot.slane %v1498, 4
    %v1503 = vrot.slane %v1499, 4
    %v1508 = vrot.slane %v257, 4
    %v1509 = vrot.slane %v280, 4
    %v1512 = vsel %vm549, %v1502, %v1508
    %v1513 = vsel %vm549, %v1503, %v1509
    %v1514 = vperm.slane %v538, 1
    %v1515 = vperm.slane %v539, 1
    %vm1516 = vcmp.eq.s32.totalorder %v423, %v1514
    %vm1517 = vcmp.eq.s32.totalorder %v423, %v1515
    %vm1518 = vcmp.eq.s32.totalorder %v424, %v1514
    %vm1519 = vcmp.eq.s32.totalorder %v424, %v1515
    %vm1520 = vcmp.eq.s32.totalorder %v425, %v1514
    %vm1521 = vcmp.eq.s32.totalorder %v425, %v1515
    %vm1522 = vcmp.eq.s32.totalorder %v426, %v1514
    %vm1523 = vcmp.eq.s32.totalorder %v426, %v1515
    %vm1524 = vcmp.eq.s32.totalorder %v427, %v1514
    %vm1525 = vcmp.eq.s32.totalorder %v427, %v1515
    %vm1526 = vcmp.eq.s32.totalorder %v428, %v1514
    %vm1527 = vcmp.eq.s32.totalorder %v428, %v1515
    %vm1528 = vcmp.eq.s32.totalorder %v429, %v1514
    %vm1529 = vcmp.eq.s32.totalorder %v429, %v1515
    %vm1530 = vcmp.eq.s32.totalorder %v430, %v1514
    %vm1531 = vcmp.eq.s32.totalorder %v430, %v1515
    %vm1532 = vcmp.eq.s32.totalorder %v431, %v1514
    %vm1533 = vcmp.eq.s32.totalorder %v431, %v1515
    %vm1534 = vcmp.eq.s32.totalorder %v432, %v1514
    %vm1535 = vcmp.eq.s32.totalorder %v432, %v1515
    %vm1536 = vcmp.eq.s32.totalorder %v433, %v1514
    %vm1537 = vcmp.eq.s32.totalorder %v433, %v1515
    %vm1538 = vcmp.eq.s32.totalorder %v434, %v1514
    %vm1539 = vcmp.eq.s32.totalorder %v434, %v1515
    %vm1540 = vcmp.eq.s32.totalorder %v435, %v1514
    %vm1541 = vcmp.eq.s32.totalorder %v435, %v1515
    %vm1542 = vcmp.eq.s32.totalorder %v436, %v1514
    %vm1543 = vcmp.eq.s32.totalorder %v436, %v1515
    %vm1544 = vcmp.eq.s32.totalorder %v437, %v1514
    %vm1545 = vcmp.eq.s32.totalorder %v437, %v1515
    %vm1546 = vcmp.eq.s32.totalorder %v438, %v1514
    %vm1547 = vcmp.eq.s32.totalorder %v438, %v1515
    %v1548 = vperm.slane %v506, 1
    %v1549 = vperm.slane %v507, 1
    %v1550 = vsel %vm1516, %v1548, 0.0
    %v1551 = vsel %vm1517, %v1549, 0.0
    %v1552 = vsel %vm1518, %v1548, 0.0
    %v1553 = vsel %vm1519, %v1549, 0.0
    %v1554 = vsel %vm1520, %v1548, 0.0
    %v1555 = vsel %vm1521, %v1549, 0.0
    %v1556 = vsel %vm1522, %v1548, 0.0
    %v1557 = vsel %vm1523, %v1549, 0.0
    %v1558 = vsel %vm1524, %v1548, 0.0
    %v1559 = vsel %vm1525, %v1549, 0.0
    %v1560 = vsel %vm1526, %v1548, 0.0
    %v1561 = vsel %vm1527, %v1549, 0.0
    %v1562 = vsel %vm1528, %v1548, 0.0
    %v1563 = vsel %vm1529, %v1549, 0.0
    %v1564 = vsel %vm1530, %v1548, 0.0
    %v1565 = vsel %vm1531, %v1549, 0.0
    %v1566 = vsel %vm1532, %v1548, 0.0
    %v1567 = vsel %vm1533, %v1549, 0.0
    %v1568 = vsel %vm1534, %v1548, 0.0
    %v1569 = vsel %vm1535, %v1549, 0.0
    %v1570 = vsel %vm1536, %v1548, 0.0
    %v1571 = vsel %vm1537, %v1549, 0.0
    %v1572 = vsel %vm1538, %v1548, 0.0
    %v1573 = vsel %vm1539, %v1549, 0.0
    %v1574 = vsel %vm1540, %v1548, 0.0
    %v1575 = vsel %vm1541, %v1549, 0.0
    %v1576 = vsel %vm1542, %v1548, 0.0
    %v1577 = vsel %vm1543, %v1549, 0.0
    %v1578 = vsel %vm1544, %v1548, 0.0
    %v1579 = vsel %vm1545, %v1549, 0.0
    %v1580 = vsel %vm1546, %v1548, 0.0
    %v1581 = vsel %vm1547, %v1549, 0.0
    %v1582 = vperm.slane %v540, 1
    %v1583 = vperm.slane %v541, 1
    %vm1584 = vcmp.eq.s32.totalorder %v423, %v1582
    %vm1585 = vcmp.eq.s32.totalorder %v423, %v1583
    %vm1586 = vcmp.eq.s32.totalorder %v424, %v1582
    %vm1587 = vcmp.eq.s32.totalorder %v424, %v1583
    %vm1588 = vcmp.eq.s32.totalorder %v425, %v1582
    %vm1589 = vcmp.eq.s32.totalorder %v425, %v1583
    %vm1590 = vcmp.eq.s32.totalorder %v426, %v1582
    %vm1591 = vcmp.eq.s32.totalorder %v426, %v1583
    %vm1592 = vcmp.eq.s32.totalorder %v427, %v1582
    %vm1593 = vcmp.eq.s32.totalorder %v427, %v1583
    %vm1594 = vcmp.eq.s32.totalorder %v428, %v1582
    %vm1595 = vcmp.eq.s32.totalorder %v428, %v1583
    %vm1596 = vcmp.eq.s32.totalorder %v429, %v1582
    %vm1597 = vcmp.eq.s32.totalorder %v429, %v1583
    %vm1598 = vcmp.eq.s32.totalorder %v430, %v1582
    %vm1599 = vcmp.eq.s32.totalorder %v430, %v1583
    %vm1600 = vcmp.eq.s32.totalorder %v431, %v1582
    %vm1601 = vcmp.eq.s32.totalorder %v431, %v1583
    %vm1602 = vcmp.eq.s32.totalorder %v432, %v1582
    %vm1603 = vcmp.eq.s32.totalorder %v432, %v1583
    %vm1604 = vcmp.eq.s32.totalorder %v433, %v1582
    %vm1605 = vcmp.eq.s32.totalorder %v433, %v1583
    %vm1606 = vcmp.eq.s32.totalorder %v434, %v1582
    %vm1607 = vcmp.eq.s32.totalorder %v434, %v1583
    %vm1608 = vcmp.eq.s32.totalorder %v435, %v1582
    %vm1609 = vcmp.eq.s32.totalorder %v435, %v1583
    %vm1610 = vcmp.eq.s32.totalorder %v436, %v1582
    %vm1611 = vcmp.eq.s32.totalorder %v436, %v1583
    %vm1612 = vcmp.eq.s32.totalorder %v437, %v1582
    %vm1613 = vcmp.eq.s32.totalorder %v437, %v1583
    %vm1614 = vcmp.eq.s32.totalorder %v438, %v1582
    %vm1615 = vcmp.eq.s32.totalorder %v438, %v1583
    %v1616 = vperm.slane %v518, 1
    %v1617 = vperm.slane %v519, 1
    %v1618 = vsel %vm1584, %v1616, 0.0
    %v1619 = vsel %vm1585, %v1617, 0.0
    %v1620 = vsel %vm1586, %v1616, 0.0
    %v1621 = vsel %vm1587, %v1617, 0.0
    %v1622 = vsel %vm1588, %v1616, 0.0
    %v1623 = vsel %vm1589, %v1617, 0.0
    %v1624 = vsel %vm1590, %v1616, 0.0
    %v1625 = vsel %vm1591, %v1617, 0.0
    %v1626 = vsel %vm1592, %v1616, 0.0
    %v1627 = vsel %vm1593, %v1617, 0.0
    %v1628 = vsel %vm1594, %v1616, 0.0
    %v1629 = vsel %vm1595, %v1617, 0.0
    %v1630 = vsel %vm1596, %v1616, 0.0
    %v1631 = vsel %vm1597, %v1617, 0.0
    %v1632 = vsel %vm1598, %v1616, 0.0
    %v1633 = vsel %vm1599, %v1617, 0.0
    %v1634 = vsel %vm1600, %v1616, 0.0
    %v1635 = vsel %vm1601, %v1617, 0.0
    %v1636 = vsel %vm1602, %v1616, 0.0
    %v1637 = vsel %vm1603, %v1617, 0.0
    %v1638 = vsel %vm1604, %v1616, 0.0
    %v1639 = vsel %vm1605, %v1617, 0.0
    %v1640 = vsel %vm1606, %v1616, 0.0
    %v1641 = vsel %vm1607, %v1617, 0.0
    %v1642 = vsel %vm1608, %v1616, 0.0
    %v1643 = vsel %vm1609, %v1617, 0.0
    %v1644 = vsel %vm1610, %v1616, 0.0
    %v1645 = vsel %vm1611, %v1617, 0.0
    %v1646 = vsel %vm1612, %v1616, 0.0
    %v1647 = vsel %vm1613, %v1617, 0.0
    %v1648 = vsel %vm1614, %v1616, 0.0
    %v1649 = vsel %vm1615, %v1617, 0.0
    %v1650 = vadd.f32 %v1550, %v1618
    %v1651 = vadd.f32 %v1551, %v1619
    %v1652 = vadd.f32 %v1552, %v1620
    %v1653 = vadd.f32 %v1553, %v1621
    %v1654 = vadd.f32 %v1554, %v1622
    %v1655 = vadd.f32 %v1555, %v1623
    %v1656 = vadd.f32 %v1556, %v1624
    %v1657 = vadd.f32 %v1557, %v1625
    %v1658 = vadd.f32 %v1558, %v1626
    %v1659 = vadd.f32 %v1559, %v1627
    %v1660 = vadd.f32 %v1560, %v1628
    %v1661 = vadd.f32 %v1561, %v1629
    %v1662 = vadd.f32 %v1562, %v1630
    %v1663 = vadd.f32 %v1563, %v1631
    %v1664 = vadd.f32 %v1564, %v1632
    %v1665 = vadd.f32 %v1565, %v1633
    %v1666 = vadd.f32 %v1566, %v1634
    %v1667 = vadd.f32 %v1567, %v1635
    %v1668 = vadd.f32 %v1568, %v1636
    %v1669 = vadd.f32 %v1569, %v1637
    %v1670 = vadd.f32 %v1570, %v1638
    %v1671 = vadd.f32 %v1571, %v1639
    %v1672 = vadd.f32 %v1572, %v1640
    %v1673 = vadd.f32 %v1573, %v1641
    %v1674 = vadd.f32 %v1574, %v1642
    %v1675 = vadd.f32 %v1575, %v1643
    %v1676 = vadd.f32 %v1576, %v1644
    %v1677 = vadd.f32 %v1577, %v1645
    %v1678 = vadd.f32 %v1578, %v1646
    %v1679 = vadd.f32 %v1579, %v1647
    %v1680 = vadd.f32 %v1580, %v1648
    %v1681 = vadd.f32 %v1581, %v1649
    %v1682 = vperm.slane %v542, 1
    %v1683 = vperm.slane %v543, 1
    %vm1684 = vcmp.eq.s32.totalorder %v423, %v1682
    %vm1685 = vcmp.eq.s32.totalorder %v423, %v1683
    %vm1686 = vcmp.eq.s32.totalorder %v424, %v1682
    %vm1687 = vcmp.eq.s32.totalorder %v424, %v1683
    %vm1688 = vcmp.eq.s32.totalorder %v425, %v1682
    %vm1689 = vcmp.eq.s32.totalorder %v425, %v1683
    %vm1690 = vcmp.eq.s32.totalorder %v426, %v1682
    %vm1691 = vcmp.eq.s32.totalorder %v426, %v1683
    %vm1692 = vcmp.eq.s32.totalorder %v427, %v1682
    %vm1693 = vcmp.eq.s32.totalorder %v427, %v1683
    %vm1694 = vcmp.eq.s32.totalorder %v428, %v1682
    %vm1695 = vcmp.eq.s32.totalorder %v428, %v1683
    %vm1696 = vcmp.eq.s32.totalorder %v429, %v1682
    %vm1697 = vcmp.eq.s32.totalorder %v429, %v1683
    %vm1698 = vcmp.eq.s32.totalorder %v430, %v1682
    %vm1699 = vcmp.eq.s32.totalorder %v430, %v1683
    %vm1700 = vcmp.eq.s32.totalorder %v431, %v1682
    %vm1701 = vcmp.eq.s32.totalorder %v431, %v1683
    %vm1702 = vcmp.eq.s32.totalorder %v432, %v1682
    %vm1703 = vcmp.eq.s32.totalorder %v432, %v1683
    %vm1704 = vcmp.eq.s32.totalorder %v433, %v1682
    %vm1705 = vcmp.eq.s32.totalorder %v433, %v1683
    %vm1706 = vcmp.eq.s32.totalorder %v434, %v1682
    %vm1707 = vcmp.eq.s32.totalorder %v434, %v1683
    %vm1708 = vcmp.eq.s32.totalorder %v435, %v1682
    %vm1709 = vcmp.eq.s32.totalorder %v435, %v1683
    %vm1710 = vcmp.eq.s32.totalorder %v436, %v1682
    %vm1711 = vcmp.eq.s32.totalorder %v436, %v1683
    %vm1712 = vcmp.eq.s32.totalorder %v437, %v1682
    %vm1713 = vcmp.eq.s32.totalorder %v437, %v1683
    %vm1714 = vcmp.eq.s32.totalorder %v438, %v1682
    %vm1715 = vcmp.eq.s32.totalorder %v438, %v1683
    %v1716 = vperm.slane %v528, 1
    %v1717 = vperm.slane %v529, 1
    %v1718 = vsel %vm1684, %v1716, 0.0
    %v1719 = vsel %vm1685, %v1717, 0.0
    %v1720 = vsel %vm1686, %v1716, 0.0
    %v1721 = vsel %vm1687, %v1717, 0.0
    %v1722 = vsel %vm1688, %v1716, 0.0
    %v1723 = vsel %vm1689, %v1717, 0.0
    %v1724 = vsel %vm1690, %v1716, 0.0
    %v1725 = vsel %vm1691, %v1717, 0.0
    %v1726 = vsel %vm1692, %v1716, 0.0
    %v1727 = vsel %vm1693, %v1717, 0.0
    %v1728 = vsel %vm1694, %v1716, 0.0
    %v1729 = vsel %vm1695, %v1717, 0.0
    %v1730 = vsel %vm1696, %v1716, 0.0
    %v1731 = vsel %vm1697, %v1717, 0.0
    %v1732 = vsel %vm1698, %v1716, 0.0
    %v1733 = vsel %vm1699, %v1717, 0.0
    %v1734 = vsel %vm1700, %v1716, 0.0
    %v1735 = vsel %vm1701, %v1717, 0.0
    %v1736 = vsel %vm1702, %v1716, 0.0
    %v1737 = vsel %vm1703, %v1717, 0.0
    %v1738 = vsel %vm1704, %v1716, 0.0
    %v1739 = vsel %vm1705, %v1717, 0.0
    %v1740 = vsel %vm1706, %v1716, 0.0
    %v1741 = vsel %vm1707, %v1717, 0.0
    %v1742 = vsel %vm1708, %v1716, 0.0
    %v1743 = vsel %vm1709, %v1717, 0.0
    %v1744 = vsel %vm1710, %v1716, 0.0
    %v1745 = vsel %vm1711, %v1717, 0.0
    %v1746 = vsel %vm1712, %v1716, 0.0
    %v1747 = vsel %vm1713, %v1717, 0.0
    %v1748 = vsel %vm1714, %v1716, 0.0
    %v1749 = vsel %vm1715, %v1717, 0.0
    %v1750 = vadd.f32 %v1650, %v1718
    %v1751 = vadd.f32 %v1651, %v1719
    %v1752 = vadd.f32 %v1652, %v1720
    %v1753 = vadd.f32 %v1653, %v1721
    %v1754 = vadd.f32 %v1654, %v1722
    %v1755 = vadd.f32 %v1655, %v1723
    %v1756 = vadd.f32 %v1656, %v1724
    %v1757 = vadd.f32 %v1657, %v1725
    %v1758 = vadd.f32 %v1658, %v1726
    %v1759 = vadd.f32 %v1659, %v1727
    %v1760 = vadd.f32 %v1660, %v1728
    %v1761 = vadd.f32 %v1661, %v1729
    %v1762 = vadd.f32 %v1662, %v1730
    %v1763 = vadd.f32 %v1663, %v1731
    %v1764 = vadd.f32 %v1664, %v1732
    %v1765 = vadd.f32 %v1665, %v1733
    %v1766 = vadd.f32 %v1666, %v1734
    %v1767 = vadd.f32 %v1667, %v1735
    %v1768 = vadd.f32 %v1668, %v1736
    %v1769 = vadd.f32 %v1669, %v1737
    %v1770 = vadd.f32 %v1670, %v1738
    %v1771 = vadd.f32 %v1671, %v1739
    %v1772 = vadd.f32 %v1672, %v1740
    %v1773 = vadd.f32 %v1673, %v1741
    %v1774 = vadd.f32 %v1674, %v1742
    %v1775 = vadd.f32 %v1675, %v1743
    %v1776 = vadd.f32 %v1676, %v1744
    %v1777 = vadd.f32 %v1677, %v1745
    %v1778 = vadd.f32 %v1678, %v1746
    %v1779 = vadd.f32 %v1679, %v1747
    %v1780 = vadd.f32 %v1680, %v1748
    %v1781 = vadd.f32 %v1681, %v1749
    %v1782 = vperm.slane %v544, 1
    %v1783 = vperm.slane %v545, 1
    %vm1784 = vcmp.eq.s32.totalorder %v423, %v1782
    %vm1785 = vcmp.eq.s32.totalorder %v423, %v1783
    %vm1786 = vcmp.eq.s32.totalorder %v424, %v1782
    %vm1787 = vcmp.eq.s32.totalorder %v424, %v1783
    %vm1788 = vcmp.eq.s32.totalorder %v425, %v1782
    %vm1789 = vcmp.eq.s32.totalorder %v425, %v1783
    %vm1790 = vcmp.eq.s32.totalorder %v426, %v1782
    %vm1791 = vcmp.eq.s32.totalorder %v426, %v1783
    %vm1792 = vcmp.eq.s32.totalorder %v427, %v1782
    %vm1793 = vcmp.eq.s32.totalorder %v427, %v1783
    %vm1794 = vcmp.eq.s32.totalorder %v428, %v1782
    %vm1795 = vcmp.eq.s32.totalorder %v428, %v1783
    %vm1796 = vcmp.eq.s32.totalorder %v429, %v1782
    %vm1797 = vcmp.eq.s32.totalorder %v429, %v1783
    %vm1798 = vcmp.eq.s32.totalorder %v430, %v1782
    %vm1799 = vcmp.eq.s32.totalorder %v430, %v1783
    %vm1800 = vcmp.eq.s32.totalorder %v431, %v1782
    %vm1801 = vcmp.eq.s32.totalorder %v431, %v1783
    %vm1802 = vcmp.eq.s32.totalorder %v432, %v1782
    %vm1803 = vcmp.eq.s32.totalorder %v432, %v1783
    %vm1804 = vcmp.eq.s32.totalorder %v433, %v1782
    %vm1805 = vcmp.eq.s32.totalorder %v433, %v1783
    %vm1806 = vcmp.eq.s32.totalorder %v434, %v1782
    %vm1807 = vcmp.eq.s32.totalorder %v434, %v1783
    %vm1808 = vcmp.eq.s32.totalorder %v435, %v1782
    %vm1809 = vcmp.eq.s32.totalorder %v435, %v1783
    %vm1810 = vcmp.eq.s32.totalorder %v436, %v1782
    %vm1811 = vcmp.eq.s32.totalorder %v436, %v1783
    %vm1812 = vcmp.eq.s32.totalorder %v437, %v1782
    %vm1813 = vcmp.eq.s32.totalorder %v437, %v1783
    %vm1814 = vcmp.eq.s32.totalorder %v438, %v1782
    %vm1815 = vcmp.eq.s32.totalorder %v438, %v1783
    %v1816 = vperm.slane %v534, 1
    %v1817 = vperm.slane %v535, 1
    %v1818 = vsel %vm1784, %v1816, 0.0
    %v1819 = vsel %vm1785, %v1817, 0.0
    %v1820 = vsel %vm1786, %v1816, 0.0
    %v1821 = vsel %vm1787, %v1817, 0.0
    %v1822 = vsel %vm1788, %v1816, 0.0
    %v1823 = vsel %vm1789, %v1817, 0.0
    %v1824 = vsel %vm1790, %v1816, 0.0
    %v1825 = vsel %vm1791, %v1817, 0.0
    %v1826 = vsel %vm1792, %v1816, 0.0
    %v1827 = vsel %vm1793, %v1817, 0.0
    %v1828 = vsel %vm1794, %v1816, 0.0
    %v1829 = vsel %vm1795, %v1817, 0.0
    %v1830 = vsel %vm1796, %v1816, 0.0
    %v1831 = vsel %vm1797, %v1817, 0.0
    %v1832 = vsel %vm1798, %v1816, 0.0
    %v1833 = vsel %vm1799, %v1817, 0.0
    %v1834 = vsel %vm1800, %v1816, 0.0
    %v1835 = vsel %vm1801, %v1817, 0.0
    %v1836 = vsel %vm1802, %v1816, 0.0
    %v1837 = vsel %vm1803, %v1817, 0.0
    %v1838 = vsel %vm1804, %v1816, 0.0
    %v1839 = vsel %vm1805, %v1817, 0.0
    %v1840 = vsel %vm1806, %v1816, 0.0
    %v1841 = vsel %vm1807, %v1817, 0.0
    %v1842 = vsel %vm1808, %v1816, 0.0
    %v1843 = vsel %vm1809, %v1817, 0.0
    %v1844 = vsel %vm1810, %v1816, 0.0
    %v1845 = vsel %vm1811, %v1817, 0.0
    %v1846 = vsel %vm1812, %v1816, 0.0
    %v1847 = vsel %vm1813, %v1817, 0.0
    %v1848 = vsel %vm1814, %v1816, 0.0
    %v1849 = vsel %vm1815, %v1817, 0.0
    %v1850 = vadd.f32 %v1750, %v1818
    %v1851 = vadd.f32 %v1751, %v1819
    %v1852 = vadd.f32 %v1752, %v1820
    %v1853 = vadd.f32 %v1753, %v1821
    %v1854 = vadd.f32 %v1754, %v1822
    %v1855 = vadd.f32 %v1755, %v1823
    %v1856 = vadd.f32 %v1756, %v1824
    %v1857 = vadd.f32 %v1757, %v1825
    %v1858 = vadd.f32 %v1758, %v1826
    %v1859 = vadd.f32 %v1759, %v1827
    %v1860 = vadd.f32 %v1760, %v1828
    %v1861 = vadd.f32 %v1761, %v1829
    %v1862 = vadd.f32 %v1762, %v1830
    %v1863 = vadd.f32 %v1763, %v1831
    %v1864 = vadd.f32 %v1764, %v1832
    %v1865 = vadd.f32 %v1765, %v1833
    %v1866 = vadd.f32 %v1766, %v1834
    %v1867 = vadd.f32 %v1767, %v1835
    %v1868 = vadd.f32 %v1768, %v1836
    %v1869 = vadd.f32 %v1769, %v1837
    %v1870 = vadd.f32 %v1770, %v1838
    %v1871 = vadd.f32 %v1771, %v1839
    %v1872 = vadd.f32 %v1772, %v1840
    %v1873 = vadd.f32 %v1773, %v1841
    %v1874 = vadd.f32 %v1774, %v1842
    %v1875 = vadd.f32 %v1775, %v1843
    %v1876 = vadd.f32 %v1776, %v1844
    %v1877 = vadd.f32 %v1777, %v1845
    %v1878 = vadd.f32 %v1778, %v1846
    %v1879 = vadd.f32 %v1779, %v1847
    %v1880 = vadd.f32 %v1780, %v1848
    %v1881 = vadd.f32 %v1781, %v1849
    %v1882 = vperm.slane %v932, 1
    %v1883 = vperm.slane %v933, 1
    %vm1884 = vcmp.eq.s32.totalorder %v423, %v1882
    %vm1885 = vcmp.eq.s32.totalorder %v423, %v1883
    %vm1886 = vcmp.eq.s32.totalorder %v424, %v1882
    %vm1887 = vcmp.eq.s32.totalorder %v424, %v1883
    %vm1888 = vcmp.eq.s32.totalorder %v425, %v1882
    %vm1889 = vcmp.eq.s32.totalorder %v425, %v1883
    %vm1890 = vcmp.eq.s32.totalorder %v426, %v1882
    %vm1891 = vcmp.eq.s32.totalorder %v426, %v1883
    %vm1892 = vcmp.eq.s32.totalorder %v427, %v1882
    %vm1893 = vcmp.eq.s32.totalorder %v427, %v1883
    %vm1894 = vcmp.eq.s32.totalorder %v428, %v1882
    %vm1895 = vcmp.eq.s32.totalorder %v428, %v1883
    %vm1896 = vcmp.eq.s32.totalorder %v429, %v1882
    %vm1897 = vcmp.eq.s32.totalorder %v429, %v1883
    %vm1898 = vcmp.eq.s32.totalorder %v430, %v1882
    %vm1899 = vcmp.eq.s32.totalorder %v430, %v1883
    %vm1900 = vcmp.eq.s32.totalorder %v431, %v1882
    %vm1901 = vcmp.eq.s32.totalorder %v431, %v1883
    %vm1902 = vcmp.eq.s32.totalorder %v432, %v1882
    %vm1903 = vcmp.eq.s32.totalorder %v432, %v1883
    %vm1904 = vcmp.eq.s32.totalorder %v433, %v1882
    %vm1905 = vcmp.eq.s32.totalorder %v433, %v1883
    %vm1906 = vcmp.eq.s32.totalorder %v434, %v1882
    %vm1907 = vcmp.eq.s32.totalorder %v434, %v1883
    %vm1908 = vcmp.eq.s32.totalorder %v435, %v1882
    %vm1909 = vcmp.eq.s32.totalorder %v435, %v1883
    %vm1910 = vcmp.eq.s32.totalorder %v436, %v1882
    %vm1911 = vcmp.eq.s32.totalorder %v436, %v1883
    %vm1912 = vcmp.eq.s32.totalorder %v437, %v1882
    %vm1913 = vcmp.eq.s32.totalorder %v437, %v1883
    %vm1914 = vcmp.eq.s32.totalorder %v438, %v1882
    %vm1915 = vcmp.eq.s32.totalorder %v438, %v1883
    %v1916 = vsel %vm1884, %v1548, 0.0
    %v1917 = vsel %vm1885, %v1549, 0.0
    %v1918 = vsel %vm1886, %v1548, 0.0
    %v1919 = vsel %vm1887, %v1549, 0.0
    %v1920 = vsel %vm1888, %v1548, 0.0
    %v1921 = vsel %vm1889, %v1549, 0.0
    %v1922 = vsel %vm1890, %v1548, 0.0
    %v1923 = vsel %vm1891, %v1549, 0.0
    %v1924 = vsel %vm1892, %v1548, 0.0
    %v1925 = vsel %vm1893, %v1549, 0.0
    %v1926 = vsel %vm1894, %v1548, 0.0
    %v1927 = vsel %vm1895, %v1549, 0.0
    %v1928 = vsel %vm1896, %v1548, 0.0
    %v1929 = vsel %vm1897, %v1549, 0.0
    %v1930 = vsel %vm1898, %v1548, 0.0
    %v1931 = vsel %vm1899, %v1549, 0.0
    %v1932 = vsel %vm1900, %v1548, 0.0
    %v1933 = vsel %vm1901, %v1549, 0.0
    %v1934 = vsel %vm1902, %v1548, 0.0
    %v1935 = vsel %vm1903, %v1549, 0.0
    %v1936 = vsel %vm1904, %v1548, 0.0
    %v1937 = vsel %vm1905, %v1549, 0.0
    %v1938 = vsel %vm1906, %v1548, 0.0
    %v1939 = vsel %vm1907, %v1549, 0.0
    %v1940 = vsel %vm1908, %v1548, 0.0
    %v1941 = vsel %vm1909, %v1549, 0.0
    %v1942 = vsel %vm1910, %v1548, 0.0
    %v1943 = vsel %vm1911, %v1549, 0.0
    %v1944 = vsel %vm1912, %v1548, 0.0
    %v1945 = vsel %vm1913, %v1549, 0.0
    %v1946 = vsel %vm1914, %v1548, 0.0
    %v1947 = vsel %vm1915, %v1549, 0.0
    %v1948 = vperm.slane %v1000, 1
    %v1949 = vperm.slane %v1001, 1
    %vm1950 = vcmp.eq.s32.totalorder %v423, %v1948
    %vm1951 = vcmp.eq.s32.totalorder %v423, %v1949
    %vm1952 = vcmp.eq.s32.totalorder %v424, %v1948
    %vm1953 = vcmp.eq.s32.totalorder %v424, %v1949
    %vm1954 = vcmp.eq.s32.totalorder %v425, %v1948
    %vm1955 = vcmp.eq.s32.totalorder %v425, %v1949
    %vm1956 = vcmp.eq.s32.totalorder %v426, %v1948
    %vm1957 = vcmp.eq.s32.totalorder %v426, %v1949
    %vm1958 = vcmp.eq.s32.totalorder %v427, %v1948
    %vm1959 = vcmp.eq.s32.totalorder %v427, %v1949
    %vm1960 = vcmp.eq.s32.totalorder %v428, %v1948
    %vm1961 = vcmp.eq.s32.totalorder %v428, %v1949
    %vm1962 = vcmp.eq.s32.totalorder %v429, %v1948
    %vm1963 = vcmp.eq.s32.totalorder %v429, %v1949
    %vm1964 = vcmp.eq.s32.totalorder %v430, %v1948
    %vm1965 = vcmp.eq.s32.totalorder %v430, %v1949
    %vm1966 = vcmp.eq.s32.totalorder %v431, %v1948
    %vm1967 = vcmp.eq.s32.totalorder %v431, %v1949
    %vm1968 = vcmp.eq.s32.totalorder %v432, %v1948
    %vm1969 = vcmp.eq.s32.totalorder %v432, %v1949
    %vm1970 = vcmp.eq.s32.totalorder %v433, %v1948
    %vm1971 = vcmp.eq.s32.totalorder %v433, %v1949
    %vm1972 = vcmp.eq.s32.totalorder %v434, %v1948
    %vm1973 = vcmp.eq.s32.totalorder %v434, %v1949
    %vm1974 = vcmp.eq.s32.totalorder %v435, %v1948
    %vm1975 = vcmp.eq.s32.totalorder %v435, %v1949
    %vm1976 = vcmp.eq.s32.totalorder %v436, %v1948
    %vm1977 = vcmp.eq.s32.totalorder %v436, %v1949
    %vm1978 = vcmp.eq.s32.totalorder %v437, %v1948
    %vm1979 = vcmp.eq.s32.totalorder %v437, %v1949
    %vm1980 = vcmp.eq.s32.totalorder %v438, %v1948
    %vm1981 = vcmp.eq.s32.totalorder %v438, %v1949
    %v1982 = vsel %vm1950, %v1616, 0.0
    %v1983 = vsel %vm1951, %v1617, 0.0
    %v1984 = vsel %vm1952, %v1616, 0.0
    %v1985 = vsel %vm1953, %v1617, 0.0
    %v1986 = vsel %vm1954, %v1616, 0.0
    %v1987 = vsel %vm1955, %v1617, 0.0
    %v1988 = vsel %vm1956, %v1616, 0.0
    %v1989 = vsel %vm1957, %v1617, 0.0
    %v1990 = vsel %vm1958, %v1616, 0.0
    %v1991 = vsel %vm1959, %v1617, 0.0
    %v1992 = vsel %vm1960, %v1616, 0.0
    %v1993 = vsel %vm1961, %v1617, 0.0
    %v1994 = vsel %vm1962, %v1616, 0.0
    %v1995 = vsel %vm1963, %v1617, 0.0
    %v1996 = vsel %vm1964, %v1616, 0.0
    %v1997 = vsel %vm1965, %v1617, 0.0
    %v1998 = vsel %vm1966, %v1616, 0.0
    %v1999 = vsel %vm1967, %v1617, 0.0
    %v2000 = vsel %vm1968, %v1616, 0.0
    %v2001 = vsel %vm1969, %v1617, 0.0
    %v2002 = vsel %vm1970, %v1616, 0.0
    %v2003 = vsel %vm1971, %v1617, 0.0
    %v2004 = vsel %vm1972, %v1616, 0.0
    %v2005 = vsel %vm1973, %v1617, 0.0
    %v2006 = vsel %vm1974, %v1616, 0.0
    %v2007 = vsel %vm1975, %v1617, 0.0
    %v2008 = vsel %vm1976, %v1616, 0.0
    %v2009 = vsel %vm1977, %v1617, 0.0
    %v2010 = vsel %vm1978, %v1616, 0.0
    %v2011 = vsel %vm1979, %v1617, 0.0
    %v2012 = vsel %vm1980, %v1616, 0.0
    %v2013 = vsel %vm1981, %v1617, 0.0
    %v2014 = vadd.f32 %v1916, %v1982
    %v2015 = vadd.f32 %v1917, %v1983
    %v2016 = vadd.f32 %v1918, %v1984
    %v2017 = vadd.f32 %v1919, %v1985
    %v2018 = vadd.f32 %v1920, %v1986
    %v2019 = vadd.f32 %v1921, %v1987
    %v2020 = vadd.f32 %v1922, %v1988
    %v2021 = vadd.f32 %v1923, %v1989
    %v2022 = vadd.f32 %v1924, %v1990
    %v2023 = vadd.f32 %v1925, %v1991
    %v2024 = vadd.f32 %v1926, %v1992
    %v2025 = vadd.f32 %v1927, %v1993
    %v2026 = vadd.f32 %v1928, %v1994
    %v2027 = vadd.f32 %v1929, %v1995
    %v2028 = vadd.f32 %v1930, %v1996
    %v2029 = vadd.f32 %v1931, %v1997
    %v2030 = vadd.f32 %v1932, %v1998
    %v2031 = vadd.f32 %v1933, %v1999
    %v2032 = vadd.f32 %v1934, %v2000
    %v2033 = vadd.f32 %v1935, %v2001
    %v2034 = vadd.f32 %v1936, %v2002
    %v2035 = vadd.f32 %v1937, %v2003
    %v2036 = vadd.f32 %v1938, %v2004
    %v2037 = vadd.f32 %v1939, %v2005
    %v2038 = vadd.f32 %v1940, %v2006
    %v2039 = vadd.f32 %v1941, %v2007
    %v2040 = vadd.f32 %v1942, %v2008
    %v2041 = vadd.f32 %v1943, %v2009
    %v2042 = vadd.f32 %v1944, %v2010
    %v2043 = vadd.f32 %v1945, %v2011
    %v2044 = vadd.f32 %v1946, %v2012
    %v2045 = vadd.f32 %v1947, %v2013
    %v2046 = vperm.slane %v1100, 1
    %v2047 = vperm.slane %v1101, 1
    %vm2048 = vcmp.eq.s32.totalorder %v423, %v2046
    %vm2049 = vcmp.eq.s32.totalorder %v423, %v2047
    %vm2050 = vcmp.eq.s32.totalorder %v424, %v2046
    %vm2051 = vcmp.eq.s32.totalorder %v424, %v2047
    %vm2052 = vcmp.eq.s32.totalorder %v425, %v2046
    %vm2053 = vcmp.eq.s32.totalorder %v425, %v2047
    %vm2054 = vcmp.eq.s32.totalorder %v426, %v2046
    %vm2055 = vcmp.eq.s32.totalorder %v426, %v2047
    %vm2056 = vcmp.eq.s32.totalorder %v427, %v2046
    %vm2057 = vcmp.eq.s32.totalorder %v427, %v2047
    %vm2058 = vcmp.eq.s32.totalorder %v428, %v2046
    %vm2059 = vcmp.eq.s32.totalorder %v428, %v2047
    %vm2060 = vcmp.eq.s32.totalorder %v429, %v2046
    %vm2061 = vcmp.eq.s32.totalorder %v429, %v2047
    %vm2062 = vcmp.eq.s32.totalorder %v430, %v2046
    %vm2063 = vcmp.eq.s32.totalorder %v430, %v2047
    %vm2064 = vcmp.eq.s32.totalorder %v431, %v2046
    %vm2065 = vcmp.eq.s32.totalorder %v431, %v2047
    %vm2066 = vcmp.eq.s32.totalorder %v432, %v2046
    %vm2067 = vcmp.eq.s32.totalorder %v432, %v2047
    %vm2068 = vcmp.eq.s32.totalorder %v433, %v2046
    %vm2069 = vcmp.eq.s32.totalorder %v433, %v2047
    %vm2070 = vcmp.eq.s32.totalorder %v434, %v2046
    %vm2071 = vcmp.eq.s32.totalorder %v434, %v2047
    %vm2072 = vcmp.eq.s32.totalorder %v435, %v2046
    %vm2073 = vcmp.eq.s32.totalorder %v435, %v2047
    %vm2074 = vcmp.eq.s32.totalorder %v436, %v2046
    %vm2075 = vcmp.eq.s32.totalorder %v436, %v2047
    %vm2076 = vcmp.eq.s32.totalorder %v437, %v2046
    %vm2077 = vcmp.eq.s32.totalorder %v437, %v2047
    %vm2078 = vcmp.eq.s32.totalorder %v438, %v2046
    %vm2079 = vcmp.eq.s32.totalorder %v438, %v2047
    %v2080 = vsel %vm2048, %v1716, 0.0
    %v2081 = vsel %vm2049, %v1717, 0.0
    %v2082 = vsel %vm2050, %v1716, 0.0
    %v2083 = vsel %vm2051, %v1717, 0.0
    %v2084 = vsel %vm2052, %v1716, 0.0
    %v2085 = vsel %vm2053, %v1717, 0.0
    %v2086 = vsel %vm2054, %v1716, 0.0
    %v2087 = vsel %vm2055, %v1717, 0.0
    %v2088 = vsel %vm2056, %v1716, 0.0
    %v2089 = vsel %vm2057, %v1717, 0.0
    %v2090 = vsel %vm2058, %v1716, 0.0
    %v2091 = vsel %vm2059, %v1717, 0.0
    %v2092 = vsel %vm2060, %v1716, 0.0
    %v2093 = vsel %vm2061, %v1717, 0.0
    %v2094 = vsel %vm2062, %v1716, 0.0
    %v2095 = vsel %vm2063, %v1717, 0.0
    %v2096 = vsel %vm2064, %v1716, 0.0
    %v2097 = vsel %vm2065, %v1717, 0.0
    %v2098 = vsel %vm2066, %v1716, 0.0
    %v2099 = vsel %vm2067, %v1717, 0.0
    %v2100 = vsel %vm2068, %v1716, 0.0
    %v2101 = vsel %vm2069, %v1717, 0.0
    %v2102 = vsel %vm2070, %v1716, 0.0
    %v2103 = vsel %vm2071, %v1717, 0.0
    %v2104 = vsel %vm2072, %v1716, 0.0
    %v2105 = vsel %vm2073, %v1717, 0.0
    %v2106 = vsel %vm2074, %v1716, 0.0
    %v2107 = vsel %vm2075, %v1717, 0.0
    %v2108 = vsel %vm2076, %v1716, 0.0
    %v2109 = vsel %vm2077, %v1717, 0.0
    %v2110 = vsel %vm2078, %v1716, 0.0
    %v2111 = vsel %vm2079, %v1717, 0.0
    %v2112 = vadd.f32 %v2014, %v2080
    %v2113 = vadd.f32 %v2015, %v2081
    %v2114 = vadd.f32 %v2016, %v2082
    %v2115 = vadd.f32 %v2017, %v2083
    %v2116 = vadd.f32 %v2018, %v2084
    %v2117 = vadd.f32 %v2019, %v2085
    %v2118 = vadd.f32 %v2020, %v2086
    %v2119 = vadd.f32 %v2021, %v2087
    %v2120 = vadd.f32 %v2022, %v2088
    %v2121 = vadd.f32 %v2023, %v2089
    %v2122 = vadd.f32 %v2024, %v2090
    %v2123 = vadd.f32 %v2025, %v2091
    %v2124 = vadd.f32 %v2026, %v2092
    %v2125 = vadd.f32 %v2027, %v2093
    %v2126 = vadd.f32 %v2028, %v2094
    %v2127 = vadd.f32 %v2029, %v2095
    %v2128 = vadd.f32 %v2030, %v2096
    %v2129 = vadd.f32 %v2031, %v2097
    %v2130 = vadd.f32 %v2032, %v2098
    %v2131 = vadd.f32 %v2033, %v2099
    %v2132 = vadd.f32 %v2034, %v2100
    %v2133 = vadd.f32 %v2035, %v2101
    %v2134 = vadd.f32 %v2036, %v2102
    %v2135 = vadd.f32 %v2037, %v2103
    %v2136 = vadd.f32 %v2038, %v2104
    %v2137 = vadd.f32 %v2039, %v2105
    %v2138 = vadd.f32 %v2040, %v2106
    %v2139 = vadd.f32 %v2041, %v2107
    %v2140 = vadd.f32 %v2042, %v2108
    %v2141 = vadd.f32 %v2043, %v2109
    %v2142 = vadd.f32 %v2044, %v2110
    %v2143 = vadd.f32 %v2045, %v2111
    %v2144 = vperm.slane %v1200, 1
    %v2145 = vperm.slane %v1201, 1
    %vm2146 = vcmp.eq.s32.totalorder %v423, %v2144
    %vm2147 = vcmp.eq.s32.totalorder %v423, %v2145
    %vm2148 = vcmp.eq.s32.totalorder %v424, %v2144
    %vm2149 = vcmp.eq.s32.totalorder %v424, %v2145
    %vm2150 = vcmp.eq.s32.totalorder %v425, %v2144
    %vm2151 = vcmp.eq.s32.totalorder %v425, %v2145
    %vm2152 = vcmp.eq.s32.totalorder %v426, %v2144
    %vm2153 = vcmp.eq.s32.totalorder %v426, %v2145
    %vm2154 = vcmp.eq.s32.totalorder %v427, %v2144
    %vm2155 = vcmp.eq.s32.totalorder %v427, %v2145
    %vm2156 = vcmp.eq.s32.totalorder %v428, %v2144
    %vm2157 = vcmp.eq.s32.totalorder %v428, %v2145
    %vm2158 = vcmp.eq.s32.totalorder %v429, %v2144
    %vm2159 = vcmp.eq.s32.totalorder %v429, %v2145
    %vm2160 = vcmp.eq.s32.totalorder %v430, %v2144
    %vm2161 = vcmp.eq.s32.totalorder %v430, %v2145
    %vm2162 = vcmp.eq.s32.totalorder %v431, %v2144
    %vm2163 = vcmp.eq.s32.totalorder %v431, %v2145
    %vm2164 = vcmp.eq.s32.totalorder %v432, %v2144
    %vm2165 = vcmp.eq.s32.totalorder %v432, %v2145
    %vm2166 = vcmp.eq.s32.totalorder %v433, %v2144
    %vm2167 = vcmp.eq.s32.totalorder %v433, %v2145
    %vm2168 = vcmp.eq.s32.totalorder %v434, %v2144
    %vm2169 = vcmp.eq.s32.totalorder %v434, %v2145
    %vm2170 = vcmp.eq.s32.totalorder %v435, %v2144
    %vm2171 = vcmp.eq.s32.totalorder %v435, %v2145
    %vm2172 = vcmp.eq.s32.totalorder %v436, %v2144
    %vm2173 = vcmp.eq.s32.totalorder %v436, %v2145
    %vm2174 = vcmp.eq.s32.totalorder %v437, %v2144
    %vm2175 = vcmp.eq.s32.totalorder %v437, %v2145
    %vm2176 = vcmp.eq.s32.totalorder %v438, %v2144
    %vm2177 = vcmp.eq.s32.totalorder %v438, %v2145
    %v2178 = vsel %vm2146, %v1816, 0.0
    %v2179 = vsel %vm2147, %v1817, 0.0
    %v2180 = vsel %vm2148, %v1816, 0.0
    %v2181 = vsel %vm2149, %v1817, 0.0
    %v2182 = vsel %vm2150, %v1816, 0.0
    %v2183 = vsel %vm2151, %v1817, 0.0
    %v2184 = vsel %vm2152, %v1816, 0.0
    %v2185 = vsel %vm2153, %v1817, 0.0
    %v2186 = vsel %vm2154, %v1816, 0.0
    %v2187 = vsel %vm2155, %v1817, 0.0
    %v2188 = vsel %vm2156, %v1816, 0.0
    %v2189 = vsel %vm2157, %v1817, 0.0
    %v2190 = vsel %vm2158, %v1816, 0.0
    %v2191 = vsel %vm2159, %v1817, 0.0
    %v2192 = vsel %vm2160, %v1816, 0.0
    %v2193 = vsel %vm2161, %v1817, 0.0
    %v2194 = vsel %vm2162, %v1816, 0.0
    %v2195 = vsel %vm2163, %v1817, 0.0
    %v2196 = vsel %vm2164, %v1816, 0.0
    %v2197 = vsel %vm2165, %v1817, 0.0
    %v2198 = vsel %vm2166, %v1816, 0.0
    %v2199 = vsel %vm2167, %v1817, 0.0
    %v2200 = vsel %vm2168, %v1816, 0.0
    %v2201 = vsel %vm2169, %v1817, 0.0
    %v2202 = vsel %vm2170, %v1816, 0.0
    %v2203 = vsel %vm2171, %v1817, 0.0
    %v2204 = vsel %vm2172, %v1816, 0.0
    %v2205 = vsel %vm2173, %v1817, 0.0
    %v2206 = vsel %vm2174, %v1816, 0.0
    %v2207 = vsel %vm2175, %v1817, 0.0
    %v2208 = vsel %vm2176, %v1816, 0.0
    %v2209 = vsel %vm2177, %v1817, 0.0
    %v2210 = vadd.f32 %v2112, %v2178
    %v2211 = vadd.f32 %v2113, %v2179
    %v2212 = vadd.f32 %v2114, %v2180
    %v2213 = vadd.f32 %v2115, %v2181
    %v2214 = vadd.f32 %v2116, %v2182
    %v2215 = vadd.f32 %v2117, %v2183
    %v2216 = vadd.f32 %v2118, %v2184
    %v2217 = vadd.f32 %v2119, %v2185
    %v2218 = vadd.f32 %v2120, %v2186
    %v2219 = vadd.f32 %v2121, %v2187
    %v2220 = vadd.f32 %v2122, %v2188
    %v2221 = vadd.f32 %v2123, %v2189
    %v2222 = vadd.f32 %v2124, %v2190
    %v2223 = vadd.f32 %v2125, %v2191
    %v2224 = vadd.f32 %v2126, %v2192
    %v2225 = vadd.f32 %v2127, %v2193
    %v2226 = vadd.f32 %v2128, %v2194
    %v2227 = vadd.f32 %v2129, %v2195
    %v2228 = vadd.f32 %v2130, %v2196
    %v2229 = vadd.f32 %v2131, %v2197
    %v2230 = vadd.f32 %v2132, %v2198
    %v2231 = vadd.f32 %v2133, %v2199
    %v2232 = vadd.f32 %v2134, %v2200
    %v2233 = vadd.f32 %v2135, %v2201
    %v2234 = vadd.f32 %v2136, %v2202
    %v2235 = vadd.f32 %v2137, %v2203
    %v2236 = vadd.f32 %v2138, %v2204
    %v2237 = vadd.f32 %v2139, %v2205
    %v2238 = vadd.f32 %v2140, %v2206
    %v2239 = vadd.f32 %v2141, %v2207
    %v2240 = vadd.f32 %v2142, %v2208
    %v2241 = vadd.f32 %v2143, %v2209
    %2242 = vmatpush.msra.mxu0 %v2240
    %2243 = vmatpush.msra.mxu0 %v2238
    %2244 = vmatpush.msra.mxu0 %v2236
    %2245 = vmatpush.msra.mxu0 %v2234
    %2246 = vmatpush.msra.mxu0 %v2232
    %2247 = vmatpush.msra.mxu0 %v2230
    %2248 = vmatpush.msra.mxu0 %v2228
    %2249 = vmatpush.msra.mxu0 %v2226
    %2250 = vmatpush.msra.mxu0 %v2224
    %2251 = vmatpush.msra.mxu0 %v2222
    %2252 = vmatpush.msra.mxu0 %v2220
    %2253 = vmatpush.msra.mxu0 %v2218
    %2254 = vmatpush.msra.mxu0 %v2216
    %2255 = vmatpush.msra.mxu0 %v2214
    %2256 = vmatpush.msra.mxu0 %v2212
    %2257 = vmatpush.msra.mxu0 %v2210
    %2258 = vmatmul.f32.gmra.mxu0 %v1513
    %v2259 = vpop.f32.mrf.mxu0
    %v2260 = vadd.f32 0.0, %v2259
    %2261 = vdwg.mxu0
    %2262 = vmatpush.msra.mxu0 %v2241
    %2263 = vmatpush.msra.mxu0 %v2239
    %2264 = vmatpush.msra.mxu0 %v2237
    %2265 = vmatpush.msra.mxu0 %v2235
    %2266 = vmatpush.msra.mxu0 %v2233
    %2267 = vmatpush.msra.mxu0 %v2231
    %2268 = vmatpush.msra.mxu0 %v2229
    %2269 = vmatpush.msra.mxu0 %v2227
    %2270 = vmatpush.msra.mxu0 %v2225
    %2271 = vmatpush.msra.mxu0 %v2223
    %2272 = vmatpush.msra.mxu0 %v2221
    %2273 = vmatpush.msra.mxu0 %v2219
    %2274 = vmatpush.msra.mxu0 %v2217
    %2275 = vmatpush.msra.mxu0 %v2215
    %2276 = vmatpush.msra.mxu0 %v2213
    %2277 = vmatpush.msra.mxu0 %v2211
    %2278 = vmatmul.f32.gmra.mxu0 %v1513
    %v2279 = vpop.f32.mrf.mxu0
    %v2280 = vadd.f32 0.0, %v2279
    %2281 = vdwg.mxu0
    %2282 = vmatpush.msra.mxu0 %v1880
    %2283 = vmatpush.msra.mxu0 %v1878
    %2284 = vmatpush.msra.mxu0 %v1876
    %2285 = vmatpush.msra.mxu0 %v1874
    %2286 = vmatpush.msra.mxu0 %v1872
    %2287 = vmatpush.msra.mxu0 %v1870
    %2288 = vmatpush.msra.mxu0 %v1868
    %2289 = vmatpush.msra.mxu0 %v1866
    %2290 = vmatpush.msra.mxu0 %v1864
    %2291 = vmatpush.msra.mxu0 %v1862
    %2292 = vmatpush.msra.mxu0 %v1860
    %2293 = vmatpush.msra.mxu0 %v1858
    %2294 = vmatpush.msra.mxu0 %v1856
    %2295 = vmatpush.msra.mxu0 %v1854
    %2296 = vmatpush.msra.mxu0 %v1852
    %2297 = vmatpush.msra.mxu0 %v1850
    %2298 = vmatmul.f32.gmra.mxu0 %v1512
    %v2299 = vpop.f32.mrf.mxu0
    %v2300 = vadd.f32 %v2260, %v2299
    %2301 = vdwg.mxu0
    %2302 = vmatpush.msra.mxu0 %v1881
    %2303 = vmatpush.msra.mxu0 %v1879
    %2304 = vmatpush.msra.mxu0 %v1877
    %2305 = vmatpush.msra.mxu0 %v1875
    %2306 = vmatpush.msra.mxu0 %v1873
    %2307 = vmatpush.msra.mxu0 %v1871
    %2308 = vmatpush.msra.mxu0 %v1869
    %2309 = vmatpush.msra.mxu0 %v1867
    %2310 = vmatpush.msra.mxu0 %v1865
    %2311 = vmatpush.msra.mxu0 %v1863
    %2312 = vmatpush.msra.mxu0 %v1861
    %2313 = vmatpush.msra.mxu0 %v1859
    %2314 = vmatpush.msra.mxu0 %v1857
    %2315 = vmatpush.msra.mxu0 %v1855
    %2316 = vmatpush.msra.mxu0 %v1853
    %2317 = vmatpush.msra.mxu0 %v1851
    %2318 = vmatmul.f32.gmra.mxu0 %v1512
    %v2319 = vpop.f32.mrf.mxu0
    %v2320 = vadd.f32 %v2280, %v2319
    %2321 = vdwg.mxu0
    %v2322 = vmax.f32 %v257, %v2300
    %v2323 = vmax.f32 %v280, %v2320
    %v2324 = vsub.f32 %v257, %v2322
    %v2325 = vsub.f32 %v280, %v2323
    %v2326 = vmul.f32 %v2324, 1.442695
    %v2327 = vpow.pop %v2326
    %v2328 = vmul.f32 %v2325, 1.442695
    %v2329 = vpow.pop %v2328
    %v2330 = vsub.f32 %v2300, %v2322
    %v2331 = vsub.f32 %v2320, %v2323
    %v2332 = vmul.f32 %v2330, 1.442695
    %v2333 = vpow.pop %v2332
    %v2334 = vmul.f32 %v2331, 1.442695
    %v2335 = vpow.pop %v2334
    %v2336 = vadd.f32 %v2327, %v2333
    %v2337 = vadd.f32 %v2329, %v2335
    %v2338 = vrcp.pop %v2336
    %v2339 = vmul.f32 %v2336, %v2338
    %v2340 = vsub.f32 1.0, %v2339
    %v2341 = vmul.f32 %v2338, %v2340
    %v2342 = vadd.f32 %v2338, %v2341
    %vm2343 = vweird.f32 %v2336
    %vm2344 = vweird.f32 %v2338
    %vm2345 = vmor %vm2343, %vm2344
    %v2346 = vsel %vm2345, %v2338, %v2342
    %v2347 = vand.u32 2147483647, %v2336
    %vm2348 = vcmp.eq.f32.partialorder %v2347, 8.507059e+37
    %v2349 = vand.u32 %v2336, 2147483648
    %v2350 = vor.u32 1.1754944e-38, %v2349
    %v2351 = vsel %vm2348, %v2350, %v2346
    %v2352 = vmul.f32 1.0, %v2351
    %v2353 = vrcp.pop %v2337
    %v2354 = vmul.f32 %v2337, %v2353
    %v2355 = vsub.f32 1.0, %v2354
    %v2356 = vmul.f32 %v2353, %v2355
    %v2357 = vadd.f32 %v2353, %v2356
    %vm2358 = vweird.f32 %v2337
    %vm2359 = vweird.f32 %v2353
    %vm2360 = vmor %vm2358, %vm2359
    %v2361 = vsel %vm2360, %v2353, %v2357
    %v2362 = vand.u32 2147483647, %v2337
    %vm2363 = vcmp.eq.f32.partialorder %v2362, 8.507059e+37
    %v2364 = vand.u32 %v2337, 2147483648
    %v2365 = vor.u32 1.1754944e-38, %v2364
    %v2366 = vsel %vm2363, %v2365, %v2361
    %v2367 = vmul.f32 1.0, %v2366
    %v2368 = vmul.f32 %v2327, %v2352
    %v2369 = vmul.f32 %v2329, %v2367
    %v2370 = vmul.f32 %v2333, %v2352
    %v2371 = vmul.f32 %v2335, %v2367
    %v2372 = vperm.slane %v2368, 3
    %v2373 = vperm.slane %v2369, 3
    %v2374 = vmul.f32 %v1498, %v2372
    %v2375 = vmul.f32 %v1499, %v2373
    %v2376 = vperm.slane %v2370, 3
    %v2377 = vperm.slane %v2371, 3
    %v2378 = vmul.f32 %v2300, %v2376
    %v2379 = vmul.f32 %v2320, %v2377
    %v2380 = vadd.f32 %v2374, %v2378
    %v2381 = vadd.f32 %v2375, %v2379
    %2382 = vst [vmem:[%s5 + $0x10] sm:$0x7] %v2380
    %2383 = vst [vmem:[%s5 + $0x18] sm:$0x7] %v2381
    %v2384 = vrot.slane %v1498, 5
    %v2385 = vrot.slane %v1499, 5
    %2388 = vst [vmem:[%s5 + $0x10] sm:$0x38] %v2384
    %2389 = vst [vmem:[%s5 + $0x18] sm:$0x38] %v2385
    %2392 = vst [vmem:[#allocation1] sm:$0xff] %v2368
    %2393 = vst [vmem:[#allocation1 + $0x9] sm:$0xff] %v2369
    %s2394 = scalar_lea.vmem [#allocation1], 3
    %v2395 = vld [vmem:[%s2394] ss:$9 sm:$0xff]
    %s2397 = scalar_lea.vmem %s5, 22
    %2398 = vst.msk [vmem:[%s2397] ss:$8 sm:$0x3] %vm1458, %v2395
    %2399 = vst.msk [vmem:[%s2397] ss:$8 sm:$0x0] %vm1458, %v2395
    %2402 = vst [vmem:[#allocation1] sm:$0xff] %v2370
    %2403 = vst [vmem:[#allocation1 + $0x9] sm:$0xff] %v2371
    %s2404 = scalar_lea.vmem [#allocation1], 3
    %v2405 = vld [vmem:[%s2404] ss:$9 sm:$0xff]
    %s2407 = scalar_lea.vmem %s5, 23
    %2408 = vst.msk [vmem:[%s2407] ss:$8 sm:$0x3] %vm1458, %v2405
    %2409 = vst.msk [vmem:[%s2407] ss:$8 sm:$0x0] %vm1458, %v2405
    %2410 = vst [vmem:[%s6 + $0x10] sm:$0x7] %v2300
    %2411 = vst [vmem:[%s6 + $0x18] sm:$0x7] %v2320
    %v2414 = vrot.slane %v1512, 5
    %v2415 = vrot.slane %v1513, 5
    %2418 = vst [vmem:[%s6 + $0x10] sm:$0x38] %v2414
    %2419 = vst [vmem:[%s6 + $0x18] sm:$0x38] %v2415
    %2420 = vst [vmem:[#allocation1] sm:$0xff] %v448
    %2421 = vst [vmem:[#allocation1 + $0x9] sm:$0xff] %v449
    %s2422 = scalar_lea.vmem [#allocation1], 1
    %v2423 = vld [vmem:[%s2422] ss:$9 sm:$0xff]
    %s2425 = scalar_lea.vmem %s6, 22
    %2426 = vst.msk [vmem:[%s2425] ss:$8 sm:$0x3] %vm1458, %v2423
    %2427 = vst.msk [vmem:[%s2425] ss:$8 sm:$0x0] %vm1458, %v2423
    %2428 = vst [vmem:[#allocation1] sm:$0xff] %v450
    %2429 = vst [vmem:[#allocation1 + $0x9] sm:$0xff] %v451
    %s2430 = scalar_lea.vmem [#allocation1], 1
    %v2431 = vld [vmem:[%s2430] ss:$9 sm:$0xff]
    %s2433 = scalar_lea.vmem %s6, 23
    %2434 = vst.msk [vmem:[%s2433] ss:$8 sm:$0x3] %vm1458, %v2431
    %2435 = vst.msk [vmem:[%s2433] ss:$8 sm:$0x0] %vm1458, %v2431
    // Predicated region
    $region30: #{eabp_forward.1} parent=1 // pred_check
      _
    $region31: #{eabp_forward.1} parent=1 // pred_check_branch
      %2437 = sbr.rel (0) target = $region33
    $region32: #{eabp_forward.1} parent=1 // pred_region
      _
    $region33: #{eabp_forward.1} parent=1 // pred_fallthru
      _
    // Predicated region
    $region34: #{eabp_forward.1} parent=1 // pred_check
      _
    $region35: #{eabp_forward.1} parent=1 // pred_check_branch
      %2439 = sbr.rel (0) target = $region37
    $region36: #{eabp_forward.1} parent=1 // pred_region
      _
    $region37: #{eabp_forward.1} parent=1 // pred_fallthru
      _
    // Predicated region
    $region38: #{eabp_forward.1} parent=1 // pred_check
      _
    $region39: #{eabp_forward.1} parent=1 // pred_check_branch
      %2441 = sbr.rel (0) target = $region41
    $region40: #{eabp_forward.1} parent=1 // pred_region
      _
    $region41: #{eabp_forward.1} parent=1 // pred_fallthru
      _
    // Predicated region
    $region42: #{eabp_forward.1} parent=1 // pred_check
      _
    $region43: #{eabp_forward.1} parent=1 // pred_check_branch
      %2443 = sbr.rel (0) target = $region45
    $region44: #{eabp_forward.1} parent=1 // pred_region
      _
    $region45: #{eabp_forward.1} parent=1 // pred_fallthru
      _
    // Predicated region
    $region46: #{eabp_forward.1} parent=1 // pred_check
      _
    $region47: #{eabp_forward.1} parent=1 // pred_check_branch
      %2445 = sbr.rel (0) target = $region49
    $region48: #{eabp_forward.1} parent=1 // pred_region
      _
    $region49: #{eabp_forward.1} parent=1 // pred_fallthru
      _
    // Predicated region
    $region50: #{eabp_forward.1} parent=1 // pred_check
      _
    $region51: #{eabp_forward.1} parent=1 // pred_check_branch
      %2447 = sbr.rel (0) target = $region53
    $region52: #{eabp_forward.1} parent=1 // pred_region
      _
    $region53: #{eabp_forward.1} parent=1 // pred_fallthru
      _
    %2448 = vsyncpa [#allocation3], 1
    %2449 = vsyncpa [#allocation5], 1

</llo_original>
